<compile_context>
chip_gen: v7x
topology: tpu7x:2x2x1
jax: 0.10.0
libtpu: 0.0.40
codegen_flags: <defaults>
</compile_context>

<pallas_src>
import functools
import math

import jax
import jax.numpy as jnp
from jax.experimental import pallas as pl
from jax.experimental.pallas import tpu as pltpu

# Small synthetic "roberta" config (checkpoint is not loaded; params are deterministic).
VOCAB = 100
HIDDEN = 32
NUM_HEADS = 2
HEAD_DIM = HIDDEN // NUM_HEADS
FFN = 64
NUM_LAYERS = 2
MAX_POS = 64
NUM_CLASSES = 36
CLS_PAD = 128            # lane-dense classifier output; sliced back to 36 in the wrapper
LN_EPS = 1e-12

VMEM = pl.BlockSpec(memory_space=pltpu.MemorySpace.VMEM)


# ------------------------- fused Pallas kernel -------------------------

def _fused_bert_mean_kernel(emb_ref, mask_ref, emb_ln_g_ref, emb_ln_b_ref,
                            wqkv_ref, bqkv_ref, wo_ref, bo_ref,
                            ln1_g_ref, ln1_b_ref, w1_ref, b1_ref,
                            w2_ref, b2_ref, ln2_g_ref, ln2_b_ref,
                            w_cls_ref, b_cls_ref, o_ref, *, batch, seq):
    f32 = jnp.float32

    def layer_norm(x, g, b):
        mu = jnp.mean(x, axis=-1, keepdims=True)
        var = jnp.mean(jnp.square(x - mu), axis=-1, keepdims=True)
        return (x - mu) * jax.lax.rsqrt(var + LN_EPS) * g + b

    mask = mask_ref[...]                                                   # [B, S]
    x = layer_norm(emb_ref[...], emb_ln_g_ref[...], emb_ln_b_ref[...])     # [B*S, H]

    scale = 1.0 / math.sqrt(HEAD_DIM)
    for l in range(NUM_LAYERS):
        # Fused QKV projection: one MXU pass, lane width 3*H.
        qkv = jnp.dot(x, wqkv_ref[l], preferred_element_type=f32) + bqkv_ref[l]
        q = qkv[:, 0 * HIDDEN:1 * HIDDEN]
        k = qkv[:, 1 * HIDDEN:2 * HIDDEN]
        v = qkv[:, 2 * HIDDEN:3 * HIDDEN]

        # Self-attention: static Python loops over (batch, head); pure 2-D VMEM ops.
        ctx_rows = []
        for b in range(batch):
            r0 = b * seq
            bias = (1.0 - mask[b:b + 1, :]) * (-1e9)                       # [1, S]
            heads = []
            for h in range(NUM_HEADS):
                c0 = h * HEAD_DIM
                qh = q[r0:r0 + seq, c0:c0 + HEAD_DIM]                      # [S, DH]
                kh = k[r0:r0 + seq, c0:c0 + HEAD_DIM]
                vh = v[r0:r0 + seq, c0:c0 + HEAD_DIM]
                s = jax.lax.dot_general(qh, kh, (((1,), (1,)), ((), ())),
                                        preferred_element_type=f32) * scale
                s = s + bias                                               # mask padded keys
                s = s - jnp.max(s, axis=-1, keepdims=True)
                p = jnp.exp(s)
                p = p / jnp.sum(p, axis=-1, keepdims=True)
                heads.append(jnp.dot(p, vh, preferred_element_type=f32))   # [S, DH]
            ctx_rows.append(jnp.concatenate(heads, axis=1))                # [S, H]
        ctx = jnp.concatenate(ctx_rows, axis=0)                            # [B*S, H]

        # Output projection + residual + LN1 (fused epilogue).
        attn_out = jnp.dot(ctx, wo_ref[l], preferred_element_type=f32) + bo_ref[l]
        x = layer_norm(x + attn_out, ln1_g_ref[l], ln1_b_ref[l])

        # FFN + residual + LN2 (fused epilogue).
        # TODO(synk): HF BERT/RoBERTa use erf-GELU; tanh-approximate GELU kept for guaranteed
        # Mosaic lowering (numerically very close).
        ffn = jax.nn.gelu(jnp.dot(x, w1_ref[l], preferred_element_type=f32) + b1_ref[l],
                          approximate=True)
        ffn = jnp.dot(ffn, w2_ref[l], preferred_element_type=f32) + b2_ref[l]
        x = layer_norm(x + ffn, ln2_g_ref[l], ln2_b_ref[l])

    # Masked mean pooling (MeanPooling) + classifier; nn.Dropout(p=0.2) is identity at inference.
    pooled_rows = []
    for b in range(batch):
        hb = x[b * seq:(b + 1) * seq, :]                                   # [S, H]
        mb = mask[b:b + 1, :]                                              # [1, S]
        sum_emb = jnp.dot(mb, hb, preferred_element_type=f32)              # [1, H]
        sum_mask = jnp.maximum(jnp.sum(mb, axis=-1, keepdims=True), 1e-9)  # [1, 1]
        pooled_rows.append(sum_emb / sum_mask)
    pooled = jnp.concatenate(pooled_rows, axis=0)                          # [B, H]

    # Lane-dense (padded to 128) logits writeback.
    o_ref[...] = jnp.dot(pooled, w_cls_ref[...], preferred_element_type=f32) + b_cls_ref[...]


# ------------------------- wrapper / param packing -------------------------

def custom_bert_mean_forward(packed, input_ids, attention_mask):
    bsz, s = input_ids.shape
    mask_f = attention_mask.astype(jnp.float32)
    # Embedding gather is glue (plain JAX); everything else runs inside one Pallas kernel.
    emb = (packed["word_emb"][input_ids]
           + packed["pos_emb"][:s][None, :, :]
           + packed["type_emb"][0][None, None, :]).reshape(bsz * s, HIDDEN)

    kernel = functools.partial(_fused_bert_mean_kernel, batch=bsz, seq=s)
    logits_pad = pl.pallas_call(
        kernel,
        out_shape=jax.ShapeDtypeStruct((bsz, CLS_PAD), jnp.float32),
        in_specs=[VMEM] * 18,
        out_specs=VMEM,
    )(emb, mask_f,
      packed["emb_ln_g"], packed["emb_ln_b"],
      packed["wqkv"], packed["bqkv"], packed["wo"], packed["bo"],
      packed["ln1_g"], packed["ln1_b"],
      packed["w1"], packed["b1"], packed["w2"], packed["b2"],
      packed["ln2_g"], packed["ln2_b"],
      packed["w_cls_pad"], packed["b_cls_pad"])
    return logits_pad[:, :NUM_CLASSES]


def pack_params(params):
    """One-time packing: concat QKV weights, stack per-layer params, pad classifier to 128 lanes."""
    L = params["layers"]

    def stack(key):
        return jnp.stack([p[key] for p in L], axis=0)

    def stack_row(key, n):
        return jnp.stack([p[key].reshape(1, n) for p in L], axis=0)

    return {
        "word_emb": params["word_emb"],
        "pos_emb": params["pos_emb"],
        "type_emb": params["type_emb"],
        "emb_ln_g": params["emb_ln_g"].reshape(1, HIDDEN),
        "emb_ln_b": params["emb_ln_b"].reshape(1, HIDDEN),
        "wqkv": jnp.stack(
            [jnp.concatenate([p["wq"], p["wk"], p["wv"]], axis=1) for p in L], axis=0),
        "bqkv": jnp.stack(
            [jnp.concatenate([p["bq"], p["bk"], p["bv"]], axis=0).reshape(1, 3 * HIDDEN)
             for p in L], axis=0),
        "wo": stack("wo"), "bo": stack_row("bo", HIDDEN),
        "ln1_g": stack_row("ln1_g", HIDDEN), "ln1_b": stack_row("ln1_b", HIDDEN),
        "w1": stack("w1"), "b1": stack_row("b1", FFN),
        "w2": stack("w2"), "b2": stack_row("b2", HIDDEN),
        "ln2_g": stack_row("ln2_g", HIDDEN), "ln2_b": stack_row("ln2_b", HIDDEN),
        "w_cls_pad": jnp.zeros((HIDDEN, CLS_PAD), jnp.float32)
                        .at[:, :NUM_CLASSES].set(params["w_cls"]),
        "b_cls_pad": jnp.zeros((1, CLS_PAD), jnp.float32)
                        .at[:, :NUM_CLASSES].set(params["b_cls"]),
    }


def init_params(key):
    def nrm(k, shape):
        return (0.02 * jax.random.normal(k, shape)).astype(jnp.float32)

    keys = jax.random.split(key, 8 + NUM_LAYERS)
    params = {
        "word_emb": nrm(keys[0], (VOCAB, HIDDEN)),
        "pos_emb": nrm(keys[1], (MAX_POS, HIDDEN)),
        "type_emb": nrm(keys[2], (2, HIDDEN)),
        "emb_ln_g": jnp.ones((HIDDEN,), jnp.float32),
        "emb_ln_b": jnp.zeros((HIDDEN,), jnp.float32),
        "w_cls": nrm(keys[3], (HIDDEN, NUM_CLASSES)),
        "b_cls": jnp.zeros((NUM_CLASSES,), jnp.float32),
        "layers": [],
    }
    for li in range(NUM_LAYERS):
        lk = jax.random.split(keys[8 + li], 6)
        params["layers"].append({
            "wq": nrm(lk[0], (HIDDEN, HIDDEN)), "bq": jnp.zeros((HIDDEN,), jnp.float32),
            "wk": nrm(lk[1], (HIDDEN, HIDDEN)), "bk": jnp.zeros((HIDDEN,), jnp.float32),
            "wv": nrm(lk[2], (HIDDEN, HIDDEN)), "bv": jnp.zeros((HIDDEN,), jnp.float32),
            "wo": nrm(lk[3], (HIDDEN, HIDDEN)), "bo": jnp.zeros((HIDDEN,), jnp.float32),
            "ln1_g": jnp.ones((HIDDEN,), jnp.float32), "ln1_b": jnp.zeros((HIDDEN,), jnp.float32),
            "w1": nrm(lk[4], (HIDDEN, FFN)), "b1": jnp.zeros((FFN,), jnp.float32),
            "w2": nrm(lk[5], (FFN, HIDDEN)), "b2": jnp.zeros((HIDDEN,), jnp.float32),
            "ln2_g": jnp.ones((HIDDEN,), jnp.float32), "ln2_b": jnp.zeros((HIDDEN,), jnp.float32),
        })
    return params


# ------------------------- plain-JAX reference (correctness check) -------------------------

def reference_forward(params, input_ids, attention_mask):
    bsz, s = input_ids.shape
    mask_f = attention_mask.astype(jnp.float32)
    emb = (params["word_emb"][input_ids]
           + params["pos_emb"][:s][None, :, :]
           + params["type_emb"][0][None, None, :])

    def ln(x, g, b):
        mu = jnp.mean(x, -1, keepdims=True)
        var = jnp.mean(jnp.square(x - mu), -1, keepdims=True)
        return (x - mu) * jax.lax.rsqrt(var + LN_EPS) * g + b

    x = ln(emb, params["emb_ln_g"], params["emb_ln_b"])
    scale = 1.0 / math.sqrt(HEAD_DIM)
    for p in params["layers"]:
        def split(t):
            return t.reshape(bsz, s, NUM_HEADS, HEAD_DIM).transpose(0, 2, 1, 3)
        q = split(x @ p["wq"] + p["bq"])
        k = split(x @ p["wk"] + p["bk"])
        v = split(x @ p["wv"] + p["bv"])
        sc = jnp.einsum("bhqd,bhkd->bhqk", q, k) * scale
        sc = sc + ((1.0 - mask_f) * (-1e9))[:, None, None, :]
        pr = jax.nn.softmax(sc, axis=-1)
        ctx = jnp.einsum("bhqk,bhkd->bhqd", pr, v).transpose(0, 2, 1, 3).reshape(bsz, s, HIDDEN)
        x = ln(x + ctx @ p["wo"] + p["bo"], p["ln1_g"], p["ln1_b"])
        ffn = jax.nn.gelu(x @ p["w1"] + p["b1"], approximate=True) @ p["w2"] + p["b2"]
        x = ln(x + ffn, p["ln2_g"], p["ln2_b"])
    m = mask_f[:, :, None]
    pooled = jnp.sum(x * m, axis=1) / jnp.maximum(jnp.sum(m, axis=1), 1e-9)
    return pooled @ params["w_cls"] + params["b_cls"]


if __name__ == "__main__":
    B, S = 2, 8
    root = jax.random.PRNGKey(0)
    k_params, k_ids = jax.random.split(root)
    params = init_params(k_params)
    packed = pack_params(params)

    input_ids = jax.random.randint(k_ids, (B, S), 0, VOCAB, dtype=jnp.int32)
    # ragged lengths: second sequence has 3 padding positions
    attention_mask = jnp.ones((B, S), jnp.int32).at[1, 5:].set(0)

    fwd = jax.jit(custom_bert_mean_forward)
    logits = jax.block_until_ready(fwd(packed, input_ids, attention_mask))
    ref = jax.block_until_ready(reference_forward(params, input_ids, attention_mask))

    assert logits.shape == (B, NUM_CLASSES)
    assert bool(jnp.all(jnp.isfinite(logits)))
    assert bool(jnp.allclose(logits, ref, atol=1e-4, rtol=1e-4)), \
        f"max abs diff = {float(jnp.max(jnp.abs(logits - ref)))}"
    print("KERNEL_OK")
</pallas_src>

<mosaic_0001>
module attributes {stable_mosaic.version = 11 : i64} {
  func.func @_fused_bert_mean_kernel(%arg0: memref<16x32xf32, #tpu.memory_space<vmem>>, %arg1: memref<2x8xf32, #tpu.memory_space<vmem>>, %arg2: memref<1x32xf32, #tpu.memory_space<vmem>>, %arg3: memref<1x32xf32, #tpu.memory_space<vmem>>, %arg4: memref<2x32x96xf32, #tpu.memory_space<vmem>>, %arg5: memref<2x1x96xf32, #tpu.memory_space<vmem>>, %arg6: memref<2x32x32xf32, #tpu.memory_space<vmem>>, %arg7: memref<2x1x32xf32, #tpu.memory_space<vmem>>, %arg8: memref<2x1x32xf32, #tpu.memory_space<vmem>>, %arg9: memref<2x1x32xf32, #tpu.memory_space<vmem>>, %arg10: memref<2x32x64xf32, #tpu.memory_space<vmem>>, %arg11: memref<2x1x64xf32, #tpu.memory_space<vmem>>, %arg12: memref<2x64x32xf32, #tpu.memory_space<vmem>>, %arg13: memref<2x1x32xf32, #tpu.memory_space<vmem>>, %arg14: memref<2x1x32xf32, #tpu.memory_space<vmem>>, %arg15: memref<2x1x32xf32, #tpu.memory_space<vmem>>, %arg16: memref<32x128xf32, #tpu.memory_space<vmem>>, %arg17: memref<1x128xf32, #tpu.memory_space<vmem>>, %arg18: memref<2x128xf32, #tpu.memory_space<vmem>>) attributes {dimension_semantics = [], scalar_prefetch = 0 : i64, scratch_operands = 0 : i64, tpu.core_type = #tpu.core_type<tc>} {
    %c0 = arith.constant 0 : index
    %c0_0 = arith.constant 0 : index
    %0 = vector.load %arg1[%c0, %c0_0] : memref<2x8xf32, #tpu.memory_space<vmem>>, vector<2x8xf32>
    %c0_1 = arith.constant 0 : index
    %c0_2 = arith.constant 0 : index
    %1 = vector.load %arg0[%c0_1, %c0_2] : memref<16x32xf32, #tpu.memory_space<vmem>>, vector<16x32xf32>
    %c0_3 = arith.constant 0 : index
    %c0_4 = arith.constant 0 : index
    %2 = vector.load %arg2[%c0_3, %c0_4] : memref<1x32xf32, #tpu.memory_space<vmem>>, vector<1x32xf32>
    %c0_5 = arith.constant 0 : index
    %c0_6 = arith.constant 0 : index
    %3 = vector.load %arg3[%c0_5, %c0_6] : memref<1x32xf32, #tpu.memory_space<vmem>>, vector<1x32xf32>
    %cst = arith.constant dense<0.000000e+00> : vector<16xf32>
    %4 = vector.multi_reduction <add>, %1, %cst [1] : vector<16x32xf32> to vector<16xf32>
    %5 = vector.shape_cast %4 : vector<16xf32> to vector<16x1xf32>
    %cst_7 = arith.constant 3.200000e+01 : f32
    %6 = vector.broadcast %cst_7 : f32 to vector<16x1xf32>
    %7 = arith.divf %5, %6 : vector<16x1xf32>
    %8 = vector.broadcast %7 : vector<16x1xf32> to vector<16x32xf32>
    %9 = arith.subf %1, %8 : vector<16x32xf32>
    %10 = arith.mulf %9, %9 : vector<16x32xf32>
    %cst_8 = arith.constant dense<0.000000e+00> : vector<16xf32>
    %11 = vector.multi_reduction <add>, %10, %cst_8 [1] : vector<16x32xf32> to vector<16xf32>
    %12 = vector.shape_cast %11 : vector<16xf32> to vector<16x1xf32>
    %cst_9 = arith.constant 3.200000e+01 : f32
    %13 = vector.broadcast %cst_9 : f32 to vector<16x1xf32>
    %14 = arith.divf %12, %13 : vector<16x1xf32>
    %15 = vector.broadcast %7 : vector<16x1xf32> to vector<16x32xf32>
    %16 = arith.subf %1, %15 : vector<16x32xf32>
    %cst_10 = arith.constant 9.99999996E-13 : f32
    %17 = vector.broadcast %cst_10 : f32 to vector<16x1xf32>
    %18 = arith.addf %14, %17 : vector<16x1xf32>
    %19 = math.rsqrt %18 : vector<16x1xf32>
    %20 = vector.broadcast %19 : vector<16x1xf32> to vector<16x32xf32>
    %21 = arith.mulf %16, %20 : vector<16x32xf32>
    %22 = vector.broadcast %2 : vector<1x32xf32> to vector<16x32xf32>
    %23 = arith.mulf %21, %22 : vector<16x32xf32>
    %24 = vector.broadcast %3 : vector<1x32xf32> to vector<16x32xf32>
    %25 = arith.addf %23, %24 : vector<16x32xf32>
    %c0_11 = arith.constant 0 : index
    %c0_12 = arith.constant 0 : index
    %c0_13 = arith.constant 0 : index
    %26 = vector.load %arg4[%c0_11, %c0_12, %c0_13] : memref<2x32x96xf32, #tpu.memory_space<vmem>>, vector<1x32x96xf32>
    %27 = vector.shape_cast %26 : vector<1x32x96xf32> to vector<32x96xf32>
    %cst_14 = arith.constant dense<0.000000e+00> : vector<16x96xf32>
    %28 = tpu.matmul %25, %27, %cst_14 {dimension_numbers = #tpu.dot_dimension_numbers<[1], [0], [0], [1], [0, 0, 1, 1], [], []>} : vector<16x32xf32>, vector<32x96xf32>, vector<16x96xf32> -> vector<16x96xf32>
    %c0_15 = arith.constant 0 : index
    %c0_16 = arith.constant 0 : index
    %c0_17 = arith.constant 0 : index
    %29 = vector.load %arg5[%c0_15, %c0_16, %c0_17] : memref<2x1x96xf32, #tpu.memory_space<vmem>>, vector<1x1x96xf32>
    %30 = vector.shape_cast %29 : vector<1x1x96xf32> to vector<1x96xf32>
    %31 = vector.broadcast %30 : vector<1x96xf32> to vector<16x96xf32>
    %32 = arith.addf %28, %31 : vector<16x96xf32>
    %33 = vector.extract_strided_slice %32 {offsets = [0, 0], sizes = [16, 32], strides = [1, 1]} : vector<16x96xf32> to vector<16x32xf32>
    %34 = vector.extract_strided_slice %32 {offsets = [0, 32], sizes = [16, 32], strides = [1, 1]} : vector<16x96xf32> to vector<16x32xf32>
    %35 = vector.extract_strided_slice %32 {offsets = [0, 64], sizes = [16, 32], strides = [1, 1]} : vector<16x96xf32> to vector<16x32xf32>
    %36 = vector.extract_strided_slice %0 {offsets = [0, 0], sizes = [1, 8], strides = [1, 1]} : vector<2x8xf32> to vector<1x8xf32>
    %cst_18 = arith.constant 1.000000e+00 : f32
    %37 = vector.broadcast %cst_18 : f32 to vector<1x8xf32>
    %38 = arith.subf %37, %36 : vector<1x8xf32>
    %cst_19 = arith.constant -1.000000e+09 : f32
    %39 = vector.broadcast %cst_19 : f32 to vector<1x8xf32>
    %40 = arith.mulf %38, %39 : vector<1x8xf32>
    %41 = vector.extract_strided_slice %33 {offsets = [0, 0], sizes = [8, 16], strides = [1, 1]} : vector<16x32xf32> to vector<8x16xf32>
    %42 = vector.extract_strided_slice %34 {offsets = [0, 0], sizes = [8, 16], strides = [1, 1]} : vector<16x32xf32> to vector<8x16xf32>
    %43 = vector.extract_strided_slice %35 {offsets = [0, 0], sizes = [8, 16], strides = [1, 1]} : vector<16x32xf32> to vector<8x16xf32>
    %cst_20 = arith.constant dense<0.000000e+00> : vector<8x8xf32>
    %44 = tpu.matmul %41, %42, %cst_20 {dimension_numbers = #tpu.dot_dimension_numbers<[1], [1], [0], [0], [0, 0, 1, 0], [], []>} : vector<8x16xf32>, vector<8x16xf32>, vector<8x8xf32> -> vector<8x8xf32>
    %cst_21 = arith.constant 2.500000e-01 : f32
    %45 = vector.broadcast %cst_21 : f32 to vector<8x8xf32>
    %46 = arith.mulf %44, %45 : vector<8x8xf32>
    %47 = vector.broadcast %40 : vector<1x8xf32> to vector<8x8xf32>
    %48 = arith.addf %46, %47 : vector<8x8xf32>
    %cst_22 = arith.constant dense<0xFF800000> : vector<8xf32>
    %49 = vector.multi_reduction <maximumf>, %48, %cst_22 [1] : vector<8x8xf32> to vector<8xf32>
    %50 = vector.shape_cast %49 : vector<8xf32> to vector<8x1xf32>
    %51 = vector.broadcast %50 : vector<8x1xf32> to vector<8x8xf32>
    %52 = arith.subf %48, %51 : vector<8x8xf32>
    %53 = math.exp %52 : vector<8x8xf32>
    %cst_23 = arith.constant dense<0.000000e+00> : vector<8xf32>
    %54 = vector.multi_reduction <add>, %53, %cst_23 [1] : vector<8x8xf32> to vector<8xf32>
    %55 = vector.shape_cast %54 : vector<8xf32> to vector<8x1xf32>
    %56 = vector.broadcast %55 : vector<8x1xf32> to vector<8x8xf32>
    %57 = arith.divf %53, %56 : vector<8x8xf32>
    %cst_24 = arith.constant dense<0.000000e+00> : vector<8x16xf32>
    %58 = tpu.matmul %57, %43, %cst_24 {dimension_numbers = #tpu.dot_dimension_numbers<[1], [0], [0], [1], [0, 0, 1, 1], [], []>} : vector<8x8xf32>, vector<8x16xf32>, vector<8x16xf32> -> vector<8x16xf32>
    %59 = vector.extract_strided_slice %33 {offsets = [0, 16], sizes = [8, 16], strides = [1, 1]} : vector<16x32xf32> to vector<8x16xf32>
    %60 = vector.extract_strided_slice %34 {offsets = [0, 16], sizes = [8, 16], strides = [1, 1]} : vector<16x32xf32> to vector<8x16xf32>
    %61 = vector.extract_strided_slice %35 {offsets = [0, 16], sizes = [8, 16], strides = [1, 1]} : vector<16x32xf32> to vector<8x16xf32>
    %cst_25 = arith.constant dense<0.000000e+00> : vector<8x8xf32>
    %62 = tpu.matmul %59, %60, %cst_25 {dimension_numbers = #tpu.dot_dimension_numbers<[1], [1], [0], [0], [0, 0, 1, 0], [], []>} : vector<8x16xf32>, vector<8x16xf32>, vector<8x8xf32> -> vector<8x8xf32>
    %cst_26 = arith.constant 2.500000e-01 : f32
    %63 = vector.broadcast %cst_26 : f32 to vector<8x8xf32>
    %64 = arith.mulf %62, %63 : vector<8x8xf32>
    %65 = vector.broadcast %40 : vector<1x8xf32> to vector<8x8xf32>
    %66 = arith.addf %64, %65 : vector<8x8xf32>
    %cst_27 = arith.constant dense<0xFF800000> : vector<8xf32>
    %67 = vector.multi_reduction <maximumf>, %66, %cst_27 [1] : vector<8x8xf32> to vector<8xf32>
    %68 = vector.shape_cast %67 : vector<8xf32> to vector<8x1xf32>
    %69 = vector.broadcast %68 : vector<8x1xf32> to vector<8x8xf32>
    %70 = arith.subf %66, %69 : vector<8x8xf32>
    %71 = math.exp %70 : vector<8x8xf32>
    %cst_28 = arith.constant dense<0.000000e+00> : vector<8xf32>
    %72 = vector.multi_reduction <add>, %71, %cst_28 [1] : vector<8x8xf32> to vector<8xf32>
    %73 = vector.shape_cast %72 : vector<8xf32> to vector<8x1xf32>
    %74 = vector.broadcast %73 : vector<8x1xf32> to vector<8x8xf32>
    %75 = arith.divf %71, %74 : vector<8x8xf32>
    %cst_29 = arith.constant dense<0.000000e+00> : vector<8x16xf32>
    %76 = tpu.matmul %75, %61, %cst_29 {dimension_numbers = #tpu.dot_dimension_numbers<[1], [0], [0], [1], [0, 0, 1, 1], [], []>} : vector<8x8xf32>, vector<8x16xf32>, vector<8x16xf32> -> vector<8x16xf32>
    %77 = tpu.concatenate %58, %76 in 1 : vector<8x16xf32>, vector<8x16xf32> -> vector<8x32xf32>
    %78 = vector.extract_strided_slice %0 {offsets = [1, 0], sizes = [1, 8], strides = [1, 1]} : vector<2x8xf32> to vector<1x8xf32>
    %cst_30 = arith.constant 1.000000e+00 : f32
    %79 = vector.broadcast %cst_30 : f32 to vector<1x8xf32>
    %80 = arith.subf %79, %78 : vector<1x8xf32>
    %cst_31 = arith.constant -1.000000e+09 : f32
    %81 = vector.broadcast %cst_31 : f32 to vector<1x8xf32>
    %82 = arith.mulf %80, %81 : vector<1x8xf32>
    %83 = vector.extract_strided_slice %33 {offsets = [8, 0], sizes = [8, 16], strides = [1, 1]} : vector<16x32xf32> to vector<8x16xf32>
    %84 = vector.extract_strided_slice %34 {offsets = [8, 0], sizes = [8, 16], strides = [1, 1]} : vector<16x32xf32> to vector<8x16xf32>
    %85 = vector.extract_strided_slice %35 {offsets = [8, 0], sizes = [8, 16], strides = [1, 1]} : vector<16x32xf32> to vector<8x16xf32>
    %cst_32 = arith.constant dense<0.000000e+00> : vector<8x8xf32>
    %86 = tpu.matmul %83, %84, %cst_32 {dimension_numbers = #tpu.dot_dimension_numbers<[1], [1], [0], [0], [0, 0, 1, 0], [], []>} : vector<8x16xf32>, vector<8x16xf32>, vector<8x8xf32> -> vector<8x8xf32>
    %cst_33 = arith.constant 2.500000e-01 : f32
    %87 = vector.broadcast %cst_33 : f32 to vector<8x8xf32>
    %88 = arith.mulf %86, %87 : vector<8x8xf32>
    %89 = vector.broadcast %82 : vector<1x8xf32> to vector<8x8xf32>
    %90 = arith.addf %88, %89 : vector<8x8xf32>
    %cst_34 = arith.constant dense<0xFF800000> : vector<8xf32>
    %91 = vector.multi_reduction <maximumf>, %90, %cst_34 [1] : vector<8x8xf32> to vector<8xf32>
    %92 = vector.shape_cast %91 : vector<8xf32> to vector<8x1xf32>
    %93 = vector.broadcast %92 : vector<8x1xf32> to vector<8x8xf32>
    %94 = arith.subf %90, %93 : vector<8x8xf32>
    %95 = math.exp %94 : vector<8x8xf32>
    %cst_35 = arith.constant dense<0.000000e+00> : vector<8xf32>
    %96 = vector.multi_reduction <add>, %95, %cst_35 [1] : vector<8x8xf32> to vector<8xf32>
    %97 = vector.shape_cast %96 : vector<8xf32> to vector<8x1xf32>
    %98 = vector.broadcast %97 : vector<8x1xf32> to vector<8x8xf32>
    %99 = arith.divf %95, %98 : vector<8x8xf32>
    %cst_36 = arith.constant dense<0.000000e+00> : vector<8x16xf32>
    %100 = tpu.matmul %99, %85, %cst_36 {dimension_numbers = #tpu.dot_dimension_numbers<[1], [0], [0], [1], [0, 0, 1, 1], [], []>} : vector<8x8xf32>, vector<8x16xf32>, vector<8x16xf32> -> vector<8x16xf32>
    %101 = vector.extract_strided_slice %33 {offsets = [8, 16], sizes = [8, 16], strides = [1, 1]} : vector<16x32xf32> to vector<8x16xf32>
    %102 = vector.extract_strided_slice %34 {offsets = [8, 16], sizes = [8, 16], strides = [1, 1]} : vector<16x32xf32> to vector<8x16xf32>
    %103 = vector.extract_strided_slice %35 {offsets = [8, 16], sizes = [8, 16], strides = [1, 1]} : vector<16x32xf32> to vector<8x16xf32>
    %cst_37 = arith.constant dense<0.000000e+00> : vector<8x8xf32>
    %104 = tpu.matmul %101, %102, %cst_37 {dimension_numbers = #tpu.dot_dimension_numbers<[1], [1], [0], [0], [0, 0, 1, 0], [], []>} : vector<8x16xf32>, vector<8x16xf32>, vector<8x8xf32> -> vector<8x8xf32>
    %cst_38 = arith.constant 2.500000e-01 : f32
    %105 = vector.broadcast %cst_38 : f32 to vector<8x8xf32>
    %106 = arith.mulf %104, %105 : vector<8x8xf32>
    %107 = vector.broadcast %82 : vector<1x8xf32> to vector<8x8xf32>
    %108 = arith.addf %106, %107 : vector<8x8xf32>
    %cst_39 = arith.constant dense<0xFF800000> : vector<8xf32>
    %109 = vector.multi_reduction <maximumf>, %108, %cst_39 [1] : vector<8x8xf32> to vector<8xf32>
    %110 = vector.shape_cast %109 : vector<8xf32> to vector<8x1xf32>
    %111 = vector.broadcast %110 : vector<8x1xf32> to vector<8x8xf32>
    %112 = arith.subf %108, %111 : vector<8x8xf32>
    %113 = math.exp %112 : vector<8x8xf32>
    %cst_40 = arith.constant dense<0.000000e+00> : vector<8xf32>
    %114 = vector.multi_reduction <add>, %113, %cst_40 [1] : vector<8x8xf32> to vector<8xf32>
    %115 = vector.shape_cast %114 : vector<8xf32> to vector<8x1xf32>
    %116 = vector.broadcast %115 : vector<8x1xf32> to vector<8x8xf32>
    %117 = arith.divf %113, %116 : vector<8x8xf32>
    %cst_41 = arith.constant dense<0.000000e+00> : vector<8x16xf32>
    %118 = tpu.matmul %117, %103, %cst_41 {dimension_numbers = #tpu.dot_dimension_numbers<[1], [0], [0], [1], [0, 0, 1, 1], [], []>} : vector<8x8xf32>, vector<8x16xf32>, vector<8x16xf32> -> vector<8x16xf32>
    %119 = tpu.concatenate %100, %118 in 1 : vector<8x16xf32>, vector<8x16xf32> -> vector<8x32xf32>
    %120 = tpu.concatenate %77, %119 in 0 : vector<8x32xf32>, vector<8x32xf32> -> vector<16x32xf32>
    %c0_42 = arith.constant 0 : index
    %c0_43 = arith.constant 0 : index
    %c0_44 = arith.constant 0 : index
    %121 = vector.load %arg6[%c0_42, %c0_43, %c0_44] : memref<2x32x32xf32, #tpu.memory_space<vmem>>, vector<1x32x32xf32>
    %122 = vector.shape_cast %121 : vector<1x32x32xf32> to vector<32x32xf32>
    %cst_45 = arith.constant dense<0.000000e+00> : vector<16x32xf32>
    %123 = tpu.matmul %120, %122, %cst_45 {dimension_numbers = #tpu.dot_dimension_numbers<[1], [0], [0], [1], [0, 0, 1, 1], [], []>} : vector<16x32xf32>, vector<32x32xf32>, vector<16x32xf32> -> vector<16x32xf32>
    %c0_46 = arith.constant 0 : index
    %c0_47 = arith.constant 0 : index
    %c0_48 = arith.constant 0 : index
    %124 = vector.load %arg7[%c0_46, %c0_47, %c0_48] : memref<2x1x32xf32, #tpu.memory_space<vmem>>, vector<1x1x32xf32>
    %125 = vector.shape_cast %124 : vector<1x1x32xf32> to vector<1x32xf32>
    %126 = vector.broadcast %125 : vector<1x32xf32> to vector<16x32xf32>
    %127 = arith.addf %123, %126 : vector<16x32xf32>
    %128 = arith.addf %25, %127 : vector<16x32xf32>
    %c0_49 = arith.constant 0 : index
    %c0_50 = arith.constant 0 : index
    %c0_51 = arith.constant 0 : index
    %129 = vector.load %arg8[%c0_49, %c0_50, %c0_51] : memref<2x1x32xf32, #tpu.memory_space<vmem>>, vector<1x1x32xf32>
    %130 = vector.shape_cast %129 : vector<1x1x32xf32> to vector<1x32xf32>
    %c0_52 = arith.constant 0 : index
    %c0_53 = arith.constant 0 : index
    %c0_54 = arith.constant 0 : index
    %131 = vector.load %arg9[%c0_52, %c0_53, %c0_54] : memref<2x1x32xf32, #tpu.memory_space<vmem>>, vector<1x1x32xf32>
    %132 = vector.shape_cast %131 : vector<1x1x32xf32> to vector<1x32xf32>
    %cst_55 = arith.constant dense<0.000000e+00> : vector<16xf32>
    %133 = vector.multi_reduction <add>, %128, %cst_55 [1] : vector<16x32xf32> to vector<16xf32>
    %134 = vector.shape_cast %133 : vector<16xf32> to vector<16x1xf32>
    %cst_56 = arith.constant 3.200000e+01 : f32
    %135 = vector.broadcast %cst_56 : f32 to vector<16x1xf32>
    %136 = arith.divf %134, %135 : vector<16x1xf32>
    %137 = vector.broadcast %136 : vector<16x1xf32> to vector<16x32xf32>
    %138 = arith.subf %128, %137 : vector<16x32xf32>
    %139 = arith.mulf %138, %138 : vector<16x32xf32>
    %cst_57 = arith.constant dense<0.000000e+00> : vector<16xf32>
    %140 = vector.multi_reduction <add>, %139, %cst_57 [1] : vector<16x32xf32> to vector<16xf32>
    %141 = vector.shape_cast %140 : vector<16xf32> to vector<16x1xf32>
    %cst_58 = arith.constant 3.200000e+01 : f32
    %142 = vector.broadcast %cst_58 : f32 to vector<16x1xf32>
    %143 = arith.divf %141, %142 : vector<16x1xf32>
    %144 = vector.broadcast %136 : vector<16x1xf32> to vector<16x32xf32>
    %145 = arith.subf %128, %144 : vector<16x32xf32>
    %cst_59 = arith.constant 9.99999996E-13 : f32
    %146 = vector.broadcast %cst_59 : f32 to vector<16x1xf32>
    %147 = arith.addf %143, %146 : vector<16x1xf32>
    %148 = math.rsqrt %147 : vector<16x1xf32>
    %149 = vector.broadcast %148 : vector<16x1xf32> to vector<16x32xf32>
    %150 = arith.mulf %145, %149 : vector<16x32xf32>
    %151 = vector.broadcast %130 : vector<1x32xf32> to vector<16x32xf32>
    %152 = arith.mulf %150, %151 : vector<16x32xf32>
    %153 = vector.broadcast %132 : vector<1x32xf32> to vector<16x32xf32>
    %154 = arith.addf %152, %153 : vector<16x32xf32>
    %c0_60 = arith.constant 0 : index
    %c0_61 = arith.constant 0 : index
    %c0_62 = arith.constant 0 : index
    %155 = vector.load %arg10[%c0_60, %c0_61, %c0_62] : memref<2x32x64xf32, #tpu.memory_space<vmem>>, vector<1x32x64xf32>
    %156 = vector.shape_cast %155 : vector<1x32x64xf32> to vector<32x64xf32>
    %cst_63 = arith.constant dense<0.000000e+00> : vector<16x64xf32>
    %157 = tpu.matmul %154, %156, %cst_63 {dimension_numbers = #tpu.dot_dimension_numbers<[1], [0], [0], [1], [0, 0, 1, 1], [], []>} : vector<16x32xf32>, vector<32x64xf32>, vector<16x64xf32> -> vector<16x64xf32>
    %c0_64 = arith.constant 0 : index
    %c0_65 = arith.constant 0 : index
    %c0_66 = arith.constant 0 : index
    %158 = vector.load %arg11[%c0_64, %c0_65, %c0_66] : memref<2x1x64xf32, #tpu.memory_space<vmem>>, vector<1x1x64xf32>
    %159 = vector.shape_cast %158 : vector<1x1x64xf32> to vector<1x64xf32>
    %160 = vector.broadcast %159 : vector<1x64xf32> to vector<16x64xf32>
    %161 = arith.addf %157, %160 : vector<16x64xf32>
    %162 = arith.mulf %161, %161 : vector<16x64xf32>
    %163 = arith.mulf %161, %162 : vector<16x64xf32>
    %cst_67 = arith.constant 4.471500e-02 : f32
    %164 = vector.broadcast %cst_67 : f32 to vector<16x64xf32>
    %165 = arith.mulf %164, %163 : vector<16x64xf32>
    %166 = arith.addf %161, %165 : vector<16x64xf32>
    %cst_68 = arith.constant 0.797884583 : f32
    %167 = vector.broadcast %cst_68 : f32 to vector<16x64xf32>
    %168 = arith.mulf %167, %166 : vector<16x64xf32>
    %169 = math.tanh %168 : vector<16x64xf32>
    %cst_69 = arith.constant 1.000000e+00 : f32
    %170 = vector.broadcast %cst_69 : f32 to vector<16x64xf32>
    %171 = arith.addf %170, %169 : vector<16x64xf32>
    %cst_70 = arith.constant 5.000000e-01 : f32
    %172 = vector.broadcast %cst_70 : f32 to vector<16x64xf32>
    %173 = arith.mulf %172, %171 : vector<16x64xf32>
    %174 = arith.mulf %161, %173 : vector<16x64xf32>
    %c0_71 = arith.constant 0 : index
    %c0_72 = arith.constant 0 : index
    %c0_73 = arith.constant 0 : index
    %175 = vector.load %arg12[%c0_71, %c0_72, %c0_73] : memref<2x64x32xf32, #tpu.memory_space<vmem>>, vector<1x64x32xf32>
    %176 = vector.shape_cast %175 : vector<1x64x32xf32> to vector<64x32xf32>
    %cst_74 = arith.constant dense<0.000000e+00> : vector<16x32xf32>
    %177 = tpu.matmul %174, %176, %cst_74 {dimension_numbers = #tpu.dot_dimension_numbers<[1], [0], [0], [1], [0, 0, 1, 1], [], []>} : vector<16x64xf32>, vector<64x32xf32>, vector<16x32xf32> -> vector<16x32xf32>
    %c0_75 = arith.constant 0 : index
    %c0_76 = arith.constant 0 : index
    %c0_77 = arith.constant 0 : index
    %178 = vector.load %arg13[%c0_75, %c0_76, %c0_77] : memref<2x1x32xf32, #tpu.memory_space<vmem>>, vector<1x1x32xf32>
    %179 = vector.shape_cast %178 : vector<1x1x32xf32> to vector<1x32xf32>
    %180 = vector.broadcast %179 : vector<1x32xf32> to vector<16x32xf32>
    %181 = arith.addf %177, %180 : vector<16x32xf32>
    %182 = arith.addf %154, %181 : vector<16x32xf32>
    %c0_78 = arith.constant 0 : index
    %c0_79 = arith.constant 0 : index
    %c0_80 = arith.constant 0 : index
    %183 = vector.load %arg14[%c0_78, %c0_79, %c0_80] : memref<2x1x32xf32, #tpu.memory_space<vmem>>, vector<1x1x32xf32>
    %184 = vector.shape_cast %183 : vector<1x1x32xf32> to vector<1x32xf32>
    %c0_81 = arith.constant 0 : index
    %c0_82 = arith.constant 0 : index
    %c0_83 = arith.constant 0 : index
    %185 = vector.load %arg15[%c0_81, %c0_82, %c0_83] : memref<2x1x32xf32, #tpu.memory_space<vmem>>, vector<1x1x32xf32>
    %186 = vector.shape_cast %185 : vector<1x1x32xf32> to vector<1x32xf32>
    %cst_84 = arith.constant dense<0.000000e+00> : vector<16xf32>
    %187 = vector.multi_reduction <add>, %182, %cst_84 [1] : vector<16x32xf32> to vector<16xf32>
    %188 = vector.shape_cast %187 : vector<16xf32> to vector<16x1xf32>
    %cst_85 = arith.constant 3.200000e+01 : f32
    %189 = vector.broadcast %cst_85 : f32 to vector<16x1xf32>
    %190 = arith.divf %188, %189 : vector<16x1xf32>
    %191 = vector.broadcast %190 : vector<16x1xf32> to vector<16x32xf32>
    %192 = arith.subf %182, %191 : vector<16x32xf32>
    %193 = arith.mulf %192, %192 : vector<16x32xf32>
    %cst_86 = arith.constant dense<0.000000e+00> : vector<16xf32>
    %194 = vector.multi_reduction <add>, %193, %cst_86 [1] : vector<16x32xf32> to vector<16xf32>
    %195 = vector.shape_cast %194 : vector<16xf32> to vector<16x1xf32>
    %cst_87 = arith.constant 3.200000e+01 : f32
    %196 = vector.broadcast %cst_87 : f32 to vector<16x1xf32>
    %197 = arith.divf %195, %196 : vector<16x1xf32>
    %198 = vector.broadcast %190 : vector<16x1xf32> to vector<16x32xf32>
    %199 = arith.subf %182, %198 : vector<16x32xf32>
    %cst_88 = arith.constant 9.99999996E-13 : f32
    %200 = vector.broadcast %cst_88 : f32 to vector<16x1xf32>
    %201 = arith.addf %197, %200 : vector<16x1xf32>
    %202 = math.rsqrt %201 : vector<16x1xf32>
    %203 = vector.broadcast %202 : vector<16x1xf32> to vector<16x32xf32>
    %204 = arith.mulf %199, %203 : vector<16x32xf32>
    %205 = vector.broadcast %184 : vector<1x32xf32> to vector<16x32xf32>
    %206 = arith.mulf %204, %205 : vector<16x32xf32>
    %207 = vector.broadcast %186 : vector<1x32xf32> to vector<16x32xf32>
    %208 = arith.addf %206, %207 : vector<16x32xf32>
    %c1 = arith.constant 1 : index
    %c0_89 = arith.constant 0 : index
    %c0_90 = arith.constant 0 : index
    %209 = vector.load %arg4[%c1, %c0_89, %c0_90] : memref<2x32x96xf32, #tpu.memory_space<vmem>>, vector<1x32x96xf32>
    %210 = vector.shape_cast %209 : vector<1x32x96xf32> to vector<32x96xf32>
    %cst_91 = arith.constant dense<0.000000e+00> : vector<16x96xf32>
    %211 = tpu.matmul %208, %210, %cst_91 {dimension_numbers = #tpu.dot_dimension_numbers<[1], [0], [0], [1], [0, 0, 1, 1], [], []>} : vector<16x32xf32>, vector<32x96xf32>, vector<16x96xf32> -> vector<16x96xf32>
    %c1_92 = arith.constant 1 : index
    %c0_93 = arith.constant 0 : index
    %c0_94 = arith.constant 0 : index
    %212 = vector.load %arg5[%c1_92, %c0_93, %c0_94] : memref<2x1x96xf32, #tpu.memory_space<vmem>>, vector<1x1x96xf32>
    %213 = vector.shape_cast %212 : vector<1x1x96xf32> to vector<1x96xf32>
    %214 = vector.broadcast %213 : vector<1x96xf32> to vector<16x96xf32>
    %215 = arith.addf %211, %214 : vector<16x96xf32>
    %216 = vector.extract_strided_slice %215 {offsets = [0, 0], sizes = [16, 32], strides = [1, 1]} : vector<16x96xf32> to vector<16x32xf32>
    %217 = vector.extract_strided_slice %215 {offsets = [0, 32], sizes = [16, 32], strides = [1, 1]} : vector<16x96xf32> to vector<16x32xf32>
    %218 = vector.extract_strided_slice %215 {offsets = [0, 64], sizes = [16, 32], strides = [1, 1]} : vector<16x96xf32> to vector<16x32xf32>
    %219 = vector.extract_strided_slice %0 {offsets = [0, 0], sizes = [1, 8], strides = [1, 1]} : vector<2x8xf32> to vector<1x8xf32>
    %cst_95 = arith.constant 1.000000e+00 : f32
    %220 = vector.broadcast %cst_95 : f32 to vector<1x8xf32>
    %221 = arith.subf %220, %219 : vector<1x8xf32>
    %cst_96 = arith.constant -1.000000e+09 : f32
    %222 = vector.broadcast %cst_96 : f32 to vector<1x8xf32>
    %223 = arith.mulf %221, %222 : vector<1x8xf32>
    %224 = vector.extract_strided_slice %216 {offsets = [0, 0], sizes = [8, 16], strides = [1, 1]} : vector<16x32xf32> to vector<8x16xf32>
    %225 = vector.extract_strided_slice %217 {offsets = [0, 0], sizes = [8, 16], strides = [1, 1]} : vector<16x32xf32> to vector<8x16xf32>
    %226 = vector.extract_strided_slice %218 {offsets = [0, 0], sizes = [8, 16], strides = [1, 1]} : vector<16x32xf32> to vector<8x16xf32>
    %cst_97 = arith.constant dense<0.000000e+00> : vector<8x8xf32>
    %227 = tpu.matmul %224, %225, %cst_97 {dimension_numbers = #tpu.dot_dimension_numbers<[1], [1], [0], [0], [0, 0, 1, 0], [], []>} : vector<8x16xf32>, vector<8x16xf32>, vector<8x8xf32> -> vector<8x8xf32>
    %cst_98 = arith.constant 2.500000e-01 : f32
    %228 = vector.broadcast %cst_98 : f32 to vector<8x8xf32>
    %229 = arith.mulf %227, %228 : vector<8x8xf32>
    %230 = vector.broadcast %223 : vector<1x8xf32> to vector<8x8xf32>
    %231 = arith.addf %229, %230 : vector<8x8xf32>
    %cst_99 = arith.constant dense<0xFF800000> : vector<8xf32>
    %232 = vector.multi_reduction <maximumf>, %231, %cst_99 [1] : vector<8x8xf32> to vector<8xf32>
    %233 = vector.shape_cast %232 : vector<8xf32> to vector<8x1xf32>
    %234 = vector.broadcast %233 : vector<8x1xf32> to vector<8x8xf32>
    %235 = arith.subf %231, %234 : vector<8x8xf32>
    %236 = math.exp %235 : vector<8x8xf32>
    %cst_100 = arith.constant dense<0.000000e+00> : vector<8xf32>
    %237 = vector.multi_reduction <add>, %236, %cst_100 [1] : vector<8x8xf32> to vector<8xf32>
    %238 = vector.shape_cast %237 : vector<8xf32> to vector<8x1xf32>
    %239 = vector.broadcast %238 : vector<8x1xf32> to vector<8x8xf32>
    %240 = arith.divf %236, %239 : vector<8x8xf32>
    %cst_101 = arith.constant dense<0.000000e+00> : vector<8x16xf32>
    %241 = tpu.matmul %240, %226, %cst_101 {dimension_numbers = #tpu.dot_dimension_numbers<[1], [0], [0], [1], [0, 0, 1, 1], [], []>} : vector<8x8xf32>, vector<8x16xf32>, vector<8x16xf32> -> vector<8x16xf32>
    %242 = vector.extract_strided_slice %216 {offsets = [0, 16], sizes = [8, 16], strides = [1, 1]} : vector<16x32xf32> to vector<8x16xf32>
    %243 = vector.extract_strided_slice %217 {offsets = [0, 16], sizes = [8, 16], strides = [1, 1]} : vector<16x32xf32> to vector<8x16xf32>
    %244 = vector.extract_strided_slice %218 {offsets = [0, 16], sizes = [8, 16], strides = [1, 1]} : vector<16x32xf32> to vector<8x16xf32>
    %cst_102 = arith.constant dense<0.000000e+00> : vector<8x8xf32>
    %245 = tpu.matmul %242, %243, %cst_102 {dimension_numbers = #tpu.dot_dimension_numbers<[1], [1], [0], [0], [0, 0, 1, 0], [], []>} : vector<8x16xf32>, vector<8x16xf32>, vector<8x8xf32> -> vector<8x8xf32>
    %cst_103 = arith.constant 2.500000e-01 : f32
    %246 = vector.broadcast %cst_103 : f32 to vector<8x8xf32>
    %247 = arith.mulf %245, %246 : vector<8x8xf32>
    %248 = vector.broadcast %223 : vector<1x8xf32> to vector<8x8xf32>
    %249 = arith.addf %247, %248 : vector<8x8xf32>
    %cst_104 = arith.constant dense<0xFF800000> : vector<8xf32>
    %250 = vector.multi_reduction <maximumf>, %249, %cst_104 [1] : vector<8x8xf32> to vector<8xf32>
    %251 = vector.shape_cast %250 : vector<8xf32> to vector<8x1xf32>
    %252 = vector.broadcast %251 : vector<8x1xf32> to vector<8x8xf32>
    %253 = arith.subf %249, %252 : vector<8x8xf32>
    %254 = math.exp %253 : vector<8x8xf32>
    %cst_105 = arith.constant dense<0.000000e+00> : vector<8xf32>
    %255 = vector.multi_reduction <add>, %254, %cst_105 [1] : vector<8x8xf32> to vector<8xf32>
    %256 = vector.shape_cast %255 : vector<8xf32> to vector<8x1xf32>
    %257 = vector.broadcast %256 : vector<8x1xf32> to vector<8x8xf32>
    %258 = arith.divf %254, %257 : vector<8x8xf32>
    %cst_106 = arith.constant dense<0.000000e+00> : vector<8x16xf32>
    %259 = tpu.matmul %258, %244, %cst_106 {dimension_numbers = #tpu.dot_dimension_numbers<[1], [0], [0], [1], [0, 0, 1, 1], [], []>} : vector<8x8xf32>, vector<8x16xf32>, vector<8x16xf32> -> vector<8x16xf32>
    %260 = tpu.concatenate %241, %259 in 1 : vector<8x16xf32>, vector<8x16xf32> -> vector<8x32xf32>
    %261 = vector.extract_strided_slice %0 {offsets = [1, 0], sizes = [1, 8], strides = [1, 1]} : vector<2x8xf32> to vector<1x8xf32>
    %cst_107 = arith.constant 1.000000e+00 : f32
    %262 = vector.broadcast %cst_107 : f32 to vector<1x8xf32>
    %263 = arith.subf %262, %261 : vector<1x8xf32>
    %cst_108 = arith.constant -1.000000e+09 : f32
    %264 = vector.broadcast %cst_108 : f32 to vector<1x8xf32>
    %265 = arith.mulf %263, %264 : vector<1x8xf32>
    %266 = vector.extract_strided_slice %216 {offsets = [8, 0], sizes = [8, 16], strides = [1, 1]} : vector<16x32xf32> to vector<8x16xf32>
    %267 = vector.extract_strided_slice %217 {offsets = [8, 0], sizes = [8, 16], strides = [1, 1]} : vector<16x32xf32> to vector<8x16xf32>
    %268 = vector.extract_strided_slice %218 {offsets = [8, 0], sizes = [8, 16], strides = [1, 1]} : vector<16x32xf32> to vector<8x16xf32>
    %cst_109 = arith.constant dense<0.000000e+00> : vector<8x8xf32>
    %269 = tpu.matmul %266, %267, %cst_109 {dimension_numbers = #tpu.dot_dimension_numbers<[1], [1], [0], [0], [0, 0, 1, 0], [], []>} : vector<8x16xf32>, vector<8x16xf32>, vector<8x8xf32> -> vector<8x8xf32>
    %cst_110 = arith.constant 2.500000e-01 : f32
    %270 = vector.broadcast %cst_110 : f32 to vector<8x8xf32>
    %271 = arith.mulf %269, %270 : vector<8x8xf32>
    %272 = vector.broadcast %265 : vector<1x8xf32> to vector<8x8xf32>
    %273 = arith.addf %271, %272 : vector<8x8xf32>
    %cst_111 = arith.constant dense<0xFF800000> : vector<8xf32>
    %274 = vector.multi_reduction <maximumf>, %273, %cst_111 [1] : vector<8x8xf32> to vector<8xf32>
    %275 = vector.shape_cast %274 : vector<8xf32> to vector<8x1xf32>
    %276 = vector.broadcast %275 : vector<8x1xf32> to vector<8x8xf32>
    %277 = arith.subf %273, %276 : vector<8x8xf32>
    %278 = math.exp %277 : vector<8x8xf32>
    %cst_112 = arith.constant dense<0.000000e+00> : vector<8xf32>
    %279 = vector.multi_reduction <add>, %278, %cst_112 [1] : vector<8x8xf32> to vector<8xf32>
    %280 = vector.shape_cast %279 : vector<8xf32> to vector<8x1xf32>
    %281 = vector.broadcast %280 : vector<8x1xf32> to vector<8x8xf32>
    %282 = arith.divf %278, %281 : vector<8x8xf32>
    %cst_113 = arith.constant dense<0.000000e+00> : vector<8x16xf32>
    %283 = tpu.matmul %282, %268, %cst_113 {dimension_numbers = #tpu.dot_dimension_numbers<[1], [0], [0], [1], [0, 0, 1, 1], [], []>} : vector<8x8xf32>, vector<8x16xf32>, vector<8x16xf32> -> vector<8x16xf32>
    %284 = vector.extract_strided_slice %216 {offsets = [8, 16], sizes = [8, 16], strides = [1, 1]} : vector<16x32xf32> to vector<8x16xf32>
    %285 = vector.extract_strided_slice %217 {offsets = [8, 16], sizes = [8, 16], strides = [1, 1]} : vector<16x32xf32> to vector<8x16xf32>
    %286 = vector.extract_strided_slice %218 {offsets = [8, 16], sizes = [8, 16], strides = [1, 1]} : vector<16x32xf32> to vector<8x16xf32>
    %cst_114 = arith.constant dense<0.000000e+00> : vector<8x8xf32>
    %287 = tpu.matmul %284, %285, %cst_114 {dimension_numbers = #tpu.dot_dimension_numbers<[1], [1], [0], [0], [0, 0, 1, 0], [], []>} : vector<8x16xf32>, vector<8x16xf32>, vector<8x8xf32> -> vector<8x8xf32>
    %cst_115 = arith.constant 2.500000e-01 : f32
    %288 = vector.broadcast %cst_115 : f32 to vector<8x8xf32>
    %289 = arith.mulf %287, %288 : vector<8x8xf32>
    %290 = vector.broadcast %265 : vector<1x8xf32> to vector<8x8xf32>
    %291 = arith.addf %289, %290 : vector<8x8xf32>
    %cst_116 = arith.constant dense<0xFF800000> : vector<8xf32>
    %292 = vector.multi_reduction <maximumf>, %291, %cst_116 [1] : vector<8x8xf32> to vector<8xf32>
    %293 = vector.shape_cast %292 : vector<8xf32> to vector<8x1xf32>
    %294 = vector.broadcast %293 : vector<8x1xf32> to vector<8x8xf32>
    %295 = arith.subf %291, %294 : vector<8x8xf32>
    %296 = math.exp %295 : vector<8x8xf32>
    %cst_117 = arith.constant dense<0.000000e+00> : vector<8xf32>
    %297 = vector.multi_reduction <add>, %296, %cst_117 [1] : vector<8x8xf32> to vector<8xf32>
    %298 = vector.shape_cast %297 : vector<8xf32> to vector<8x1xf32>
    %299 = vector.broadcast %298 : vector<8x1xf32> to vector<8x8xf32>
    %300 = arith.divf %296, %299 : vector<8x8xf32>
    %cst_118 = arith.constant dense<0.000000e+00> : vector<8x16xf32>
    %301 = tpu.matmul %300, %286, %cst_118 {dimension_numbers = #tpu.dot_dimension_numbers<[1], [0], [0], [1], [0, 0, 1, 1], [], []>} : vector<8x8xf32>, vector<8x16xf32>, vector<8x16xf32> -> vector<8x16xf32>
    %302 = tpu.concatenate %283, %301 in 1 : vector<8x16xf32>, vector<8x16xf32> -> vector<8x32xf32>
    %303 = tpu.concatenate %260, %302 in 0 : vector<8x32xf32>, vector<8x32xf32> -> vector<16x32xf32>
    %c1_119 = arith.constant 1 : index
    %c0_120 = arith.constant 0 : index
    %c0_121 = arith.constant 0 : index
    %304 = vector.load %arg6[%c1_119, %c0_120, %c0_121] : memref<2x32x32xf32, #tpu.memory_space<vmem>>, vector<1x32x32xf32>
    %305 = vector.shape_cast %304 : vector<1x32x32xf32> to vector<32x32xf32>
    %cst_122 = arith.constant dense<0.000000e+00> : vector<16x32xf32>
    %306 = tpu.matmul %303, %305, %cst_122 {dimension_numbers = #tpu.dot_dimension_numbers<[1], [0], [0], [1], [0, 0, 1, 1], [], []>} : vector<16x32xf32>, vector<32x32xf32>, vector<16x32xf32> -> vector<16x32xf32>
    %c1_123 = arith.constant 1 : index
    %c0_124 = arith.constant 0 : index
    %c0_125 = arith.constant 0 : index
    %307 = vector.load %arg7[%c1_123, %c0_124, %c0_125] : memref<2x1x32xf32, #tpu.memory_space<vmem>>, vector<1x1x32xf32>
    %308 = vector.shape_cast %307 : vector<1x1x32xf32> to vector<1x32xf32>
    %309 = vector.broadcast %308 : vector<1x32xf32> to vector<16x32xf32>
    %310 = arith.addf %306, %309 : vector<16x32xf32>
    %311 = arith.addf %208, %310 : vector<16x32xf32>
    %c1_126 = arith.constant 1 : index
    %c0_127 = arith.constant 0 : index
    %c0_128 = arith.constant 0 : index
    %312 = vector.load %arg8[%c1_126, %c0_127, %c0_128] : memref<2x1x32xf32, #tpu.memory_space<vmem>>, vector<1x1x32xf32>
    %313 = vector.shape_cast %312 : vector<1x1x32xf32> to vector<1x32xf32>
    %c1_129 = arith.constant 1 : index
    %c0_130 = arith.constant 0 : index
    %c0_131 = arith.constant 0 : index
    %314 = vector.load %arg9[%c1_129, %c0_130, %c0_131] : memref<2x1x32xf32, #tpu.memory_space<vmem>>, vector<1x1x32xf32>
    %315 = vector.shape_cast %314 : vector<1x1x32xf32> to vector<1x32xf32>
    %cst_132 = arith.constant dense<0.000000e+00> : vector<16xf32>
    %316 = vector.multi_reduction <add>, %311, %cst_132 [1] : vector<16x32xf32> to vector<16xf32>
    %317 = vector.shape_cast %316 : vector<16xf32> to vector<16x1xf32>
    %cst_133 = arith.constant 3.200000e+01 : f32
    %318 = vector.broadcast %cst_133 : f32 to vector<16x1xf32>
    %319 = arith.divf %317, %318 : vector<16x1xf32>
    %320 = vector.broadcast %319 : vector<16x1xf32> to vector<16x32xf32>
    %321 = arith.subf %311, %320 : vector<16x32xf32>
    %322 = arith.mulf %321, %321 : vector<16x32xf32>
    %cst_134 = arith.constant dense<0.000000e+00> : vector<16xf32>
    %323 = vector.multi_reduction <add>, %322, %cst_134 [1] : vector<16x32xf32> to vector<16xf32>
    %324 = vector.shape_cast %323 : vector<16xf32> to vector<16x1xf32>
    %cst_135 = arith.constant 3.200000e+01 : f32
    %325 = vector.broadcast %cst_135 : f32 to vector<16x1xf32>
    %326 = arith.divf %324, %325 : vector<16x1xf32>
    %327 = vector.broadcast %319 : vector<16x1xf32> to vector<16x32xf32>
    %328 = arith.subf %311, %327 : vector<16x32xf32>
    %cst_136 = arith.constant 9.99999996E-13 : f32
    %329 = vector.broadcast %cst_136 : f32 to vector<16x1xf32>
    %330 = arith.addf %326, %329 : vector<16x1xf32>
    %331 = math.rsqrt %330 : vector<16x1xf32>
    %332 = vector.broadcast %331 : vector<16x1xf32> to vector<16x32xf32>
    %333 = arith.mulf %328, %332 : vector<16x32xf32>
    %334 = vector.broadcast %313 : vector<1x32xf32> to vector<16x32xf32>
    %335 = arith.mulf %333, %334 : vector<16x32xf32>
    %336 = vector.broadcast %315 : vector<1x32xf32> to vector<16x32xf32>
    %337 = arith.addf %335, %336 : vector<16x32xf32>
    %c1_137 = arith.constant 1 : index
    %c0_138 = arith.constant 0 : index
    %c0_139 = arith.constant 0 : index
    %338 = vector.load %arg10[%c1_137, %c0_138, %c0_139] : memref<2x32x64xf32, #tpu.memory_space<vmem>>, vector<1x32x64xf32>
    %339 = vector.shape_cast %338 : vector<1x32x64xf32> to vector<32x64xf32>
    %cst_140 = arith.constant dense<0.000000e+00> : vector<16x64xf32>
    %340 = tpu.matmul %337, %339, %cst_140 {dimension_numbers = #tpu.dot_dimension_numbers<[1], [0], [0], [1], [0, 0, 1, 1], [], []>} : vector<16x32xf32>, vector<32x64xf32>, vector<16x64xf32> -> vector<16x64xf32>
    %c1_141 = arith.constant 1 : index
    %c0_142 = arith.constant 0 : index
    %c0_143 = arith.constant 0 : index
    %341 = vector.load %arg11[%c1_141, %c0_142, %c0_143] : memref<2x1x64xf32, #tpu.memory_space<vmem>>, vector<1x1x64xf32>
    %342 = vector.shape_cast %341 : vector<1x1x64xf32> to vector<1x64xf32>
    %343 = vector.broadcast %342 : vector<1x64xf32> to vector<16x64xf32>
    %344 = arith.addf %340, %343 : vector<16x64xf32>
    %345 = arith.mulf %344, %344 : vector<16x64xf32>
    %346 = arith.mulf %344, %345 : vector<16x64xf32>
    %cst_144 = arith.constant 4.471500e-02 : f32
    %347 = vector.broadcast %cst_144 : f32 to vector<16x64xf32>
    %348 = arith.mulf %347, %346 : vector<16x64xf32>
    %349 = arith.addf %344, %348 : vector<16x64xf32>
    %cst_145 = arith.constant 0.797884583 : f32
    %350 = vector.broadcast %cst_145 : f32 to vector<16x64xf32>
    %351 = arith.mulf %350, %349 : vector<16x64xf32>
    %352 = math.tanh %351 : vector<16x64xf32>
    %cst_146 = arith.constant 1.000000e+00 : f32
    %353 = vector.broadcast %cst_146 : f32 to vector<16x64xf32>
    %354 = arith.addf %353, %352 : vector<16x64xf32>
    %cst_147 = arith.constant 5.000000e-01 : f32
    %355 = vector.broadcast %cst_147 : f32 to vector<16x64xf32>
    %356 = arith.mulf %355, %354 : vector<16x64xf32>
    %357 = arith.mulf %344, %356 : vector<16x64xf32>
    %c1_148 = arith.constant 1 : index
    %c0_149 = arith.constant 0 : index
    %c0_150 = arith.constant 0 : index
    %358 = vector.load %arg12[%c1_148, %c0_149, %c0_150] : memref<2x64x32xf32, #tpu.memory_space<vmem>>, vector<1x64x32xf32>
    %359 = vector.shape_cast %358 : vector<1x64x32xf32> to vector<64x32xf32>
    %cst_151 = arith.constant dense<0.000000e+00> : vector<16x32xf32>
    %360 = tpu.matmul %357, %359, %cst_151 {dimension_numbers = #tpu.dot_dimension_numbers<[1], [0], [0], [1], [0, 0, 1, 1], [], []>} : vector<16x64xf32>, vector<64x32xf32>, vector<16x32xf32> -> vector<16x32xf32>
    %c1_152 = arith.constant 1 : index
    %c0_153 = arith.constant 0 : index
    %c0_154 = arith.constant 0 : index
    %361 = vector.load %arg13[%c1_152, %c0_153, %c0_154] : memref<2x1x32xf32, #tpu.memory_space<vmem>>, vector<1x1x32xf32>
    %362 = vector.shape_cast %361 : vector<1x1x32xf32> to vector<1x32xf32>
    %363 = vector.broadcast %362 : vector<1x32xf32> to vector<16x32xf32>
    %364 = arith.addf %360, %363 : vector<16x32xf32>
    %365 = arith.addf %337, %364 : vector<16x32xf32>
    %c1_155 = arith.constant 1 : index
    %c0_156 = arith.constant 0 : index
    %c0_157 = arith.constant 0 : index
    %366 = vector.load %arg14[%c1_155, %c0_156, %c0_157] : memref<2x1x32xf32, #tpu.memory_space<vmem>>, vector<1x1x32xf32>
    %367 = vector.shape_cast %366 : vector<1x1x32xf32> to vector<1x32xf32>
    %c1_158 = arith.constant 1 : index
    %c0_159 = arith.constant 0 : index
    %c0_160 = arith.constant 0 : index
    %368 = vector.load %arg15[%c1_158, %c0_159, %c0_160] : memref<2x1x32xf32, #tpu.memory_space<vmem>>, vector<1x1x32xf32>
    %369 = vector.shape_cast %368 : vector<1x1x32xf32> to vector<1x32xf32>
    %cst_161 = arith.constant dense<0.000000e+00> : vector<16xf32>
    %370 = vector.multi_reduction <add>, %365, %cst_161 [1] : vector<16x32xf32> to vector<16xf32>
    %371 = vector.shape_cast %370 : vector<16xf32> to vector<16x1xf32>
    %cst_162 = arith.constant 3.200000e+01 : f32
    %372 = vector.broadcast %cst_162 : f32 to vector<16x1xf32>
    %373 = arith.divf %371, %372 : vector<16x1xf32>
    %374 = vector.broadcast %373 : vector<16x1xf32> to vector<16x32xf32>
    %375 = arith.subf %365, %374 : vector<16x32xf32>
    %376 = arith.mulf %375, %375 : vector<16x32xf32>
    %cst_163 = arith.constant dense<0.000000e+00> : vector<16xf32>
    %377 = vector.multi_reduction <add>, %376, %cst_163 [1] : vector<16x32xf32> to vector<16xf32>
    %378 = vector.shape_cast %377 : vector<16xf32> to vector<16x1xf32>
    %cst_164 = arith.constant 3.200000e+01 : f32
    %379 = vector.broadcast %cst_164 : f32 to vector<16x1xf32>
    %380 = arith.divf %378, %379 : vector<16x1xf32>
    %381 = vector.broadcast %373 : vector<16x1xf32> to vector<16x32xf32>
    %382 = arith.subf %365, %381 : vector<16x32xf32>
    %cst_165 = arith.constant 9.99999996E-13 : f32
    %383 = vector.broadcast %cst_165 : f32 to vector<16x1xf32>
    %384 = arith.addf %380, %383 : vector<16x1xf32>
    %385 = math.rsqrt %384 : vector<16x1xf32>
    %386 = vector.broadcast %385 : vector<16x1xf32> to vector<16x32xf32>
    %387 = arith.mulf %382, %386 : vector<16x32xf32>
    %388 = vector.broadcast %367 : vector<1x32xf32> to vector<16x32xf32>
    %389 = arith.mulf %387, %388 : vector<16x32xf32>
    %390 = vector.broadcast %369 : vector<1x32xf32> to vector<16x32xf32>
    %391 = arith.addf %389, %390 : vector<16x32xf32>
    %392 = vector.extract_strided_slice %391 {offsets = [0, 0], sizes = [8, 32], strides = [1, 1]} : vector<16x32xf32> to vector<8x32xf32>
    %393 = vector.extract_strided_slice %0 {offsets = [0, 0], sizes = [1, 8], strides = [1, 1]} : vector<2x8xf32> to vector<1x8xf32>
    %cst_166 = arith.constant dense<0.000000e+00> : vector<1x32xf32>
    %394 = tpu.matmul %393, %392, %cst_166 {dimension_numbers = #tpu.dot_dimension_numbers<[1], [0], [0], [1], [0, 0, 1, 1], [], []>} : vector<1x8xf32>, vector<8x32xf32>, vector<1x32xf32> -> vector<1x32xf32>
    %cst_167 = arith.constant dense<0.000000e+00> : vector<1xf32>
    %395 = vector.multi_reduction <add>, %393, %cst_167 [1] : vector<1x8xf32> to vector<1xf32>
    %396 = vector.shape_cast %395 : vector<1xf32> to vector<1x1xf32>
    %cst_168 = arith.constant 9.99999971E-10 : f32
    %397 = vector.broadcast %cst_168 : f32 to vector<1x1xf32>
    %398 = arith.maximumf %396, %397 : vector<1x1xf32>
    %399 = vector.broadcast %398 : vector<1x1xf32> to vector<1x32xf32>
    %400 = arith.divf %394, %399 : vector<1x32xf32>
    %401 = vector.extract_strided_slice %391 {offsets = [8, 0], sizes = [8, 32], strides = [1, 1]} : vector<16x32xf32> to vector<8x32xf32>
    %402 = vector.extract_strided_slice %0 {offsets = [1, 0], sizes = [1, 8], strides = [1, 1]} : vector<2x8xf32> to vector<1x8xf32>
    %cst_169 = arith.constant dense<0.000000e+00> : vector<1x32xf32>
    %403 = tpu.matmul %402, %401, %cst_169 {dimension_numbers = #tpu.dot_dimension_numbers<[1], [0], [0], [1], [0, 0, 1, 1], [], []>} : vector<1x8xf32>, vector<8x32xf32>, vector<1x32xf32> -> vector<1x32xf32>
    %cst_170 = arith.constant dense<0.000000e+00> : vector<1xf32>
    %404 = vector.multi_reduction <add>, %402, %cst_170 [1] : vector<1x8xf32> to vector<1xf32>
    %405 = vector.shape_cast %404 : vector<1xf32> to vector<1x1xf32>
    %cst_171 = arith.constant 9.99999971E-10 : f32
    %406 = vector.broadcast %cst_171 : f32 to vector<1x1xf32>
    %407 = arith.maximumf %405, %406 : vector<1x1xf32>
    %408 = vector.broadcast %407 : vector<1x1xf32> to vector<1x32xf32>
    %409 = arith.divf %403, %408 : vector<1x32xf32>
    %410 = tpu.concatenate %400, %409 in 0 : vector<1x32xf32>, vector<1x32xf32> -> vector<2x32xf32>
    %c0_172 = arith.constant 0 : index
    %c0_173 = arith.constant 0 : index
    %411 = vector.load %arg16[%c0_172, %c0_173] : memref<32x128xf32, #tpu.memory_space<vmem>>, vector<32x128xf32>
    %cst_174 = arith.constant dense<0.000000e+00> : vector<2x128xf32>
    %412 = tpu.matmul %410, %411, %cst_174 {dimension_numbers = #tpu.dot_dimension_numbers<[1], [0], [0], [1], [0, 0, 1, 1], [], []>} : vector<2x32xf32>, vector<32x128xf32>, vector<2x128xf32> -> vector<2x128xf32>
    %c0_175 = arith.constant 0 : index
    %c0_176 = arith.constant 0 : index
    %413 = vector.load %arg17[%c0_175, %c0_176] : memref<1x128xf32, #tpu.memory_space<vmem>>, vector<1x128xf32>
    %414 = vector.broadcast %413 : vector<1x128xf32> to vector<2x128xf32>
    %415 = arith.addf %412, %414 : vector<2x128xf32>
    %c0_177 = arith.constant 0 : index
    %c0_178 = arith.constant 0 : index
    %416 = vector.load %arg18[%c0_177, %c0_178] : memref<2x128xf32, #tpu.memory_space<vmem>>, vector<2x128xf32>
    tpu.vector_store %arg18[%c0_177, %c0_178], %415 {strides = array<i32>} : memref<2x128xf32, #tpu.memory_space<vmem>>, vector<2x128xf32>,
    return
  }
}

</mosaic_0001>

<llo_original>
// kernel: custom_bert_mean_forward.1
$region0: #{custom_bert_mean_forward.1}
  #allocation0 [shape = 'u32[]', space=smem, size = 0x4, offset = 0x4, fixed_abs, tag = 'smem constant byte address 0x4 - core index']
  #allocation1 [shape = 'u32[144,128]{1,0:T(1,128)}', space=vmem, size = 0x12000, scoped, tag = 'internal scratch']
  %s0 = inlined_call_operand.vmem [shape: f32[16,32], index: 0, kind: input, shape index: {}]
  %s1 = inlined_call_operand.vmem [shape: f32[2,8], index: 1, kind: input, shape index: {}]
  %s2 = inlined_call_operand.vmem [shape: f32[1,32], index: 2, kind: input, shape index: {}]
  %s3 = inlined_call_operand.vmem [shape: f32[1,32], index: 3, kind: input, shape index: {}]
  %s4 = inlined_call_operand.vmem [shape: f32[2,32,96], index: 4, kind: input, shape index: {}]
  %s5 = inlined_call_operand.vmem [shape: f32[2,1,96], index: 5, kind: input, shape index: {}]
  %s6 = inlined_call_operand.vmem [shape: f32[2,32,32], index: 6, kind: input, shape index: {}]
  %s7 = inlined_call_operand.vmem [shape: f32[2,1,32], index: 7, kind: input, shape index: {}]
  %s8 = inlined_call_operand.vmem [shape: f32[2,1,32], index: 8, kind: input, shape index: {}]
  %s9 = inlined_call_operand.vmem [shape: f32[2,1,32], index: 9, kind: input, shape index: {}]
  %s10 = inlined_call_operand.vmem [shape: f32[2,32,64], index: 10, kind: input, shape index: {}]
  %s11 = inlined_call_operand.vmem [shape: f32[2,1,64], index: 11, kind: input, shape index: {}]
  %s12 = inlined_call_operand.vmem [shape: f32[2,64,32], index: 12, kind: input, shape index: {}]
  %s13 = inlined_call_operand.vmem [shape: f32[2,1,32], index: 13, kind: input, shape index: {}]
  %s14 = inlined_call_operand.vmem [shape: f32[2,1,32], index: 14, kind: input, shape index: {}]
  %s15 = inlined_call_operand.vmem [shape: f32[2,1,32], index: 15, kind: input, shape index: {}]
  %s16 = inlined_call_operand.vmem [shape: f32[32,128], index: 16, kind: input, shape index: {}]
  %s17 = inlined_call_operand.vmem [shape: f32[1,128], index: 17, kind: input, shape index: {}]
  %s18 = inlined_call_operand.hbm [shape: f32[2,128], index: 18, kind: output, shape index: {}]
  %s19 = sld [smem:[#allocation0]]
  $region82: #{custom_bert_mean_forward.1} parent=0
    _
  %s21 = ssub.s32 1, %s19
  %s22 = scalar_select 0, %s21, %s19
  $region1: #{custom_bert_mean_forward.1} parent=0
    #allocation2 [shape = 'u8[1024]{0}', space=vmem, size = 0x400, scoped, tag = 'output window, operand 0, single buffered']
    #allocation3 [shape = 's32[1]{0}', space=sflag, size = 0x4, scoped, tag = 'scoped memory for custom_bert_mean_forward.1']
    %23 = vsyncpa [#allocation3], 0
    // Predicated region
    $region2: #{custom_bert_mean_forward.1} parent=1 // pred_check
      _
    $region3: #{custom_bert_mean_forward.1} parent=1 // pred_check_branch
      %25 = sbr.rel (0) target = $region5
    $region4: #{custom_bert_mean_forward.1} parent=1 // pred_region
      _
    $region5: #{custom_bert_mean_forward.1} parent=1 // pred_fallthru
      _
    // Predicated region
    $region6: #{custom_bert_mean_forward.1} parent=1 // pred_check
      _
    $region7: #{custom_bert_mean_forward.1} parent=1 // pred_check_branch
      %27 = sbr.rel (0) target = $region9
    $region8: #{custom_bert_mean_forward.1} parent=1 // pred_region
      _
    $region9: #{custom_bert_mean_forward.1} parent=1 // pred_fallthru
      _
    // Predicated region
    $region10: #{custom_bert_mean_forward.1} parent=1 // pred_check
      _
    $region11: #{custom_bert_mean_forward.1} parent=1 // pred_check_branch
      %29 = sbr.rel (0) target = $region13
    $region12: #{custom_bert_mean_forward.1} parent=1 // pred_region
      _
    $region13: #{custom_bert_mean_forward.1} parent=1 // pred_fallthru
      _
    // Predicated region
    $region14: #{custom_bert_mean_forward.1} parent=1 // pred_check
      _
    $region15: #{custom_bert_mean_forward.1} parent=1 // pred_check_branch
      %31 = sbr.rel (0) target = $region17
    $region16: #{custom_bert_mean_forward.1} parent=1 // pred_region
      _
    $region17: #{custom_bert_mean_forward.1} parent=1 // pred_fallthru
      _
    // Predicated region
    $region18: #{custom_bert_mean_forward.1} parent=1 // pred_check
      _
    $region19: #{custom_bert_mean_forward.1} parent=1 // pred_check_branch
      %33 = sbr.rel (0) target = $region21
    $region20: #{custom_bert_mean_forward.1} parent=1 // pred_region
      _
    $region21: #{custom_bert_mean_forward.1} parent=1 // pred_fallthru
      _
    // Predicated region
    $region22: #{custom_bert_mean_forward.1} parent=1 // pred_check
      _
    $region23: #{custom_bert_mean_forward.1} parent=1 // pred_check_branch
      %35 = sbr.rel (0) target = $region25
    $region24: #{custom_bert_mean_forward.1} parent=1 // pred_region
      _
    $region25: #{custom_bert_mean_forward.1} parent=1 // pred_fallthru
      _
    // Predicated region
    $region26: #{custom_bert_mean_forward.1} parent=1 // pred_check
      _
    $region27: #{custom_bert_mean_forward.1} parent=1 // pred_check_branch
      %37 = sbr.rel (0) target = $region29
    $region28: #{custom_bert_mean_forward.1} parent=1 // pred_region
      _
    $region29: #{custom_bert_mean_forward.1} parent=1 // pred_fallthru
      _
    // Predicated region
    $region30: #{custom_bert_mean_forward.1} parent=1 // pred_check
      _
    $region31: #{custom_bert_mean_forward.1} parent=1 // pred_check_branch
      %39 = sbr.rel (0) target = $region33
    $region32: #{custom_bert_mean_forward.1} parent=1 // pred_region
      _
    $region33: #{custom_bert_mean_forward.1} parent=1 // pred_fallthru
      _
    // Predicated region
    $region34: #{custom_bert_mean_forward.1} parent=1 // pred_check
      _
    $region35: #{custom_bert_mean_forward.1} parent=1 // pred_check_branch
      %41 = sbr.rel (0) target = $region37
    $region36: #{custom_bert_mean_forward.1} parent=1 // pred_region
      _
    $region37: #{custom_bert_mean_forward.1} parent=1 // pred_fallthru
      _
    // Predicated region
    $region38: #{custom_bert_mean_forward.1} parent=1 // pred_check
      _
    $region39: #{custom_bert_mean_forward.1} parent=1 // pred_check_branch
      %43 = sbr.rel (0) target = $region41
    $region40: #{custom_bert_mean_forward.1} parent=1 // pred_region
      _
    $region41: #{custom_bert_mean_forward.1} parent=1 // pred_fallthru
      _
    // Predicated region
    $region42: #{custom_bert_mean_forward.1} parent=1 // pred_check
      _
    $region43: #{custom_bert_mean_forward.1} parent=1 // pred_check_branch
      %45 = sbr.rel (0) target = $region45
    $region44: #{custom_bert_mean_forward.1} parent=1 // pred_region
      _
    $region45: #{custom_bert_mean_forward.1} parent=1 // pred_fallthru
      _
    // Predicated region
    $region46: #{custom_bert_mean_forward.1} parent=1 // pred_check
      _
    $region47: #{custom_bert_mean_forward.1} parent=1 // pred_check_branch
      %47 = sbr.rel (0) target = $region49
    $region48: #{custom_bert_mean_forward.1} parent=1 // pred_region
      _
    $region49: #{custom_bert_mean_forward.1} parent=1 // pred_fallthru
      _
    // Predicated region
    $region50: #{custom_bert_mean_forward.1} parent=1 // pred_check
      _
    $region51: #{custom_bert_mean_forward.1} parent=1 // pred_check_branch
      %49 = sbr.rel (0) target = $region53
    $region52: #{custom_bert_mean_forward.1} parent=1 // pred_region
      _
    $region53: #{custom_bert_mean_forward.1} parent=1 // pred_fallthru
      _
    // Predicated region
    $region54: #{custom_bert_mean_forward.1} parent=1 // pred_check
      _
    $region55: #{custom_bert_mean_forward.1} parent=1 // pred_check_branch
      %51 = sbr.rel (0) target = $region57
    $region56: #{custom_bert_mean_forward.1} parent=1 // pred_region
      _
    $region57: #{custom_bert_mean_forward.1} parent=1 // pred_fallthru
      _
    // Predicated region
    $region58: #{custom_bert_mean_forward.1} parent=1 // pred_check
      _
    $region59: #{custom_bert_mean_forward.1} parent=1 // pred_check_branch
      %53 = sbr.rel (0) target = $region61
    $region60: #{custom_bert_mean_forward.1} parent=1 // pred_region
      _
    $region61: #{custom_bert_mean_forward.1} parent=1 // pred_fallthru
      _
    // Predicated region
    $region62: #{custom_bert_mean_forward.1} parent=1 // pred_check
      _
    $region63: #{custom_bert_mean_forward.1} parent=1 // pred_check_branch
      %55 = sbr.rel (0) target = $region65
    $region64: #{custom_bert_mean_forward.1} parent=1 // pred_region
      _
    $region65: #{custom_bert_mean_forward.1} parent=1 // pred_fallthru
      _
    // Predicated region
    $region66: #{custom_bert_mean_forward.1} parent=1 // pred_check
      _
    $region67: #{custom_bert_mean_forward.1} parent=1 // pred_check_branch
      %57 = sbr.rel (0) target = $region69
    $region68: #{custom_bert_mean_forward.1} parent=1 // pred_region
      _
    $region69: #{custom_bert_mean_forward.1} parent=1 // pred_fallthru
      _
    // Predicated region
    $region70: #{custom_bert_mean_forward.1} parent=1 // pred_check
      _
    $region71: #{custom_bert_mean_forward.1} parent=1 // pred_check_branch
      %59 = sbr.rel (0) target = $region73
    $region72: #{custom_bert_mean_forward.1} parent=1 // pred_region
      _
    $region73: #{custom_bert_mean_forward.1} parent=1 // pred_fallthru
      _
    %v60 = vld [vmem:[%s1] sm:$0x3]
    %v61 = vld [vmem:[%s0] sm:$0xff]
    %v62 = vld [vmem:[%s0 + $0x8] sm:$0xff]
    %v63 = vld [vmem:[%s2] sm:$0x1]
    %v64 = vld [vmem:[%s3] sm:$0x1]
    %vm65 = vcmask 261120
    %v66 = vsel %vm65, %v61, 0.0
    %67 = vadd.xlane.f32.xlu0 %v66
    %v68 = vpop.xlane.xlu0 %67
    %v69 = vsel %vm65, %v62, 0.0
    %70 = vadd.xlane.f32.xlu0 %v69
    %v71 = vpop.xlane.xlu0 %70
    %v72 = vrcp.pop 32.0
    %v73 = vmul.f32 %v68, %v72
    %v74 = vmul.f32 %v71, %v72
    %v75 = vsub.f32 %v61, %v73
    %v76 = vsub.f32 %v62, %v74
    %v77 = vmul.f32 %v75, %v75
    %v78 = vmul.f32 %v76, %v76
    %v79 = vsel %vm65, %v77, 0.0
    %80 = vadd.xlane.f32.xlu0 %v79
    %v81 = vpop.xlane.xlu0 %80
    %v82 = vsel %vm65, %v78, 0.0
    %83 = vadd.xlane.f32.xlu0 %v82
    %v84 = vpop.xlane.xlu0 %83
    %v85 = vmul.f32 %v81, %v72
    %v86 = vmul.f32 %v84, %v72
    %v87 = vadd.f32 %v85, 1e-12
    %v88 = vadd.f32 %v86, 1e-12
    %v89 = vrsqrt.pop %v87
    %v90 = vrsqrt.pop %v88
    %v91 = vmul.f32 %v75, %v89
    %v92 = vmul.f32 %v76, %v90
    %v94 = vlaneseq
    %v95 = vshrl.u32 %v94, 7
    %v96 = vsub.s32 0, %v95
    %v97 = vrot.slane %v63, %v96
    %v99 = vmul.f32 %v91, %v97
    %v100 = vmul.f32 %v92, %v97
    %v102 = vlaneseq
    %v103 = vshrl.u32 %v102, 7
    %v104 = vsub.s32 0, %v103
    %v105 = vrot.slane %v64, %v104
    %v107 = vadd.f32 %v99, %v105
    %v108 = vadd.f32 %v100, %v105
    %v109 = vld [vmem:[%s4] sm:$0xff]
    %v110 = vld [vmem:[%s4 + $0x8] sm:$0xff]
    %v111 = vld [vmem:[%s4 + $0x10] sm:$0xff]
    %v112 = vld [vmem:[%s4 + $0x18] sm:$0xff]
    %v113 = vld [vmem:[%s5] sm:$0x1]
    %v115 = vlaneseq
    %v116 = vshrl.u32 %v115, 7
    %v117 = vsub.s32 0, %v116
    %v118 = vrot.slane %v113, %v117
    %v121 = vsel %vm65, %v107, 0
    %v124 = vsel %vm65, %v108, 0
    %126 = vmatprep.subr.mxu0 0.0
    %127 = vmatpush1.msra.mxu0 %v109
    %128 = vmatprep.subr.mxu0 0.0
    %129 = vmatpush1.msra.mxu0 %v110
    %130 = vmatprep.subr.mxu0 0.0
    %131 = vmatpush1.msra.mxu0 %v111
    %132 = vmatprep.subr.mxu0 0.0
    %133 = vmatpush1.msra.mxu0 %v112
    %134 = vmatprep.subr.mxu0 0.0
    %135 = vmatpush1.msra.mxu0 0.0
    %136 = vmatprep.subr.mxu0 0.0
    %137 = vmatpush1.msra.mxu0 0.0
    %138 = vmatprep.subr.mxu0 0.0
    %139 = vmatpush1.msra.mxu0 0.0
    %140 = vmatprep.subr.mxu0 0.0
    %141 = vmatpush1.msra.mxu0 0.0
    %142 = vmatprep.subr.mxu0 0.0
    %143 = vmatpush1.msra.mxu0 0.0
    %144 = vmatprep.subr.mxu0 0.0
    %145 = vmatpush1.msra.mxu0 0.0
    %146 = vmatprep.subr.mxu0 0.0
    %147 = vmatpush1.msra.mxu0 0.0
    %148 = vmatprep.subr.mxu0 0.0
    %149 = vmatpush1.msra.mxu0 0.0
    %150 = vmatprep.subr.mxu0 0.0
    %151 = vmatpush1.msra.mxu0 0.0
    %152 = vmatprep.subr.mxu0 0.0
    %153 = vmatpush1.msra.mxu0 0.0
    %154 = vmatprep.subr.mxu0 0.0
    %155 = vmatpush1.msra.mxu0 0.0
    %156 = vmatprep.subr.mxu0 0.0
    %157 = vmatpush1.msra.mxu0 0.0
    %158 = vmatprep.subr.mxu0 0.0
    %159 = vmatpush1.msra.mxu0 0.0
    %160 = vmatprep.subr.mxu0 0.0
    %161 = vmatpush1.msra.mxu0 0.0
    %162 = vmatprep.subr.mxu0 0.0
    %163 = vmatpush1.msra.mxu0 0.0
    %164 = vmatprep.subr.mxu0 0.0
    %165 = vmatpush1.msra.mxu0 0.0
    %166 = vmatprep.subr.mxu0 0.0
    %167 = vmatpush1.msra.mxu0 0.0
    %168 = vmatprep.subr.mxu0 0.0
    %169 = vmatpush1.msra.mxu0 0.0
    %170 = vmatprep.subr.mxu0 0.0
    %171 = vmatpush1.msra.mxu0 0.0
    %172 = vmatprep.subr.mxu0 0.0
    %173 = vmatpush1.msra.mxu0 0.0
    %174 = vmatprep.subr.mxu0 0.0
    %175 = vmatpush1.msra.mxu0 0.0
    %176 = vmatprep.subr.mxu0 0.0
    %177 = vmatpush1.msra.mxu0 0.0
    %178 = vmatprep.subr.mxu0 0.0
    %179 = vmatpush1.msra.mxu0 0.0
    %180 = vmatprep.subr.mxu0 0.0
    %181 = vmatpush1.msra.mxu0 0.0
    %182 = vmatprep.subr.mxu0 0.0
    %183 = vmatpush1.msra.mxu0 0.0
    %184 = vmatprep.subr.mxu0 0.0
    %185 = vmatpush1.msra.mxu0 0.0
    %186 = vmatprep.subr.mxu0 0.0
    %187 = vmatpush1.msra.mxu0 0.0
    %188 = vmatprep.subr.mxu0 0.0
    %189 = vmatpush1.msra.mxu0 0.0
    %190 = vmatprep.mubr.f32.mxu0 0.0
    %191 = vmatmul.mubr.f32.gmra.mrb[0].mxu0 %v121
    %v192 = vpop.f32.mrb[0].mxu0
    %v193 = vadd.f32 %v118, %v192
    %v194 = vpop.f32.mrb[0].mxu0
    %195 = vmatprep.mubr.f32.mxu0 0.0
    %196 = vmatmul.mubr.f32.gmra.mrb[0].mxu0 %v124
    %v197 = vpop.f32.mrb[0].mxu0
    %v198 = vadd.f32 %v118, %v197
    %v199 = vpop.f32.mrb[0].mxu0
    %200 = vdwg.mxu0
    %v201 = vsub.f32 1.0, %v60
    %v202 = vmul.f32 %v201, -1e+09
    %204 = vrot.lane.b32.xlu0 %v193, 96
    %v205 = vpop.permute.xlu0 %204
    %vm206 = vcmask 130048
    %v207 = vsel %vm206, %v193, 0
    %v209 = vsel %vm206, %v205, 0
    %211 = vmatprep.subr.mxu0 0.0
    %212 = vmatpush1.xpose.msra.mxu0 %v209
    %213 = vmatprep.subr.mxu0 0.0
    %214 = vmatpush1.xpose.msra.mxu0 0.0
    %215 = vmatprep.subr.mxu0 0.0
    %216 = vmatpush1.xpose.msra.mxu0 0.0
    %217 = vmatprep.subr.mxu0 0.0
    %218 = vmatpush1.xpose.msra.mxu0 0.0
    %219 = vmatprep.subr.mxu0 0.0
    %220 = vmatpush1.xpose.msra.mxu0 0.0
    %221 = vmatprep.subr.mxu0 0.0
    %222 = vmatpush1.xpose.msra.mxu0 0.0
    %223 = vmatprep.subr.mxu0 0.0
    %224 = vmatpush1.xpose.msra.mxu0 0.0
    %225 = vmatprep.subr.mxu0 0.0
    %226 = vmatpush1.xpose.msra.mxu0 0.0
    %227 = vmatprep.subr.mxu0 0.0
    %228 = vmatpush1.xpose.msra.mxu0 0.0
    %229 = vmatprep.subr.mxu0 0.0
    %230 = vmatpush1.xpose.msra.mxu0 0.0
    %231 = vmatprep.subr.mxu0 0.0
    %232 = vmatpush1.xpose.msra.mxu0 0.0
    %233 = vmatprep.subr.mxu0 0.0
    %234 = vmatpush1.xpose.msra.mxu0 0.0
    %235 = vmatprep.subr.mxu0 0.0
    %236 = vmatpush1.xpose.msra.mxu0 0.0
    %237 = vmatprep.subr.mxu0 0.0
    %238 = vmatpush1.xpose.msra.mxu0 0.0
    %239 = vmatprep.subr.mxu0 0.0
    %240 = vmatpush1.xpose.msra.mxu0 0.0
    %241 = vmatprep.subr.mxu0 0.0
    %242 = vmatpush1.xpose.msra.mxu0 0.0
    %243 = vmatprep.subr.mxu0 0.0
    %244 = vmatpush1.xpose.msra.mxu0 0.0
    %245 = vmatprep.subr.mxu0 0.0
    %246 = vmatpush1.xpose.msra.mxu0 0.0
    %247 = vmatprep.subr.mxu0 0.0
    %248 = vmatpush1.xpose.msra.mxu0 0.0
    %249 = vmatprep.subr.mxu0 0.0
    %250 = vmatpush1.xpose.msra.mxu0 0.0
    %251 = vmatprep.subr.mxu0 0.0
    %252 = vmatpush1.xpose.msra.mxu0 0.0
    %253 = vmatprep.subr.mxu0 0.0
    %254 = vmatpush1.xpose.msra.mxu0 0.0
    %255 = vmatprep.subr.mxu0 0.0
    %256 = vmatpush1.xpose.msra.mxu0 0.0
    %257 = vmatprep.subr.mxu0 0.0
    %258 = vmatpush1.xpose.msra.mxu0 0.0
    %259 = vmatprep.subr.mxu0 0.0
    %260 = vmatpush1.xpose.msra.mxu0 0.0
    %261 = vmatprep.subr.mxu0 0.0
    %262 = vmatpush1.xpose.msra.mxu0 0.0
    %263 = vmatprep.subr.mxu0 0.0
    %264 = vmatpush1.xpose.msra.mxu0 0.0
    %265 = vmatprep.subr.mxu0 0.0
    %266 = vmatpush1.xpose.msra.mxu0 0.0
    %267 = vmatprep.subr.mxu0 0.0
    %268 = vmatpush1.xpose.msra.mxu0 0.0
    %269 = vmatprep.subr.mxu0 0.0
    %270 = vmatpush1.xpose.msra.mxu0 0.0
    %271 = vmatprep.subr.mxu0 0.0
    %272 = vmatpush1.xpose.msra.mxu0 0.0
    %273 = vmatprep.subr.mxu0 0.0
    %274 = vmatpush1.xpose.msra.mxu0 0.0
    %275 = vmatprep.mubr.f32.mxu0 0.0
    %276 = vmatmul.mubr.f32.gmra.mrb[0].mxu0 %v207
    %v277 = vpop.f32.mrb[0].mxu0
    %v278 = vadd.f32 0.0, %v277
    %v279 = vpop.f32.mrb[0].mxu0
    %280 = vdwg.mxu0
    %v281 = vmul.f32 %v278, 0.25
    %v282 = vlaneseq
    %v283 = vshrl.u32 %v282, 7
    %v284 = vsub.s32 0, %v283
    %v285 = vrot.slane %v202, %v284
    %v286 = vadd.f32 %v281, %v285
    %vm287 = vcmask 64512
    %v288 = vsel %vm287, %v286, -inf
    %289 = vmax.xlane.f32.xlu0 %v288
    %v290 = vpop.xlane.xlu0 %289
    %v291 = vsub.f32 %v286, %v290
    %v292 = vmul.f32 %v291, 1.442695
    %v293 = vpow.pop %v292
    %v294 = vsel %vm287, %v293, 0.0
    %295 = vadd.xlane.f32.xlu0 %v294
    %v296 = vpop.xlane.xlu0 %295
    %v297 = vrcp.pop %v296
    %v298 = vmul.f32 %v293, %v297
    %299 = vrot.lane.b32.xlu0 %v193, 64
    %v300 = vpop.permute.xlu0 %299
    %v303 = vsel %vm287, %v298, 0
    %305 = vmatprep.subr.mxu0 0.0
    %306 = vmatpush1.msra.mxu0 %v300
    %307 = vmatprep.subr.mxu0 0.0
    %308 = vmatpush1.msra.mxu0 0.0
    %309 = vmatprep.subr.mxu0 0.0
    %310 = vmatpush1.msra.mxu0 0.0
    %311 = vmatprep.subr.mxu0 0.0
    %312 = vmatpush1.msra.mxu0 0.0
    %313 = vmatprep.subr.mxu0 0.0
    %314 = vmatpush1.msra.mxu0 0.0
    %315 = vmatprep.subr.mxu0 0.0
    %316 = vmatpush1.msra.mxu0 0.0
    %317 = vmatprep.subr.mxu0 0.0
    %318 = vmatpush1.msra.mxu0 0.0
    %319 = vmatprep.subr.mxu0 0.0
    %320 = vmatpush1.msra.mxu0 0.0
    %321 = vmatprep.subr.mxu0 0.0
    %322 = vmatpush1.msra.mxu0 0.0
    %323 = vmatprep.subr.mxu0 0.0
    %324 = vmatpush1.msra.mxu0 0.0
    %325 = vmatprep.subr.mxu0 0.0
    %326 = vmatpush1.msra.mxu0 0.0
    %327 = vmatprep.subr.mxu0 0.0
    %328 = vmatpush1.msra.mxu0 0.0
    %329 = vmatprep.subr.mxu0 0.0
    %330 = vmatpush1.msra.mxu0 0.0
    %331 = vmatprep.subr.mxu0 0.0
    %332 = vmatpush1.msra.mxu0 0.0
    %333 = vmatprep.subr.mxu0 0.0
    %334 = vmatpush1.msra.mxu0 0.0
    %335 = vmatprep.subr.mxu0 0.0
    %336 = vmatpush1.msra.mxu0 0.0
    %337 = vmatprep.subr.mxu0 0.0
    %338 = vmatpush1.msra.mxu0 0.0
    %339 = vmatprep.subr.mxu0 0.0
    %340 = vmatpush1.msra.mxu0 0.0
    %341 = vmatprep.subr.mxu0 0.0
    %342 = vmatpush1.msra.mxu0 0.0
    %343 = vmatprep.subr.mxu0 0.0
    %344 = vmatpush1.msra.mxu0 0.0
    %345 = vmatprep.subr.mxu0 0.0
    %346 = vmatpush1.msra.mxu0 0.0
    %347 = vmatprep.subr.mxu0 0.0
    %348 = vmatpush1.msra.mxu0 0.0
    %349 = vmatprep.subr.mxu0 0.0
    %350 = vmatpush1.msra.mxu0 0.0
    %351 = vmatprep.subr.mxu0 0.0
    %352 = vmatpush1.msra.mxu0 0.0
    %353 = vmatprep.subr.mxu0 0.0
    %354 = vmatpush1.msra.mxu0 0.0
    %355 = vmatprep.subr.mxu0 0.0
    %356 = vmatpush1.msra.mxu0 0.0
    %357 = vmatprep.subr.mxu0 0.0
    %358 = vmatpush1.msra.mxu0 0.0
    %359 = vmatprep.subr.mxu0 0.0
    %360 = vmatpush1.msra.mxu0 0.0
    %361 = vmatprep.subr.mxu0 0.0
    %362 = vmatpush1.msra.mxu0 0.0
    %363 = vmatprep.subr.mxu0 0.0
    %364 = vmatpush1.msra.mxu0 0.0
    %365 = vmatprep.subr.mxu0 0.0
    %366 = vmatpush1.msra.mxu0 0.0
    %367 = vmatprep.subr.mxu0 0.0
    %368 = vmatpush1.msra.mxu0 0.0
    %369 = vmatprep.mubr.f32.mxu0 0.0
    %370 = vmatmul.mubr.f32.gmra.mrb[0].mxu0 %v303
    %v371 = vpop.f32.mrb[0].mxu0
    %v372 = vadd.f32 0.0, %v371
    %v373 = vpop.f32.mrb[0].mxu0
    %374 = vdwg.mxu0
    %375 = vrot.lane.b32.xlu0 %v193, 112
    %v376 = vpop.permute.xlu0 %375
    %377 = vrot.lane.b32.xlu0 %v193, 80
    %v378 = vpop.permute.xlu0 %377
    %v379 = vsel %vm206, %v376, 0
    %v381 = vsel %vm206, %v378, 0
    %383 = vmatprep.subr.mxu0 0.0
    %384 = vmatpush1.xpose.msra.mxu0 %v381
    %385 = vmatprep.subr.mxu0 0.0
    %386 = vmatpush1.xpose.msra.mxu0 0.0
    %387 = vmatprep.subr.mxu0 0.0
    %388 = vmatpush1.xpose.msra.mxu0 0.0
    %389 = vmatprep.subr.mxu0 0.0
    %390 = vmatpush1.xpose.msra.mxu0 0.0
    %391 = vmatprep.subr.mxu0 0.0
    %392 = vmatpush1.xpose.msra.mxu0 0.0
    %393 = vmatprep.subr.mxu0 0.0
    %394 = vmatpush1.xpose.msra.mxu0 0.0
    %395 = vmatprep.subr.mxu0 0.0
    %396 = vmatpush1.xpose.msra.mxu0 0.0
    %397 = vmatprep.subr.mxu0 0.0
    %398 = vmatpush1.xpose.msra.mxu0 0.0
    %399 = vmatprep.subr.mxu0 0.0
    %400 = vmatpush1.xpose.msra.mxu0 0.0
    %401 = vmatprep.subr.mxu0 0.0
    %402 = vmatpush1.xpose.msra.mxu0 0.0
    %403 = vmatprep.subr.mxu0 0.0
    %404 = vmatpush1.xpose.msra.mxu0 0.0
    %405 = vmatprep.subr.mxu0 0.0
    %406 = vmatpush1.xpose.msra.mxu0 0.0
    %407 = vmatprep.subr.mxu0 0.0
    %408 = vmatpush1.xpose.msra.mxu0 0.0
    %409 = vmatprep.subr.mxu0 0.0
    %410 = vmatpush1.xpose.msra.mxu0 0.0
    %411 = vmatprep.subr.mxu0 0.0
    %412 = vmatpush1.xpose.msra.mxu0 0.0
    %413 = vmatprep.subr.mxu0 0.0
    %414 = vmatpush1.xpose.msra.mxu0 0.0
    %415 = vmatprep.subr.mxu0 0.0
    %416 = vmatpush1.xpose.msra.mxu0 0.0
    %417 = vmatprep.subr.mxu0 0.0
    %418 = vmatpush1.xpose.msra.mxu0 0.0
    %419 = vmatprep.subr.mxu0 0.0
    %420 = vmatpush1.xpose.msra.mxu0 0.0
    %421 = vmatprep.subr.mxu0 0.0
    %422 = vmatpush1.xpose.msra.mxu0 0.0
    %423 = vmatprep.subr.mxu0 0.0
    %424 = vmatpush1.xpose.msra.mxu0 0.0
    %425 = vmatprep.subr.mxu0 0.0
    %426 = vmatpush1.xpose.msra.mxu0 0.0
    %427 = vmatprep.subr.mxu0 0.0
    %428 = vmatpush1.xpose.msra.mxu0 0.0
    %429 = vmatprep.subr.mxu0 0.0
    %430 = vmatpush1.xpose.msra.mxu0 0.0
    %431 = vmatprep.subr.mxu0 0.0
    %432 = vmatpush1.xpose.msra.mxu0 0.0
    %433 = vmatprep.subr.mxu0 0.0
    %434 = vmatpush1.xpose.msra.mxu0 0.0
    %435 = vmatprep.subr.mxu0 0.0
    %436 = vmatpush1.xpose.msra.mxu0 0.0
    %437 = vmatprep.subr.mxu0 0.0
    %438 = vmatpush1.xpose.msra.mxu0 0.0
    %439 = vmatprep.subr.mxu0 0.0
    %440 = vmatpush1.xpose.msra.mxu0 0.0
    %441 = vmatprep.subr.mxu0 0.0
    %442 = vmatpush1.xpose.msra.mxu0 0.0
    %443 = vmatprep.subr.mxu0 0.0
    %444 = vmatpush1.xpose.msra.mxu0 0.0
    %445 = vmatprep.subr.mxu0 0.0
    %446 = vmatpush1.xpose.msra.mxu0 0.0
    %447 = vmatprep.mubr.f32.mxu0 0.0
    %448 = vmatmul.mubr.f32.gmra.mrb[0].mxu0 %v379
    %v449 = vpop.f32.mrb[0].mxu0
    %v450 = vadd.f32 0.0, %v449
    %v451 = vpop.f32.mrb[0].mxu0
    %452 = vdwg.mxu0
    %v453 = vmul.f32 %v450, 0.25
    %v454 = vadd.f32 %v453, %v285
    %v455 = vsel %vm287, %v454, -inf
    %456 = vmax.xlane.f32.xlu0 %v455
    %v457 = vpop.xlane.xlu0 %456
    %v458 = vsub.f32 %v454, %v457
    %v459 = vmul.f32 %v458, 1.442695
    %v460 = vpow.pop %v459
    %v461 = vsel %vm287, %v460, 0.0
    %462 = vadd.xlane.f32.xlu0 %v461
    %v463 = vpop.xlane.xlu0 %462
    %v464 = vrcp.pop %v463
    %v465 = vmul.f32 %v460, %v464
    %466 = vrot.lane.b32.xlu0 %v193, 48
    %v467 = vpop.permute.xlu0 %466
    %v470 = vsel %vm287, %v465, 0
    %472 = vmatprep.subr.mxu0 0.0
    %473 = vmatpush1.msra.mxu0 %v467
    %474 = vmatprep.subr.mxu0 0.0
    %475 = vmatpush1.msra.mxu0 0.0
    %476 = vmatprep.subr.mxu0 0.0
    %477 = vmatpush1.msra.mxu0 0.0
    %478 = vmatprep.subr.mxu0 0.0
    %479 = vmatpush1.msra.mxu0 0.0
    %480 = vmatprep.subr.mxu0 0.0
    %481 = vmatpush1.msra.mxu0 0.0
    %482 = vmatprep.subr.mxu0 0.0
    %483 = vmatpush1.msra.mxu0 0.0
    %484 = vmatprep.subr.mxu0 0.0
    %485 = vmatpush1.msra.mxu0 0.0
    %486 = vmatprep.subr.mxu0 0.0
    %487 = vmatpush1.msra.mxu0 0.0
    %488 = vmatprep.subr.mxu0 0.0
    %489 = vmatpush1.msra.mxu0 0.0
    %490 = vmatprep.subr.mxu0 0.0
    %491 = vmatpush1.msra.mxu0 0.0
    %492 = vmatprep.subr.mxu0 0.0
    %493 = vmatpush1.msra.mxu0 0.0
    %494 = vmatprep.subr.mxu0 0.0
    %495 = vmatpush1.msra.mxu0 0.0
    %496 = vmatprep.subr.mxu0 0.0
    %497 = vmatpush1.msra.mxu0 0.0
    %498 = vmatprep.subr.mxu0 0.0
    %499 = vmatpush1.msra.mxu0 0.0
    %500 = vmatprep.subr.mxu0 0.0
    %501 = vmatpush1.msra.mxu0 0.0
    %502 = vmatprep.subr.mxu0 0.0
    %503 = vmatpush1.msra.mxu0 0.0
    %504 = vmatprep.subr.mxu0 0.0
    %505 = vmatpush1.msra.mxu0 0.0
    %506 = vmatprep.subr.mxu0 0.0
    %507 = vmatpush1.msra.mxu0 0.0
    %508 = vmatprep.subr.mxu0 0.0
    %509 = vmatpush1.msra.mxu0 0.0
    %510 = vmatprep.subr.mxu0 0.0
    %511 = vmatpush1.msra.mxu0 0.0
    %512 = vmatprep.subr.mxu0 0.0
    %513 = vmatpush1.msra.mxu0 0.0
    %514 = vmatprep.subr.mxu0 0.0
    %515 = vmatpush1.msra.mxu0 0.0
    %516 = vmatprep.subr.mxu0 0.0
    %517 = vmatpush1.msra.mxu0 0.0
    %518 = vmatprep.subr.mxu0 0.0
    %519 = vmatpush1.msra.mxu0 0.0
    %520 = vmatprep.subr.mxu0 0.0
    %521 = vmatpush1.msra.mxu0 0.0
    %522 = vmatprep.subr.mxu0 0.0
    %523 = vmatpush1.msra.mxu0 0.0
    %524 = vmatprep.subr.mxu0 0.0
    %525 = vmatpush1.msra.mxu0 0.0
    %526 = vmatprep.subr.mxu0 0.0
    %527 = vmatpush1.msra.mxu0 0.0
    %528 = vmatprep.subr.mxu0 0.0
    %529 = vmatpush1.msra.mxu0 0.0
    %530 = vmatprep.subr.mxu0 0.0
    %531 = vmatpush1.msra.mxu0 0.0
    %532 = vmatprep.subr.mxu0 0.0
    %533 = vmatpush1.msra.mxu0 0.0
    %534 = vmatprep.subr.mxu0 0.0
    %535 = vmatpush1.msra.mxu0 0.0
    %536 = vmatprep.mubr.f32.mxu0 0.0
    %537 = vmatmul.mubr.f32.gmra.mrb[0].mxu0 %v470
    %v538 = vpop.f32.mrb[0].mxu0
    %v539 = vadd.f32 0.0, %v538
    %v540 = vpop.f32.mrb[0].mxu0
    %541 = vdwg.mxu0
    %543 = vrot.lane.b32.xlu0 %v539, 16
    %v544 = vpop.permute.xlu0 %543
    %v546 = vsel %vm206, %v372, %v544
    %548 = vrot.lane.b32.xlu0 %v198, 96
    %v549 = vpop.permute.xlu0 %548
    %v550 = vsel %vm206, %v198, 0
    %v552 = vsel %vm206, %v549, 0
    %554 = vmatprep.subr.mxu0 0.0
    %555 = vmatpush1.xpose.msra.mxu0 %v552
    %556 = vmatprep.subr.mxu0 0.0
    %557 = vmatpush1.xpose.msra.mxu0 0.0
    %558 = vmatprep.subr.mxu0 0.0
    %559 = vmatpush1.xpose.msra.mxu0 0.0
    %560 = vmatprep.subr.mxu0 0.0
    %561 = vmatpush1.xpose.msra.mxu0 0.0
    %562 = vmatprep.subr.mxu0 0.0
    %563 = vmatpush1.xpose.msra.mxu0 0.0
    %564 = vmatprep.subr.mxu0 0.0
    %565 = vmatpush1.xpose.msra.mxu0 0.0
    %566 = vmatprep.subr.mxu0 0.0
    %567 = vmatpush1.xpose.msra.mxu0 0.0
    %568 = vmatprep.subr.mxu0 0.0
    %569 = vmatpush1.xpose.msra.mxu0 0.0
    %570 = vmatprep.subr.mxu0 0.0
    %571 = vmatpush1.xpose.msra.mxu0 0.0
    %572 = vmatprep.subr.mxu0 0.0
    %573 = vmatpush1.xpose.msra.mxu0 0.0
    %574 = vmatprep.subr.mxu0 0.0
    %575 = vmatpush1.xpose.msra.mxu0 0.0
    %576 = vmatprep.subr.mxu0 0.0
    %577 = vmatpush1.xpose.msra.mxu0 0.0
    %578 = vmatprep.subr.mxu0 0.0
    %579 = vmatpush1.xpose.msra.mxu0 0.0
    %580 = vmatprep.subr.mxu0 0.0
    %581 = vmatpush1.xpose.msra.mxu0 0.0
    %582 = vmatprep.subr.mxu0 0.0
    %583 = vmatpush1.xpose.msra.mxu0 0.0
    %584 = vmatprep.subr.mxu0 0.0
    %585 = vmatpush1.xpose.msra.mxu0 0.0
    %586 = vmatprep.subr.mxu0 0.0
    %587 = vmatpush1.xpose.msra.mxu0 0.0
    %588 = vmatprep.subr.mxu0 0.0
    %589 = vmatpush1.xpose.msra.mxu0 0.0
    %590 = vmatprep.subr.mxu0 0.0
    %591 = vmatpush1.xpose.msra.mxu0 0.0
    %592 = vmatprep.subr.mxu0 0.0
    %593 = vmatpush1.xpose.msra.mxu0 0.0
    %594 = vmatprep.subr.mxu0 0.0
    %595 = vmatpush1.xpose.msra.mxu0 0.0
    %596 = vmatprep.subr.mxu0 0.0
    %597 = vmatpush1.xpose.msra.mxu0 0.0
    %598 = vmatprep.subr.mxu0 0.0
    %599 = vmatpush1.xpose.msra.mxu0 0.0
    %600 = vmatprep.subr.mxu0 0.0
    %601 = vmatpush1.xpose.msra.mxu0 0.0
    %602 = vmatprep.subr.mxu0 0.0
    %603 = vmatpush1.xpose.msra.mxu0 0.0
    %604 = vmatprep.subr.mxu0 0.0
    %605 = vmatpush1.xpose.msra.mxu0 0.0
    %606 = vmatprep.subr.mxu0 0.0
    %607 = vmatpush1.xpose.msra.mxu0 0.0
    %608 = vmatprep.subr.mxu0 0.0
    %609 = vmatpush1.xpose.msra.mxu0 0.0
    %610 = vmatprep.subr.mxu0 0.0
    %611 = vmatpush1.xpose.msra.mxu0 0.0
    %612 = vmatprep.subr.mxu0 0.0
    %613 = vmatpush1.xpose.msra.mxu0 0.0
    %614 = vmatprep.subr.mxu0 0.0
    %615 = vmatpush1.xpose.msra.mxu0 0.0
    %616 = vmatprep.subr.mxu0 0.0
    %617 = vmatpush1.xpose.msra.mxu0 0.0
    %618 = vmatprep.mubr.f32.mxu0 0.0
    %619 = vmatmul.mubr.f32.gmra.mrb[0].mxu0 %v550
    %v620 = vpop.f32.mrb[0].mxu0
    %v621 = vadd.f32 0.0, %v620
    %v622 = vpop.f32.mrb[0].mxu0
    %623 = vdwg.mxu0
    %v624 = vmul.f32 %v621, 0.25
    %v625 = vlaneseq
    %v626 = vshrl.u32 %v625, 7
    %v627 = vsub.s32 1, %v626
    %v628 = vrot.slane %v202, %v627
    %v629 = vadd.f32 %v624, %v628
    %v630 = vsel %vm287, %v629, -inf
    %631 = vmax.xlane.f32.xlu0 %v630
    %v632 = vpop.xlane.xlu0 %631
    %v633 = vsub.f32 %v629, %v632
    %v634 = vmul.f32 %v633, 1.442695
    %v635 = vpow.pop %v634
    %v636 = vsel %vm287, %v635, 0.0
    %637 = vadd.xlane.f32.xlu0 %v636
    %v638 = vpop.xlane.xlu0 %637
    %v639 = vrcp.pop %v638
    %v640 = vmul.f32 %v635, %v639
    %641 = vrot.lane.b32.xlu0 %v198, 64
    %v642 = vpop.permute.xlu0 %641
    %v645 = vsel %vm287, %v640, 0
    %647 = vmatprep.subr.mxu0 0.0
    %648 = vmatpush1.msra.mxu0 %v642
    %649 = vmatprep.subr.mxu0 0.0
    %650 = vmatpush1.msra.mxu0 0.0
    %651 = vmatprep.subr.mxu0 0.0
    %652 = vmatpush1.msra.mxu0 0.0
    %653 = vmatprep.subr.mxu0 0.0
    %654 = vmatpush1.msra.mxu0 0.0
    %655 = vmatprep.subr.mxu0 0.0
    %656 = vmatpush1.msra.mxu0 0.0
    %657 = vmatprep.subr.mxu0 0.0
    %658 = vmatpush1.msra.mxu0 0.0
    %659 = vmatprep.subr.mxu0 0.0
    %660 = vmatpush1.msra.mxu0 0.0
    %661 = vmatprep.subr.mxu0 0.0
    %662 = vmatpush1.msra.mxu0 0.0
    %663 = vmatprep.subr.mxu0 0.0
    %664 = vmatpush1.msra.mxu0 0.0
    %665 = vmatprep.subr.mxu0 0.0
    %666 = vmatpush1.msra.mxu0 0.0
    %667 = vmatprep.subr.mxu0 0.0
    %668 = vmatpush1.msra.mxu0 0.0
    %669 = vmatprep.subr.mxu0 0.0
    %670 = vmatpush1.msra.mxu0 0.0
    %671 = vmatprep.subr.mxu0 0.0
    %672 = vmatpush1.msra.mxu0 0.0
    %673 = vmatprep.subr.mxu0 0.0
    %674 = vmatpush1.msra.mxu0 0.0
    %675 = vmatprep.subr.mxu0 0.0
    %676 = vmatpush1.msra.mxu0 0.0
    %677 = vmatprep.subr.mxu0 0.0
    %678 = vmatpush1.msra.mxu0 0.0
    %679 = vmatprep.subr.mxu0 0.0
    %680 = vmatpush1.msra.mxu0 0.0
    %681 = vmatprep.subr.mxu0 0.0
    %682 = vmatpush1.msra.mxu0 0.0
    %683 = vmatprep.subr.mxu0 0.0
    %684 = vmatpush1.msra.mxu0 0.0
    %685 = vmatprep.subr.mxu0 0.0
    %686 = vmatpush1.msra.mxu0 0.0
    %687 = vmatprep.subr.mxu0 0.0
    %688 = vmatpush1.msra.mxu0 0.0
    %689 = vmatprep.subr.mxu0 0.0
    %690 = vmatpush1.msra.mxu0 0.0
    %691 = vmatprep.subr.mxu0 0.0
    %692 = vmatpush1.msra.mxu0 0.0
    %693 = vmatprep.subr.mxu0 0.0
    %694 = vmatpush1.msra.mxu0 0.0
    %695 = vmatprep.subr.mxu0 0.0
    %696 = vmatpush1.msra.mxu0 0.0
    %697 = vmatprep.subr.mxu0 0.0
    %698 = vmatpush1.msra.mxu0 0.0
    %699 = vmatprep.subr.mxu0 0.0
    %700 = vmatpush1.msra.mxu0 0.0
    %701 = vmatprep.subr.mxu0 0.0
    %702 = vmatpush1.msra.mxu0 0.0
    %703 = vmatprep.subr.mxu0 0.0
    %704 = vmatpush1.msra.mxu0 0.0
    %705 = vmatprep.subr.mxu0 0.0
    %706 = vmatpush1.msra.mxu0 0.0
    %707 = vmatprep.subr.mxu0 0.0
    %708 = vmatpush1.msra.mxu0 0.0
    %709 = vmatprep.subr.mxu0 0.0
    %710 = vmatpush1.msra.mxu0 0.0
    %711 = vmatprep.mubr.f32.mxu0 0.0
    %712 = vmatmul.mubr.f32.gmra.mrb[0].mxu0 %v645
    %v713 = vpop.f32.mrb[0].mxu0
    %v714 = vadd.f32 0.0, %v713
    %v715 = vpop.f32.mrb[0].mxu0
    %716 = vdwg.mxu0
    %717 = vrot.lane.b32.xlu0 %v198, 112
    %v718 = vpop.permute.xlu0 %717
    %719 = vrot.lane.b32.xlu0 %v198, 80
    %v720 = vpop.permute.xlu0 %719
    %v721 = vsel %vm206, %v718, 0
    %v723 = vsel %vm206, %v720, 0
    %725 = vmatprep.subr.mxu0 0.0
    %726 = vmatpush1.xpose.msra.mxu0 %v723
    %727 = vmatprep.subr.mxu0 0.0
    %728 = vmatpush1.xpose.msra.mxu0 0.0
    %729 = vmatprep.subr.mxu0 0.0
    %730 = vmatpush1.xpose.msra.mxu0 0.0
    %731 = vmatprep.subr.mxu0 0.0
    %732 = vmatpush1.xpose.msra.mxu0 0.0
    %733 = vmatprep.subr.mxu0 0.0
    %734 = vmatpush1.xpose.msra.mxu0 0.0
    %735 = vmatprep.subr.mxu0 0.0
    %736 = vmatpush1.xpose.msra.mxu0 0.0
    %737 = vmatprep.subr.mxu0 0.0
    %738 = vmatpush1.xpose.msra.mxu0 0.0
    %739 = vmatprep.subr.mxu0 0.0
    %740 = vmatpush1.xpose.msra.mxu0 0.0
    %741 = vmatprep.subr.mxu0 0.0
    %742 = vmatpush1.xpose.msra.mxu0 0.0
    %743 = vmatprep.subr.mxu0 0.0
    %744 = vmatpush1.xpose.msra.mxu0 0.0
    %745 = vmatprep.subr.mxu0 0.0
    %746 = vmatpush1.xpose.msra.mxu0 0.0
    %747 = vmatprep.subr.mxu0 0.0
    %748 = vmatpush1.xpose.msra.mxu0 0.0
    %749 = vmatprep.subr.mxu0 0.0
    %750 = vmatpush1.xpose.msra.mxu0 0.0
    %751 = vmatprep.subr.mxu0 0.0
    %752 = vmatpush1.xpose.msra.mxu0 0.0
    %753 = vmatprep.subr.mxu0 0.0
    %754 = vmatpush1.xpose.msra.mxu0 0.0
    %755 = vmatprep.subr.mxu0 0.0
    %756 = vmatpush1.xpose.msra.mxu0 0.0
    %757 = vmatprep.subr.mxu0 0.0
    %758 = vmatpush1.xpose.msra.mxu0 0.0
    %759 = vmatprep.subr.mxu0 0.0
    %760 = vmatpush1.xpose.msra.mxu0 0.0
    %761 = vmatprep.subr.mxu0 0.0
    %762 = vmatpush1.xpose.msra.mxu0 0.0
    %763 = vmatprep.subr.mxu0 0.0
    %764 = vmatpush1.xpose.msra.mxu0 0.0
    %765 = vmatprep.subr.mxu0 0.0
    %766 = vmatpush1.xpose.msra.mxu0 0.0
    %767 = vmatprep.subr.mxu0 0.0
    %768 = vmatpush1.xpose.msra.mxu0 0.0
    %769 = vmatprep.subr.mxu0 0.0
    %770 = vmatpush1.xpose.msra.mxu0 0.0
    %771 = vmatprep.subr.mxu0 0.0
    %772 = vmatpush1.xpose.msra.mxu0 0.0
    %773 = vmatprep.subr.mxu0 0.0
    %774 = vmatpush1.xpose.msra.mxu0 0.0
    %775 = vmatprep.subr.mxu0 0.0
    %776 = vmatpush1.xpose.msra.mxu0 0.0
    %777 = vmatprep.subr.mxu0 0.0
    %778 = vmatpush1.xpose.msra.mxu0 0.0
    %779 = vmatprep.subr.mxu0 0.0
    %780 = vmatpush1.xpose.msra.mxu0 0.0
    %781 = vmatprep.subr.mxu0 0.0
    %782 = vmatpush1.xpose.msra.mxu0 0.0
    %783 = vmatprep.subr.mxu0 0.0
    %784 = vmatpush1.xpose.msra.mxu0 0.0
    %785 = vmatprep.subr.mxu0 0.0
    %786 = vmatpush1.xpose.msra.mxu0 0.0
    %787 = vmatprep.subr.mxu0 0.0
    %788 = vmatpush1.xpose.msra.mxu0 0.0
    %789 = vmatprep.mubr.f32.mxu0 0.0
    %790 = vmatmul.mubr.f32.gmra.mrb[0].mxu0 %v721
    %v791 = vpop.f32.mrb[0].mxu0
    %v792 = vadd.f32 0.0, %v791
    %v793 = vpop.f32.mrb[0].mxu0
    %794 = vdwg.mxu0
    %v795 = vmul.f32 %v792, 0.25
    %v796 = vadd.f32 %v795, %v628
    %v797 = vsel %vm287, %v796, -inf
    %798 = vmax.xlane.f32.xlu0 %v797
    %v799 = vpop.xlane.xlu0 %798
    %v800 = vsub.f32 %v796, %v799
    %v801 = vmul.f32 %v800, 1.442695
    %v802 = vpow.pop %v801
    %v803 = vsel %vm287, %v802, 0.0
    %804 = vadd.xlane.f32.xlu0 %v803
    %v805 = vpop.xlane.xlu0 %804
    %v806 = vrcp.pop %v805
    %v807 = vmul.f32 %v802, %v806
    %808 = vrot.lane.b32.xlu0 %v198, 48
    %v809 = vpop.permute.xlu0 %808
    %v812 = vsel %vm287, %v807, 0
    %814 = vmatprep.subr.mxu0 0.0
    %815 = vmatpush1.msra.mxu0 %v809
    %816 = vmatprep.subr.mxu0 0.0
    %817 = vmatpush1.msra.mxu0 0.0
    %818 = vmatprep.subr.mxu0 0.0
    %819 = vmatpush1.msra.mxu0 0.0
    %820 = vmatprep.subr.mxu0 0.0
    %821 = vmatpush1.msra.mxu0 0.0
    %822 = vmatprep.subr.mxu0 0.0
    %823 = vmatpush1.msra.mxu0 0.0
    %824 = vmatprep.subr.mxu0 0.0
    %825 = vmatpush1.msra.mxu0 0.0
    %826 = vmatprep.subr.mxu0 0.0
    %827 = vmatpush1.msra.mxu0 0.0
    %828 = vmatprep.subr.mxu0 0.0
    %829 = vmatpush1.msra.mxu0 0.0
    %830 = vmatprep.subr.mxu0 0.0
    %831 = vmatpush1.msra.mxu0 0.0
    %832 = vmatprep.subr.mxu0 0.0
    %833 = vmatpush1.msra.mxu0 0.0
    %834 = vmatprep.subr.mxu0 0.0
    %835 = vmatpush1.msra.mxu0 0.0
    %836 = vmatprep.subr.mxu0 0.0
    %837 = vmatpush1.msra.mxu0 0.0
    %838 = vmatprep.subr.mxu0 0.0
    %839 = vmatpush1.msra.mxu0 0.0
    %840 = vmatprep.subr.mxu0 0.0
    %841 = vmatpush1.msra.mxu0 0.0
    %842 = vmatprep.subr.mxu0 0.0
    %843 = vmatpush1.msra.mxu0 0.0
    %844 = vmatprep.subr.mxu0 0.0
    %845 = vmatpush1.msra.mxu0 0.0
    %846 = vmatprep.subr.mxu0 0.0
    %847 = vmatpush1.msra.mxu0 0.0
    %848 = vmatprep.subr.mxu0 0.0
    %849 = vmatpush1.msra.mxu0 0.0
    %850 = vmatprep.subr.mxu0 0.0
    %851 = vmatpush1.msra.mxu0 0.0
    %852 = vmatprep.subr.mxu0 0.0
    %853 = vmatpush1.msra.mxu0 0.0
    %854 = vmatprep.subr.mxu0 0.0
    %855 = vmatpush1.msra.mxu0 0.0
    %856 = vmatprep.subr.mxu0 0.0
    %857 = vmatpush1.msra.mxu0 0.0
    %858 = vmatprep.subr.mxu0 0.0
    %859 = vmatpush1.msra.mxu0 0.0
    %860 = vmatprep.subr.mxu0 0.0
    %861 = vmatpush1.msra.mxu0 0.0
    %862 = vmatprep.subr.mxu0 0.0
    %863 = vmatpush1.msra.mxu0 0.0
    %864 = vmatprep.subr.mxu0 0.0
    %865 = vmatpush1.msra.mxu0 0.0
    %866 = vmatprep.subr.mxu0 0.0
    %867 = vmatpush1.msra.mxu0 0.0
    %868 = vmatprep.subr.mxu0 0.0
    %869 = vmatpush1.msra.mxu0 0.0
    %870 = vmatprep.subr.mxu0 0.0
    %871 = vmatpush1.msra.mxu0 0.0
    %872 = vmatprep.subr.mxu0 0.0
    %873 = vmatpush1.msra.mxu0 0.0
    %874 = vmatprep.subr.mxu0 0.0
    %875 = vmatpush1.msra.mxu0 0.0
    %876 = vmatprep.subr.mxu0 0.0
    %877 = vmatpush1.msra.mxu0 0.0
    %878 = vmatprep.mubr.f32.mxu0 0.0
    %879 = vmatmul.mubr.f32.gmra.mrb[0].mxu0 %v812
    %v880 = vpop.f32.mrb[0].mxu0
    %v881 = vadd.f32 0.0, %v880
    %v882 = vpop.f32.mrb[0].mxu0
    %883 = vdwg.mxu0
    %885 = vrot.lane.b32.xlu0 %v881, 16
    %v886 = vpop.permute.xlu0 %885
    %v888 = vsel %vm206, %v714, %v886
    %v889 = vld [vmem:[%s6] sm:$0xff]
    %v890 = vld [vmem:[%s6 + $0x8] sm:$0xff]
    %v891 = vld [vmem:[%s6 + $0x10] sm:$0xff]
    %v892 = vld [vmem:[%s6 + $0x18] sm:$0xff]
    %v893 = vld [vmem:[%s7] sm:$0x1]
    %v895 = vlaneseq
    %v896 = vshrl.u32 %v895, 7
    %v897 = vsub.s32 0, %v896
    %v898 = vrot.slane %v893, %v897
    %v901 = vsel %vm65, %v546, 0
    %v904 = vsel %vm65, %v888, 0
    %906 = vmatprep.subr.mxu0 0.0
    %907 = vmatpush1.msra.mxu0 %v889
    %908 = vmatprep.subr.mxu0 0.0
    %909 = vmatpush1.msra.mxu0 %v890
    %910 = vmatprep.subr.mxu0 0.0
    %911 = vmatpush1.msra.mxu0 %v891
    %912 = vmatprep.subr.mxu0 0.0
    %913 = vmatpush1.msra.mxu0 %v892
    %914 = vmatprep.subr.mxu0 0.0
    %915 = vmatpush1.msra.mxu0 0.0
    %916 = vmatprep.subr.mxu0 0.0
    %917 = vmatpush1.msra.mxu0 0.0
    %918 = vmatprep.subr.mxu0 0.0
    %919 = vmatpush1.msra.mxu0 0.0
    %920 = vmatprep.subr.mxu0 0.0
    %921 = vmatpush1.msra.mxu0 0.0
    %922 = vmatprep.subr.mxu0 0.0
    %923 = vmatpush1.msra.mxu0 0.0
    %924 = vmatprep.subr.mxu0 0.0
    %925 = vmatpush1.msra.mxu0 0.0
    %926 = vmatprep.subr.mxu0 0.0
    %927 = vmatpush1.msra.mxu0 0.0
    %928 = vmatprep.subr.mxu0 0.0
    %929 = vmatpush1.msra.mxu0 0.0
    %930 = vmatprep.subr.mxu0 0.0
    %931 = vmatpush1.msra.mxu0 0.0
    %932 = vmatprep.subr.mxu0 0.0
    %933 = vmatpush1.msra.mxu0 0.0
    %934 = vmatprep.subr.mxu0 0.0
    %935 = vmatpush1.msra.mxu0 0.0
    %936 = vmatprep.subr.mxu0 0.0
    %937 = vmatpush1.msra.mxu0 0.0
    %938 = vmatprep.subr.mxu0 0.0
    %939 = vmatpush1.msra.mxu0 0.0
    %940 = vmatprep.subr.mxu0 0.0
    %941 = vmatpush1.msra.mxu0 0.0
    %942 = vmatprep.subr.mxu0 0.0
    %943 = vmatpush1.msra.mxu0 0.0
    %944 = vmatprep.subr.mxu0 0.0
    %945 = vmatpush1.msra.mxu0 0.0
    %946 = vmatprep.subr.mxu0 0.0
    %947 = vmatpush1.msra.mxu0 0.0
    %948 = vmatprep.subr.mxu0 0.0
    %949 = vmatpush1.msra.mxu0 0.0
    %950 = vmatprep.subr.mxu0 0.0
    %951 = vmatpush1.msra.mxu0 0.0
    %952 = vmatprep.subr.mxu0 0.0
    %953 = vmatpush1.msra.mxu0 0.0
    %954 = vmatprep.subr.mxu0 0.0
    %955 = vmatpush1.msra.mxu0 0.0
    %956 = vmatprep.subr.mxu0 0.0
    %957 = vmatpush1.msra.mxu0 0.0
    %958 = vmatprep.subr.mxu0 0.0
    %959 = vmatpush1.msra.mxu0 0.0
    %960 = vmatprep.subr.mxu0 0.0
    %961 = vmatpush1.msra.mxu0 0.0
    %962 = vmatprep.subr.mxu0 0.0
    %963 = vmatpush1.msra.mxu0 0.0
    %964 = vmatprep.subr.mxu0 0.0
    %965 = vmatpush1.msra.mxu0 0.0
    %966 = vmatprep.subr.mxu0 0.0
    %967 = vmatpush1.msra.mxu0 0.0
    %968 = vmatprep.subr.mxu0 0.0
    %969 = vmatpush1.msra.mxu0 0.0
    %970 = vmatprep.mubr.f32.mxu0 0.0
    %971 = vmatmul.mubr.f32.gmra.mrb[0].mxu0 %v901
    %v972 = vpop.f32.mrb[0].mxu0
    %v973 = vadd.f32 %v898, %v972
    %v974 = vpop.f32.mrb[0].mxu0
    %975 = vmatprep.mubr.f32.mxu0 0.0
    %976 = vmatmul.mubr.f32.gmra.mrb[0].mxu0 %v904
    %v977 = vpop.f32.mrb[0].mxu0
    %v978 = vadd.f32 %v898, %v977
    %v979 = vpop.f32.mrb[0].mxu0
    %980 = vdwg.mxu0
    %v981 = vadd.f32 %v107, %v973
    %v982 = vadd.f32 %v108, %v978
    %v983 = vld [vmem:[%s8] sm:$0x1]
    %v984 = vld [vmem:[%s9] sm:$0x1]
    %v985 = vsel %vm65, %v981, 0.0
    %986 = vadd.xlane.f32.xlu0 %v985
    %v987 = vpop.xlane.xlu0 %986
    %v988 = vsel %vm65, %v982, 0.0
    %989 = vadd.xlane.f32.xlu0 %v988
    %v990 = vpop.xlane.xlu0 %989
    %v991 = vmul.f32 %v987, %v72
    %v992 = vmul.f32 %v990, %v72
    %v993 = vsub.f32 %v981, %v991
    %v994 = vsub.f32 %v982, %v992
    %v995 = vmul.f32 %v993, %v993
    %v996 = vmul.f32 %v994, %v994
    %v997 = vsel %vm65, %v995, 0.0
    %998 = vadd.xlane.f32.xlu0 %v997
    %v999 = vpop.xlane.xlu0 %998
    %v1000 = vsel %vm65, %v996, 0.0
    %1001 = vadd.xlane.f32.xlu0 %v1000
    %v1002 = vpop.xlane.xlu0 %1001
    %v1003 = vmul.f32 %v999, %v72
    %v1004 = vmul.f32 %v1002, %v72
    %v1005 = vadd.f32 %v1003, 1e-12
    %v1006 = vadd.f32 %v1004, 1e-12
    %v1007 = vrsqrt.pop %v1005
    %v1008 = vrsqrt.pop %v1006
    %v1009 = vmul.f32 %v993, %v1007
    %v1010 = vmul.f32 %v994, %v1008
    %v1012 = vlaneseq
    %v1013 = vshrl.u32 %v1012, 7
    %v1014 = vsub.s32 0, %v1013
    %v1015 = vrot.slane %v983, %v1014
    %v1017 = vmul.f32 %v1009, %v1015
    %v1018 = vmul.f32 %v1010, %v1015
    %v1020 = vlaneseq
    %v1021 = vshrl.u32 %v1020, 7
    %v1022 = vsub.s32 0, %v1021
    %v1023 = vrot.slane %v984, %v1022
    %v1025 = vadd.f32 %v1017, %v1023
    %v1026 = vadd.f32 %v1018, %v1023
    %v1027 = vld [vmem:[%s10] sm:$0xff]
    %v1028 = vld [vmem:[%s10 + $0x8] sm:$0xff]
    %v1029 = vld [vmem:[%s10 + $0x10] sm:$0xff]
    %v1030 = vld [vmem:[%s10 + $0x18] sm:$0xff]
    %v1031 = vld [vmem:[%s11] sm:$0x1]
    %v1033 = vlaneseq
    %v1034 = vshrl.u32 %v1033, 7
    %v1035 = vsub.s32 0, %v1034
    %v1036 = vrot.slane %v1031, %v1035
    %v1039 = vsel %vm65, %v1025, 0
    %v1042 = vsel %vm65, %v1026, 0
    %1044 = vmatprep.subr.mxu0 0.0
    %1045 = vmatpush1.msra.mxu0 %v1027
    %1046 = vmatprep.subr.mxu0 0.0
    %1047 = vmatpush1.msra.mxu0 %v1028
    %1048 = vmatprep.subr.mxu0 0.0
    %1049 = vmatpush1.msra.mxu0 %v1029
    %1050 = vmatprep.subr.mxu0 0.0
    %1051 = vmatpush1.msra.mxu0 %v1030
    %1052 = vmatprep.subr.mxu0 0.0
    %1053 = vmatpush1.msra.mxu0 0.0
    %1054 = vmatprep.subr.mxu0 0.0
    %1055 = vmatpush1.msra.mxu0 0.0
    %1056 = vmatprep.subr.mxu0 0.0
    %1057 = vmatpush1.msra.mxu0 0.0
    %1058 = vmatprep.subr.mxu0 0.0
    %1059 = vmatpush1.msra.mxu0 0.0
    %1060 = vmatprep.subr.mxu0 0.0
    %1061 = vmatpush1.msra.mxu0 0.0
    %1062 = vmatprep.subr.mxu0 0.0
    %1063 = vmatpush1.msra.mxu0 0.0
    %1064 = vmatprep.subr.mxu0 0.0
    %1065 = vmatpush1.msra.mxu0 0.0
    %1066 = vmatprep.subr.mxu0 0.0
    %1067 = vmatpush1.msra.mxu0 0.0
    %1068 = vmatprep.subr.mxu0 0.0
    %1069 = vmatpush1.msra.mxu0 0.0
    %1070 = vmatprep.subr.mxu0 0.0
    %1071 = vmatpush1.msra.mxu0 0.0
    %1072 = vmatprep.subr.mxu0 0.0
    %1073 = vmatpush1.msra.mxu0 0.0
    %1074 = vmatprep.subr.mxu0 0.0
    %1075 = vmatpush1.msra.mxu0 0.0
    %1076 = vmatprep.subr.mxu0 0.0
    %1077 = vmatpush1.msra.mxu0 0.0
    %1078 = vmatprep.subr.mxu0 0.0
    %1079 = vmatpush1.msra.mxu0 0.0
    %1080 = vmatprep.subr.mxu0 0.0
    %1081 = vmatpush1.msra.mxu0 0.0
    %1082 = vmatprep.subr.mxu0 0.0
    %1083 = vmatpush1.msra.mxu0 0.0
    %1084 = vmatprep.subr.mxu0 0.0
    %1085 = vmatpush1.msra.mxu0 0.0
    %1086 = vmatprep.subr.mxu0 0.0
    %1087 = vmatpush1.msra.mxu0 0.0
    %1088 = vmatprep.subr.mxu0 0.0
    %1089 = vmatpush1.msra.mxu0 0.0
    %1090 = vmatprep.subr.mxu0 0.0
    %1091 = vmatpush1.msra.mxu0 0.0
    %1092 = vmatprep.subr.mxu0 0.0
    %1093 = vmatpush1.msra.mxu0 0.0
    %1094 = vmatprep.subr.mxu0 0.0
    %1095 = vmatpush1.msra.mxu0 0.0
    %1096 = vmatprep.subr.mxu0 0.0
    %1097 = vmatpush1.msra.mxu0 0.0
    %1098 = vmatprep.subr.mxu0 0.0
    %1099 = vmatpush1.msra.mxu0 0.0
    %1100 = vmatprep.subr.mxu0 0.0
    %1101 = vmatpush1.msra.mxu0 0.0
    %1102 = vmatprep.subr.mxu0 0.0
    %1103 = vmatpush1.msra.mxu0 0.0
    %1104 = vmatprep.subr.mxu0 0.0
    %1105 = vmatpush1.msra.mxu0 0.0
    %1106 = vmatprep.subr.mxu0 0.0
    %1107 = vmatpush1.msra.mxu0 0.0
    %1108 = vmatprep.mubr.f32.mxu0 0.0
    %1109 = vmatmul.mubr.f32.gmra.mrb[0].mxu0 %v1039
    %v1110 = vpop.f32.mrb[0].mxu0
    %v1111 = vadd.f32 %v1036, %v1110
    %v1112 = vpop.f32.mrb[0].mxu0
    %1113 = vmatprep.mubr.f32.mxu0 0.0
    %1114 = vmatmul.mubr.f32.gmra.mrb[0].mxu0 %v1042
    %v1115 = vpop.f32.mrb[0].mxu0
    %v1116 = vadd.f32 %v1036, %v1115
    %v1117 = vpop.f32.mrb[0].mxu0
    %1118 = vdwg.mxu0
    %v1119 = vmul.f32 %v1111, %v1111
    %v1120 = vmul.f32 %v1116, %v1116
    %v1121 = vmul.f32 %v1111, %v1119
    %v1122 = vmul.f32 %v1116, %v1120
    %v1123 = vmul.f32 %v1121, 0.044715
    %v1124 = vmul.f32 %v1122, 0.044715
    %v1125 = vadd.f32 %v1111, %v1123
    %v1126 = vadd.f32 %v1116, %v1124
    %v1127 = vmul.f32 %v1125, 0.7978846
    %v1128 = vmul.f32 %v1126, 0.7978846
    %v1129 = vtanh.pop %v1127
    %v1130 = vtanh.pop %v1128
    %v1131 = vadd.f32 %v1129, 1.0
    %v1132 = vadd.f32 %v1130, 1.0
    %v1133 = vmul.f32 %v1131, 0.5
    %v1134 = vmul.f32 %v1132, 0.5
    %v1135 = vmul.f32 %v1111, %v1133
    %v1136 = vmul.f32 %v1116, %v1134
    %v1137 = vld [vmem:[%s12] sm:$0xff]
    %v1138 = vld [vmem:[%s12 + $0x8] sm:$0xff]
    %v1139 = vld [vmem:[%s12 + $0x10] sm:$0xff]
    %v1140 = vld [vmem:[%s12 + $0x18] sm:$0xff]
    %v1141 = vld [vmem:[%s12 + $0x20] sm:$0xff]
    %v1142 = vld [vmem:[%s12 + $0x28] sm:$0xff]
    %v1143 = vld [vmem:[%s12 + $0x30] sm:$0xff]
    %v1144 = vld [vmem:[%s12 + $0x38] sm:$0xff]
    %v1145 = vld [vmem:[%s13] sm:$0x1]
    %v1147 = vlaneseq
    %v1148 = vshrl.u32 %v1147, 7
    %v1149 = vsub.s32 0, %v1148
    %v1150 = vrot.slane %v1145, %v1149
    %vm1152 = vcmask 523264
    %v1154 = vsel %vm1152, %v1135, 0
    %v1157 = vsel %vm1152, %v1136, 0
    %1159 = vmatprep.subr.mxu0 0.0
    %1160 = vmatpush1.msra.mxu0 %v1137
    %1161 = vmatprep.subr.mxu0 0.0
    %1162 = vmatpush1.msra.mxu0 %v1138
    %1163 = vmatprep.subr.mxu0 0.0
    %1164 = vmatpush1.msra.mxu0 %v1139
    %1165 = vmatprep.subr.mxu0 0.0
    %1166 = vmatpush1.msra.mxu0 %v1140
    %1167 = vmatprep.subr.mxu0 0.0
    %1168 = vmatpush1.msra.mxu0 %v1141
    %1169 = vmatprep.subr.mxu0 0.0
    %1170 = vmatpush1.msra.mxu0 %v1142
    %1171 = vmatprep.subr.mxu0 0.0
    %1172 = vmatpush1.msra.mxu0 %v1143
    %1173 = vmatprep.subr.mxu0 0.0
    %1174 = vmatpush1.msra.mxu0 %v1144
    %1175 = vmatprep.subr.mxu0 0.0
    %1176 = vmatpush1.msra.mxu0 0.0
    %1177 = vmatprep.subr.mxu0 0.0
    %1178 = vmatpush1.msra.mxu0 0.0
    %1179 = vmatprep.subr.mxu0 0.0
    %1180 = vmatpush1.msra.mxu0 0.0
    %1181 = vmatprep.subr.mxu0 0.0
    %1182 = vmatpush1.msra.mxu0 0.0
    %1183 = vmatprep.subr.mxu0 0.0
    %1184 = vmatpush1.msra.mxu0 0.0
    %1185 = vmatprep.subr.mxu0 0.0
    %1186 = vmatpush1.msra.mxu0 0.0
    %1187 = vmatprep.subr.mxu0 0.0
    %1188 = vmatpush1.msra.mxu0 0.0
    %1189 = vmatprep.subr.mxu0 0.0
    %1190 = vmatpush1.msra.mxu0 0.0
    %1191 = vmatprep.subr.mxu0 0.0
    %1192 = vmatpush1.msra.mxu0 0.0
    %1193 = vmatprep.subr.mxu0 0.0
    %1194 = vmatpush1.msra.mxu0 0.0
    %1195 = vmatprep.subr.mxu0 0.0
    %1196 = vmatpush1.msra.mxu0 0.0
    %1197 = vmatprep.subr.mxu0 0.0
    %1198 = vmatpush1.msra.mxu0 0.0
    %1199 = vmatprep.subr.mxu0 0.0
    %1200 = vmatpush1.msra.mxu0 0.0
    %1201 = vmatprep.subr.mxu0 0.0
    %1202 = vmatpush1.msra.mxu0 0.0
    %1203 = vmatprep.subr.mxu0 0.0
    %1204 = vmatpush1.msra.mxu0 0.0
    %1205 = vmatprep.subr.mxu0 0.0
    %1206 = vmatpush1.msra.mxu0 0.0
    %1207 = vmatprep.subr.mxu0 0.0
    %1208 = vmatpush1.msra.mxu0 0.0
    %1209 = vmatprep.subr.mxu0 0.0
    %1210 = vmatpush1.msra.mxu0 0.0
    %1211 = vmatprep.subr.mxu0 0.0
    %1212 = vmatpush1.msra.mxu0 0.0
    %1213 = vmatprep.subr.mxu0 0.0
    %1214 = vmatpush1.msra.mxu0 0.0
    %1215 = vmatprep.subr.mxu0 0.0
    %1216 = vmatpush1.msra.mxu0 0.0
    %1217 = vmatprep.subr.mxu0 0.0
    %1218 = vmatpush1.msra.mxu0 0.0
    %1219 = vmatprep.subr.mxu0 0.0
    %1220 = vmatpush1.msra.mxu0 0.0
    %1221 = vmatprep.subr.mxu0 0.0
    %1222 = vmatpush1.msra.mxu0 0.0
    %1223 = vmatprep.mubr.f32.mxu0 0.0
    %1224 = vmatmul.mubr.f32.gmra.mrb[0].mxu0 %v1154
    %v1225 = vpop.f32.mrb[0].mxu0
    %v1226 = vadd.f32 %v1150, %v1225
    %v1227 = vpop.f32.mrb[0].mxu0
    %1228 = vmatprep.mubr.f32.mxu0 0.0
    %1229 = vmatmul.mubr.f32.gmra.mrb[0].mxu0 %v1157
    %v1230 = vpop.f32.mrb[0].mxu0
    %v1231 = vadd.f32 %v1150, %v1230
    %v1232 = vpop.f32.mrb[0].mxu0
    %1233 = vdwg.mxu0
    %v1234 = vadd.f32 %v1025, %v1226
    %v1235 = vadd.f32 %v1026, %v1231
    %v1236 = vld [vmem:[%s14] sm:$0x1]
    %v1237 = vld [vmem:[%s15] sm:$0x1]
    %v1238 = vsel %vm65, %v1234, 0.0
    %1239 = vadd.xlane.f32.xlu0 %v1238
    %v1240 = vpop.xlane.xlu0 %1239
    %v1241 = vsel %vm65, %v1235, 0.0
    %1242 = vadd.xlane.f32.xlu0 %v1241
    %v1243 = vpop.xlane.xlu0 %1242
    %v1244 = vmul.f32 %v1240, %v72
    %v1245 = vmul.f32 %v1243, %v72
    %v1246 = vsub.f32 %v1234, %v1244
    %v1247 = vsub.f32 %v1235, %v1245
    %v1248 = vmul.f32 %v1246, %v1246
    %v1249 = vmul.f32 %v1247, %v1247
    %v1250 = vsel %vm65, %v1248, 0.0
    %1251 = vadd.xlane.f32.xlu0 %v1250
    %v1252 = vpop.xlane.xlu0 %1251
    %v1253 = vsel %vm65, %v1249, 0.0
    %1254 = vadd.xlane.f32.xlu0 %v1253
    %v1255 = vpop.xlane.xlu0 %1254
    %v1256 = vmul.f32 %v1252, %v72
    %v1257 = vmul.f32 %v1255, %v72
    %v1258 = vadd.f32 %v1256, 1e-12
    %v1259 = vadd.f32 %v1257, 1e-12
    %v1260 = vrsqrt.pop %v1258
    %v1261 = vrsqrt.pop %v1259
    %v1262 = vmul.f32 %v1246, %v1260
    %v1263 = vmul.f32 %v1247, %v1261
    %v1265 = vlaneseq
    %v1266 = vshrl.u32 %v1265, 7
    %v1267 = vsub.s32 0, %v1266
    %v1268 = vrot.slane %v1236, %v1267
    %v1270 = vmul.f32 %v1262, %v1268
    %v1271 = vmul.f32 %v1263, %v1268
    %v1273 = vlaneseq
    %v1274 = vshrl.u32 %v1273, 7
    %v1275 = vsub.s32 0, %v1274
    %v1276 = vrot.slane %v1237, %v1275
    %v1278 = vadd.f32 %v1270, %v1276
    %v1279 = vadd.f32 %v1271, %v1276
    %s1280 = scalar_lea.vmem %s4, 32
    %v1281 = vld [vmem:[%s1280] sm:$0xff]
    %v1282 = vld [vmem:[%s1280 + $0x8] sm:$0xff]
    %v1283 = vld [vmem:[%s1280 + $0x10] sm:$0xff]
    %v1284 = vld [vmem:[%s1280 + $0x18] sm:$0xff]
    %s1285 = scalar_lea.vmem %s5, 1
    %v1286 = vld [vmem:[%s1285] sm:$0x1]
    %v1288 = vlaneseq
    %v1289 = vshrl.u32 %v1288, 7
    %v1290 = vsub.s32 0, %v1289
    %v1291 = vrot.slane %v1286, %v1290
    %v1294 = vsel %vm65, %v1278, 0
    %v1297 = vsel %vm65, %v1279, 0
    %1299 = vmatprep.subr.mxu0 0.0
    %1300 = vmatpush1.msra.mxu0 %v1281
    %1301 = vmatprep.subr.mxu0 0.0
    %1302 = vmatpush1.msra.mxu0 %v1282
    %1303 = vmatprep.subr.mxu0 0.0
    %1304 = vmatpush1.msra.mxu0 %v1283
    %1305 = vmatprep.subr.mxu0 0.0
    %1306 = vmatpush1.msra.mxu0 %v1284
    %1307 = vmatprep.subr.mxu0 0.0
    %1308 = vmatpush1.msra.mxu0 0.0
    %1309 = vmatprep.subr.mxu0 0.0
    %1310 = vmatpush1.msra.mxu0 0.0
    %1311 = vmatprep.subr.mxu0 0.0
    %1312 = vmatpush1.msra.mxu0 0.0
    %1313 = vmatprep.subr.mxu0 0.0
    %1314 = vmatpush1.msra.mxu0 0.0
    %1315 = vmatprep.subr.mxu0 0.0
    %1316 = vmatpush1.msra.mxu0 0.0
    %1317 = vmatprep.subr.mxu0 0.0
    %1318 = vmatpush1.msra.mxu0 0.0
    %1319 = vmatprep.subr.mxu0 0.0
    %1320 = vmatpush1.msra.mxu0 0.0
    %1321 = vmatprep.subr.mxu0 0.0
    %1322 = vmatpush1.msra.mxu0 0.0
    %1323 = vmatprep.subr.mxu0 0.0
    %1324 = vmatpush1.msra.mxu0 0.0
    %1325 = vmatprep.subr.mxu0 0.0
    %1326 = vmatpush1.msra.mxu0 0.0
    %1327 = vmatprep.subr.mxu0 0.0
    %1328 = vmatpush1.msra.mxu0 0.0
    %1329 = vmatprep.subr.mxu0 0.0
    %1330 = vmatpush1.msra.mxu0 0.0
    %1331 = vmatprep.subr.mxu0 0.0
    %1332 = vmatpush1.msra.mxu0 0.0
    %1333 = vmatprep.subr.mxu0 0.0
    %1334 = vmatpush1.msra.mxu0 0.0
    %1335 = vmatprep.subr.mxu0 0.0
    %1336 = vmatpush1.msra.mxu0 0.0
    %1337 = vmatprep.subr.mxu0 0.0
    %1338 = vmatpush1.msra.mxu0 0.0
    %1339 = vmatprep.subr.mxu0 0.0
    %1340 = vmatpush1.msra.mxu0 0.0
    %1341 = vmatprep.subr.mxu0 0.0
    %1342 = vmatpush1.msra.mxu0 0.0
    %1343 = vmatprep.subr.mxu0 0.0
    %1344 = vmatpush1.msra.mxu0 0.0
    %1345 = vmatprep.subr.mxu0 0.0
    %1346 = vmatpush1.msra.mxu0 0.0
    %1347 = vmatprep.subr.mxu0 0.0
    %1348 = vmatpush1.msra.mxu0 0.0
    %1349 = vmatprep.subr.mxu0 0.0
    %1350 = vmatpush1.msra.mxu0 0.0
    %1351 = vmatprep.subr.mxu0 0.0
    %1352 = vmatpush1.msra.mxu0 0.0
    %1353 = vmatprep.subr.mxu0 0.0
    %1354 = vmatpush1.msra.mxu0 0.0
    %1355 = vmatprep.subr.mxu0 0.0
    %1356 = vmatpush1.msra.mxu0 0.0
    %1357 = vmatprep.subr.mxu0 0.0
    %1358 = vmatpush1.msra.mxu0 0.0
    %1359 = vmatprep.subr.mxu0 0.0
    %1360 = vmatpush1.msra.mxu0 0.0
    %1361 = vmatprep.subr.mxu0 0.0
    %1362 = vmatpush1.msra.mxu0 0.0
    %1363 = vmatprep.mubr.f32.mxu0 0.0
    %1364 = vmatmul.mubr.f32.gmra.mrb[0].mxu0 %v1294
    %v1365 = vpop.f32.mrb[0].mxu0
    %v1366 = vadd.f32 %v1291, %v1365
    %v1367 = vpop.f32.mrb[0].mxu0
    %1368 = vmatprep.mubr.f32.mxu0 0.0
    %1369 = vmatmul.mubr.f32.gmra.mrb[0].mxu0 %v1297
    %v1370 = vpop.f32.mrb[0].mxu0
    %v1371 = vadd.f32 %v1291, %v1370
    %v1372 = vpop.f32.mrb[0].mxu0
    %1373 = vdwg.mxu0
    %1375 = vrot.lane.b32.xlu0 %v1366, 96
    %v1376 = vpop.permute.xlu0 %1375
    %v1377 = vsel %vm206, %v1366, 0
    %v1379 = vsel %vm206, %v1376, 0
    %1381 = vmatprep.subr.mxu0 0.0
    %1382 = vmatpush1.xpose.msra.mxu0 %v1379
    %1383 = vmatprep.subr.mxu0 0.0
    %1384 = vmatpush1.xpose.msra.mxu0 0.0
    %1385 = vmatprep.subr.mxu0 0.0
    %1386 = vmatpush1.xpose.msra.mxu0 0.0
    %1387 = vmatprep.subr.mxu0 0.0
    %1388 = vmatpush1.xpose.msra.mxu0 0.0
    %1389 = vmatprep.subr.mxu0 0.0
    %1390 = vmatpush1.xpose.msra.mxu0 0.0
    %1391 = vmatprep.subr.mxu0 0.0
    %1392 = vmatpush1.xpose.msra.mxu0 0.0
    %1393 = vmatprep.subr.mxu0 0.0
    %1394 = vmatpush1.xpose.msra.mxu0 0.0
    %1395 = vmatprep.subr.mxu0 0.0
    %1396 = vmatpush1.xpose.msra.mxu0 0.0
    %1397 = vmatprep.subr.mxu0 0.0
    %1398 = vmatpush1.xpose.msra.mxu0 0.0
    %1399 = vmatprep.subr.mxu0 0.0
    %1400 = vmatpush1.xpose.msra.mxu0 0.0
    %1401 = vmatprep.subr.mxu0 0.0
    %1402 = vmatpush1.xpose.msra.mxu0 0.0
    %1403 = vmatprep.subr.mxu0 0.0
    %1404 = vmatpush1.xpose.msra.mxu0 0.0
    %1405 = vmatprep.subr.mxu0 0.0
    %1406 = vmatpush1.xpose.msra.mxu0 0.0
    %1407 = vmatprep.subr.mxu0 0.0
    %1408 = vmatpush1.xpose.msra.mxu0 0.0
    %1409 = vmatprep.subr.mxu0 0.0
    %1410 = vmatpush1.xpose.msra.mxu0 0.0
    %1411 = vmatprep.subr.mxu0 0.0
    %1412 = vmatpush1.xpose.msra.mxu0 0.0
    %1413 = vmatprep.subr.mxu0 0.0
    %1414 = vmatpush1.xpose.msra.mxu0 0.0
    %1415 = vmatprep.subr.mxu0 0.0
    %1416 = vmatpush1.xpose.msra.mxu0 0.0
    %1417 = vmatprep.subr.mxu0 0.0
    %1418 = vmatpush1.xpose.msra.mxu0 0.0
    %1419 = vmatprep.subr.mxu0 0.0
    %1420 = vmatpush1.xpose.msra.mxu0 0.0
    %1421 = vmatprep.subr.mxu0 0.0
    %1422 = vmatpush1.xpose.msra.mxu0 0.0
    %1423 = vmatprep.subr.mxu0 0.0
    %1424 = vmatpush1.xpose.msra.mxu0 0.0
    %1425 = vmatprep.subr.mxu0 0.0
    %1426 = vmatpush1.xpose.msra.mxu0 0.0
    %1427 = vmatprep.subr.mxu0 0.0
    %1428 = vmatpush1.xpose.msra.mxu0 0.0
    %1429 = vmatprep.subr.mxu0 0.0
    %1430 = vmatpush1.xpose.msra.mxu0 0.0
    %1431 = vmatprep.subr.mxu0 0.0
    %1432 = vmatpush1.xpose.msra.mxu0 0.0
    %1433 = vmatprep.subr.mxu0 0.0
    %1434 = vmatpush1.xpose.msra.mxu0 0.0
    %1435 = vmatprep.subr.mxu0 0.0
    %1436 = vmatpush1.xpose.msra.mxu0 0.0
    %1437 = vmatprep.subr.mxu0 0.0
    %1438 = vmatpush1.xpose.msra.mxu0 0.0
    %1439 = vmatprep.subr.mxu0 0.0
    %1440 = vmatpush1.xpose.msra.mxu0 0.0
    %1441 = vmatprep.subr.mxu0 0.0
    %1442 = vmatpush1.xpose.msra.mxu0 0.0
    %1443 = vmatprep.subr.mxu0 0.0
    %1444 = vmatpush1.xpose.msra.mxu0 0.0
    %1445 = vmatprep.mubr.f32.mxu0 0.0
    %1446 = vmatmul.mubr.f32.gmra.mrb[0].mxu0 %v1377
    %v1447 = vpop.f32.mrb[0].mxu0
    %v1448 = vadd.f32 0.0, %v1447
    %v1449 = vpop.f32.mrb[0].mxu0
    %1450 = vdwg.mxu0
    %v1451 = vmul.f32 %v1448, 0.25
    %v1452 = vadd.f32 %v1451, %v285
    %v1453 = vsel %vm287, %v1452, -inf
    %1454 = vmax.xlane.f32.xlu0 %v1453
    %v1455 = vpop.xlane.xlu0 %1454
    %v1456 = vsub.f32 %v1452, %v1455
    %v1457 = vmul.f32 %v1456, 1.442695
    %v1458 = vpow.pop %v1457
    %v1459 = vsel %vm287, %v1458, 0.0
    %1460 = vadd.xlane.f32.xlu0 %v1459
    %v1461 = vpop.xlane.xlu0 %1460
    %v1462 = vrcp.pop %v1461
    %v1463 = vmul.f32 %v1458, %v1462
    %1464 = vrot.lane.b32.xlu0 %v1366, 64
    %v1465 = vpop.permute.xlu0 %1464
    %v1468 = vsel %vm287, %v1463, 0
    %1470 = vmatprep.subr.mxu0 0.0
    %1471 = vmatpush1.msra.mxu0 %v1465
    %1472 = vmatprep.subr.mxu0 0.0
    %1473 = vmatpush1.msra.mxu0 0.0
    %1474 = vmatprep.subr.mxu0 0.0
    %1475 = vmatpush1.msra.mxu0 0.0
    %1476 = vmatprep.subr.mxu0 0.0
    %1477 = vmatpush1.msra.mxu0 0.0
    %1478 = vmatprep.subr.mxu0 0.0
    %1479 = vmatpush1.msra.mxu0 0.0
    %1480 = vmatprep.subr.mxu0 0.0
    %1481 = vmatpush1.msra.mxu0 0.0
    %1482 = vmatprep.subr.mxu0 0.0
    %1483 = vmatpush1.msra.mxu0 0.0
    %1484 = vmatprep.subr.mxu0 0.0
    %1485 = vmatpush1.msra.mxu0 0.0
    %1486 = vmatprep.subr.mxu0 0.0
    %1487 = vmatpush1.msra.mxu0 0.0
    %1488 = vmatprep.subr.mxu0 0.0
    %1489 = vmatpush1.msra.mxu0 0.0
    %1490 = vmatprep.subr.mxu0 0.0
    %1491 = vmatpush1.msra.mxu0 0.0
    %1492 = vmatprep.subr.mxu0 0.0
    %1493 = vmatpush1.msra.mxu0 0.0
    %1494 = vmatprep.subr.mxu0 0.0
    %1495 = vmatpush1.msra.mxu0 0.0
    %1496 = vmatprep.subr.mxu0 0.0
    %1497 = vmatpush1.msra.mxu0 0.0
    %1498 = vmatprep.subr.mxu0 0.0
    %1499 = vmatpush1.msra.mxu0 0.0
    %1500 = vmatprep.subr.mxu0 0.0
    %1501 = vmatpush1.msra.mxu0 0.0
    %1502 = vmatprep.subr.mxu0 0.0
    %1503 = vmatpush1.msra.mxu0 0.0
    %1504 = vmatprep.subr.mxu0 0.0
    %1505 = vmatpush1.msra.mxu0 0.0
    %1506 = vmatprep.subr.mxu0 0.0
    %1507 = vmatpush1.msra.mxu0 0.0
    %1508 = vmatprep.subr.mxu0 0.0
    %1509 = vmatpush1.msra.mxu0 0.0
    %1510 = vmatprep.subr.mxu0 0.0
    %1511 = vmatpush1.msra.mxu0 0.0
    %1512 = vmatprep.subr.mxu0 0.0
    %1513 = vmatpush1.msra.mxu0 0.0
    %1514 = vmatprep.subr.mxu0 0.0
    %1515 = vmatpush1.msra.mxu0 0.0
    %1516 = vmatprep.subr.mxu0 0.0
    %1517 = vmatpush1.msra.mxu0 0.0
    %1518 = vmatprep.subr.mxu0 0.0
    %1519 = vmatpush1.msra.mxu0 0.0
    %1520 = vmatprep.subr.mxu0 0.0
    %1521 = vmatpush1.msra.mxu0 0.0
    %1522 = vmatprep.subr.mxu0 0.0
    %1523 = vmatpush1.msra.mxu0 0.0
    %1524 = vmatprep.subr.mxu0 0.0
    %1525 = vmatpush1.msra.mxu0 0.0
    %1526 = vmatprep.subr.mxu0 0.0
    %1527 = vmatpush1.msra.mxu0 0.0
    %1528 = vmatprep.subr.mxu0 0.0
    %1529 = vmatpush1.msra.mxu0 0.0
    %1530 = vmatprep.subr.mxu0 0.0
    %1531 = vmatpush1.msra.mxu0 0.0
    %1532 = vmatprep.subr.mxu0 0.0
    %1533 = vmatpush1.msra.mxu0 0.0
    %1534 = vmatprep.mubr.f32.mxu0 0.0
    %1535 = vmatmul.mubr.f32.gmra.mrb[0].mxu0 %v1468
    %v1536 = vpop.f32.mrb[0].mxu0
    %v1537 = vadd.f32 0.0, %v1536
    %v1538 = vpop.f32.mrb[0].mxu0
    %1539 = vdwg.mxu0
    %1540 = vrot.lane.b32.xlu0 %v1366, 112
    %v1541 = vpop.permute.xlu0 %1540
    %1542 = vrot.lane.b32.xlu0 %v1366, 80
    %v1543 = vpop.permute.xlu0 %1542
    %v1544 = vsel %vm206, %v1541, 0
    %v1546 = vsel %vm206, %v1543, 0
    %1548 = vmatprep.subr.mxu0 0.0
    %1549 = vmatpush1.xpose.msra.mxu0 %v1546
    %1550 = vmatprep.subr.mxu0 0.0
    %1551 = vmatpush1.xpose.msra.mxu0 0.0
    %1552 = vmatprep.subr.mxu0 0.0
    %1553 = vmatpush1.xpose.msra.mxu0 0.0
    %1554 = vmatprep.subr.mxu0 0.0
    %1555 = vmatpush1.xpose.msra.mxu0 0.0
    %1556 = vmatprep.subr.mxu0 0.0
    %1557 = vmatpush1.xpose.msra.mxu0 0.0
    %1558 = vmatprep.subr.mxu0 0.0
    %1559 = vmatpush1.xpose.msra.mxu0 0.0
    %1560 = vmatprep.subr.mxu0 0.0
    %1561 = vmatpush1.xpose.msra.mxu0 0.0
    %1562 = vmatprep.subr.mxu0 0.0
    %1563 = vmatpush1.xpose.msra.mxu0 0.0
    %1564 = vmatprep.subr.mxu0 0.0
    %1565 = vmatpush1.xpose.msra.mxu0 0.0
    %1566 = vmatprep.subr.mxu0 0.0
    %1567 = vmatpush1.xpose.msra.mxu0 0.0
    %1568 = vmatprep.subr.mxu0 0.0
    %1569 = vmatpush1.xpose.msra.mxu0 0.0
    %1570 = vmatprep.subr.mxu0 0.0
    %1571 = vmatpush1.xpose.msra.mxu0 0.0
    %1572 = vmatprep.subr.mxu0 0.0
    %1573 = vmatpush1.xpose.msra.mxu0 0.0
    %1574 = vmatprep.subr.mxu0 0.0
    %1575 = vmatpush1.xpose.msra.mxu0 0.0
    %1576 = vmatprep.subr.mxu0 0.0
    %1577 = vmatpush1.xpose.msra.mxu0 0.0
    %1578 = vmatprep.subr.mxu0 0.0
    %1579 = vmatpush1.xpose.msra.mxu0 0.0
    %1580 = vmatprep.subr.mxu0 0.0
    %1581 = vmatpush1.xpose.msra.mxu0 0.0
    %1582 = vmatprep.subr.mxu0 0.0
    %1583 = vmatpush1.xpose.msra.mxu0 0.0
    %1584 = vmatprep.subr.mxu0 0.0
    %1585 = vmatpush1.xpose.msra.mxu0 0.0
    %1586 = vmatprep.subr.mxu0 0.0
    %1587 = vmatpush1.xpose.msra.mxu0 0.0
    %1588 = vmatprep.subr.mxu0 0.0
    %1589 = vmatpush1.xpose.msra.mxu0 0.0
    %1590 = vmatprep.subr.mxu0 0.0
    %1591 = vmatpush1.xpose.msra.mxu0 0.0
    %1592 = vmatprep.subr.mxu0 0.0
    %1593 = vmatpush1.xpose.msra.mxu0 0.0
    %1594 = vmatprep.subr.mxu0 0.0
    %1595 = vmatpush1.xpose.msra.mxu0 0.0
    %1596 = vmatprep.subr.mxu0 0.0
    %1597 = vmatpush1.xpose.msra.mxu0 0.0
    %1598 = vmatprep.subr.mxu0 0.0
    %1599 = vmatpush1.xpose.msra.mxu0 0.0
    %1600 = vmatprep.subr.mxu0 0.0
    %1601 = vmatpush1.xpose.msra.mxu0 0.0
    %1602 = vmatprep.subr.mxu0 0.0
    %1603 = vmatpush1.xpose.msra.mxu0 0.0
    %1604 = vmatprep.subr.mxu0 0.0
    %1605 = vmatpush1.xpose.msra.mxu0 0.0
    %1606 = vmatprep.subr.mxu0 0.0
    %1607 = vmatpush1.xpose.msra.mxu0 0.0
    %1608 = vmatprep.subr.mxu0 0.0
    %1609 = vmatpush1.xpose.msra.mxu0 0.0
    %1610 = vmatprep.subr.mxu0 0.0
    %1611 = vmatpush1.xpose.msra.mxu0 0.0
    %1612 = vmatprep.mubr.f32.mxu0 0.0
    %1613 = vmatmul.mubr.f32.gmra.mrb[0].mxu0 %v1544
    %v1614 = vpop.f32.mrb[0].mxu0
    %v1615 = vadd.f32 0.0, %v1614
    %v1616 = vpop.f32.mrb[0].mxu0
    %1617 = vdwg.mxu0
    %v1618 = vmul.f32 %v1615, 0.25
    %v1619 = vadd.f32 %v1618, %v285
    %v1620 = vsel %vm287, %v1619, -inf
    %1621 = vmax.xlane.f32.xlu0 %v1620
    %v1622 = vpop.xlane.xlu0 %1621
    %v1623 = vsub.f32 %v1619, %v1622
    %v1624 = vmul.f32 %v1623, 1.442695
    %v1625 = vpow.pop %v1624
    %v1626 = vsel %vm287, %v1625, 0.0
    %1627 = vadd.xlane.f32.xlu0 %v1626
    %v1628 = vpop.xlane.xlu0 %1627
    %v1629 = vrcp.pop %v1628
    %v1630 = vmul.f32 %v1625, %v1629
    %1631 = vrot.lane.b32.xlu0 %v1366, 48
    %v1632 = vpop.permute.xlu0 %1631
    %v1635 = vsel %vm287, %v1630, 0
    %1637 = vmatprep.subr.mxu0 0.0
    %1638 = vmatpush1.msra.mxu0 %v1632
    %1639 = vmatprep.subr.mxu0 0.0
    %1640 = vmatpush1.msra.mxu0 0.0
    %1641 = vmatprep.subr.mxu0 0.0
    %1642 = vmatpush1.msra.mxu0 0.0
    %1643 = vmatprep.subr.mxu0 0.0
    %1644 = vmatpush1.msra.mxu0 0.0
    %1645 = vmatprep.subr.mxu0 0.0
    %1646 = vmatpush1.msra.mxu0 0.0
    %1647 = vmatprep.subr.mxu0 0.0
    %1648 = vmatpush1.msra.mxu0 0.0
    %1649 = vmatprep.subr.mxu0 0.0
    %1650 = vmatpush1.msra.mxu0 0.0
    %1651 = vmatprep.subr.mxu0 0.0
    %1652 = vmatpush1.msra.mxu0 0.0
    %1653 = vmatprep.subr.mxu0 0.0
    %1654 = vmatpush1.msra.mxu0 0.0
    %1655 = vmatprep.subr.mxu0 0.0
    %1656 = vmatpush1.msra.mxu0 0.0
    %1657 = vmatprep.subr.mxu0 0.0
    %1658 = vmatpush1.msra.mxu0 0.0
    %1659 = vmatprep.subr.mxu0 0.0
    %1660 = vmatpush1.msra.mxu0 0.0
    %1661 = vmatprep.subr.mxu0 0.0
    %1662 = vmatpush1.msra.mxu0 0.0
    %1663 = vmatprep.subr.mxu0 0.0
    %1664 = vmatpush1.msra.mxu0 0.0
    %1665 = vmatprep.subr.mxu0 0.0
    %1666 = vmatpush1.msra.mxu0 0.0
    %1667 = vmatprep.subr.mxu0 0.0
    %1668 = vmatpush1.msra.mxu0 0.0
    %1669 = vmatprep.subr.mxu0 0.0
    %1670 = vmatpush1.msra.mxu0 0.0
    %1671 = vmatprep.subr.mxu0 0.0
    %1672 = vmatpush1.msra.mxu0 0.0
    %1673 = vmatprep.subr.mxu0 0.0
    %1674 = vmatpush1.msra.mxu0 0.0
    %1675 = vmatprep.subr.mxu0 0.0
    %1676 = vmatpush1.msra.mxu0 0.0
    %1677 = vmatprep.subr.mxu0 0.0
    %1678 = vmatpush1.msra.mxu0 0.0
    %1679 = vmatprep.subr.mxu0 0.0
    %1680 = vmatpush1.msra.mxu0 0.0
    %1681 = vmatprep.subr.mxu0 0.0
    %1682 = vmatpush1.msra.mxu0 0.0
    %1683 = vmatprep.subr.mxu0 0.0
    %1684 = vmatpush1.msra.mxu0 0.0
    %1685 = vmatprep.subr.mxu0 0.0
    %1686 = vmatpush1.msra.mxu0 0.0
    %1687 = vmatprep.subr.mxu0 0.0
    %1688 = vmatpush1.msra.mxu0 0.0
    %1689 = vmatprep.subr.mxu0 0.0
    %1690 = vmatpush1.msra.mxu0 0.0
    %1691 = vmatprep.subr.mxu0 0.0
    %1692 = vmatpush1.msra.mxu0 0.0
    %1693 = vmatprep.subr.mxu0 0.0
    %1694 = vmatpush1.msra.mxu0 0.0
    %1695 = vmatprep.subr.mxu0 0.0
    %1696 = vmatpush1.msra.mxu0 0.0
    %1697 = vmatprep.subr.mxu0 0.0
    %1698 = vmatpush1.msra.mxu0 0.0
    %1699 = vmatprep.subr.mxu0 0.0
    %1700 = vmatpush1.msra.mxu0 0.0
    %1701 = vmatprep.mubr.f32.mxu0 0.0
    %1702 = vmatmul.mubr.f32.gmra.mrb[0].mxu0 %v1635
    %v1703 = vpop.f32.mrb[0].mxu0
    %v1704 = vadd.f32 0.0, %v1703
    %v1705 = vpop.f32.mrb[0].mxu0
    %1706 = vdwg.mxu0
    %1708 = vrot.lane.b32.xlu0 %v1704, 16
    %v1709 = vpop.permute.xlu0 %1708
    %v1711 = vsel %vm206, %v1537, %v1709
    %1713 = vrot.lane.b32.xlu0 %v1371, 96
    %v1714 = vpop.permute.xlu0 %1713
    %v1715 = vsel %vm206, %v1371, 0
    %v1717 = vsel %vm206, %v1714, 0
    %1719 = vmatprep.subr.mxu0 0.0
    %1720 = vmatpush1.xpose.msra.mxu0 %v1717
    %1721 = vmatprep.subr.mxu0 0.0
    %1722 = vmatpush1.xpose.msra.mxu0 0.0
    %1723 = vmatprep.subr.mxu0 0.0
    %1724 = vmatpush1.xpose.msra.mxu0 0.0
    %1725 = vmatprep.subr.mxu0 0.0
    %1726 = vmatpush1.xpose.msra.mxu0 0.0
    %1727 = vmatprep.subr.mxu0 0.0
    %1728 = vmatpush1.xpose.msra.mxu0 0.0
    %1729 = vmatprep.subr.mxu0 0.0
    %1730 = vmatpush1.xpose.msra.mxu0 0.0
    %1731 = vmatprep.subr.mxu0 0.0
    %1732 = vmatpush1.xpose.msra.mxu0 0.0
    %1733 = vmatprep.subr.mxu0 0.0
    %1734 = vmatpush1.xpose.msra.mxu0 0.0
    %1735 = vmatprep.subr.mxu0 0.0
    %1736 = vmatpush1.xpose.msra.mxu0 0.0
    %1737 = vmatprep.subr.mxu0 0.0
    %1738 = vmatpush1.xpose.msra.mxu0 0.0
    %1739 = vmatprep.subr.mxu0 0.0
    %1740 = vmatpush1.xpose.msra.mxu0 0.0
    %1741 = vmatprep.subr.mxu0 0.0
    %1742 = vmatpush1.xpose.msra.mxu0 0.0
    %1743 = vmatprep.subr.mxu0 0.0
    %1744 = vmatpush1.xpose.msra.mxu0 0.0
    %1745 = vmatprep.subr.mxu0 0.0
    %1746 = vmatpush1.xpose.msra.mxu0 0.0
    %1747 = vmatprep.subr.mxu0 0.0
    %1748 = vmatpush1.xpose.msra.mxu0 0.0
    %1749 = vmatprep.subr.mxu0 0.0
    %1750 = vmatpush1.xpose.msra.mxu0 0.0
    %1751 = vmatprep.subr.mxu0 0.0
    %1752 = vmatpush1.xpose.msra.mxu0 0.0
    %1753 = vmatprep.subr.mxu0 0.0
    %1754 = vmatpush1.xpose.msra.mxu0 0.0
    %1755 = vmatprep.subr.mxu0 0.0
    %1756 = vmatpush1.xpose.msra.mxu0 0.0
    %1757 = vmatprep.subr.mxu0 0.0
    %1758 = vmatpush1.xpose.msra.mxu0 0.0
    %1759 = vmatprep.subr.mxu0 0.0
    %1760 = vmatpush1.xpose.msra.mxu0 0.0
    %1761 = vmatprep.subr.mxu0 0.0
    %1762 = vmatpush1.xpose.msra.mxu0 0.0
    %1763 = vmatprep.subr.mxu0 0.0
    %1764 = vmatpush1.xpose.msra.mxu0 0.0
    %1765 = vmatprep.subr.mxu0 0.0
    %1766 = vmatpush1.xpose.msra.mxu0 0.0
    %1767 = vmatprep.subr.mxu0 0.0
    %1768 = vmatpush1.xpose.msra.mxu0 0.0
    %1769 = vmatprep.subr.mxu0 0.0
    %1770 = vmatpush1.xpose.msra.mxu0 0.0
    %1771 = vmatprep.subr.mxu0 0.0
    %1772 = vmatpush1.xpose.msra.mxu0 0.0
    %1773 = vmatprep.subr.mxu0 0.0
    %1774 = vmatpush1.xpose.msra.mxu0 0.0
    %1775 = vmatprep.subr.mxu0 0.0
    %1776 = vmatpush1.xpose.msra.mxu0 0.0
    %1777 = vmatprep.subr.mxu0 0.0
    %1778 = vmatpush1.xpose.msra.mxu0 0.0
    %1779 = vmatprep.subr.mxu0 0.0
    %1780 = vmatpush1.xpose.msra.mxu0 0.0
    %1781 = vmatprep.subr.mxu0 0.0
    %1782 = vmatpush1.xpose.msra.mxu0 0.0
    %1783 = vmatprep.mubr.f32.mxu0 0.0
    %1784 = vmatmul.mubr.f32.gmra.mrb[0].mxu0 %v1715
    %v1785 = vpop.f32.mrb[0].mxu0
    %v1786 = vadd.f32 0.0, %v1785
    %v1787 = vpop.f32.mrb[0].mxu0
    %1788 = vdwg.mxu0
    %v1789 = vmul.f32 %v1786, 0.25
    %v1790 = vadd.f32 %v1789, %v628
    %v1791 = vsel %vm287, %v1790, -inf
    %1792 = vmax.xlane.f32.xlu0 %v1791
    %v1793 = vpop.xlane.xlu0 %1792
    %v1794 = vsub.f32 %v1790, %v1793
    %v1795 = vmul.f32 %v1794, 1.442695
    %v1796 = vpow.pop %v1795
    %v1797 = vsel %vm287, %v1796, 0.0
    %1798 = vadd.xlane.f32.xlu0 %v1797
    %v1799 = vpop.xlane.xlu0 %1798
    %v1800 = vrcp.pop %v1799
    %v1801 = vmul.f32 %v1796, %v1800
    %1802 = vrot.lane.b32.xlu0 %v1371, 64
    %v1803 = vpop.permute.xlu0 %1802
    %v1806 = vsel %vm287, %v1801, 0
    %1808 = vmatprep.subr.mxu0 0.0
    %1809 = vmatpush1.msra.mxu0 %v1803
    %1810 = vmatprep.subr.mxu0 0.0
    %1811 = vmatpush1.msra.mxu0 0.0
    %1812 = vmatprep.subr.mxu0 0.0
    %1813 = vmatpush1.msra.mxu0 0.0
    %1814 = vmatprep.subr.mxu0 0.0
    %1815 = vmatpush1.msra.mxu0 0.0
    %1816 = vmatprep.subr.mxu0 0.0
    %1817 = vmatpush1.msra.mxu0 0.0
    %1818 = vmatprep.subr.mxu0 0.0
    %1819 = vmatpush1.msra.mxu0 0.0
    %1820 = vmatprep.subr.mxu0 0.0
    %1821 = vmatpush1.msra.mxu0 0.0
    %1822 = vmatprep.subr.mxu0 0.0
    %1823 = vmatpush1.msra.mxu0 0.0
    %1824 = vmatprep.subr.mxu0 0.0
    %1825 = vmatpush1.msra.mxu0 0.0
    %1826 = vmatprep.subr.mxu0 0.0
    %1827 = vmatpush1.msra.mxu0 0.0
    %1828 = vmatprep.subr.mxu0 0.0
    %1829 = vmatpush1.msra.mxu0 0.0
    %1830 = vmatprep.subr.mxu0 0.0
    %1831 = vmatpush1.msra.mxu0 0.0
    %1832 = vmatprep.subr.mxu0 0.0
    %1833 = vmatpush1.msra.mxu0 0.0
    %1834 = vmatprep.subr.mxu0 0.0
    %1835 = vmatpush1.msra.mxu0 0.0
    %1836 = vmatprep.subr.mxu0 0.0
    %1837 = vmatpush1.msra.mxu0 0.0
    %1838 = vmatprep.subr.mxu0 0.0
    %1839 = vmatpush1.msra.mxu0 0.0
    %1840 = vmatprep.subr.mxu0 0.0
    %1841 = vmatpush1.msra.mxu0 0.0
    %1842 = vmatprep.subr.mxu0 0.0
    %1843 = vmatpush1.msra.mxu0 0.0
    %1844 = vmatprep.subr.mxu0 0.0
    %1845 = vmatpush1.msra.mxu0 0.0
    %1846 = vmatprep.subr.mxu0 0.0
    %1847 = vmatpush1.msra.mxu0 0.0
    %1848 = vmatprep.subr.mxu0 0.0
    %1849 = vmatpush1.msra.mxu0 0.0
    %1850 = vmatprep.subr.mxu0 0.0
    %1851 = vmatpush1.msra.mxu0 0.0
    %1852 = vmatprep.subr.mxu0 0.0
    %1853 = vmatpush1.msra.mxu0 0.0
    %1854 = vmatprep.subr.mxu0 0.0
    %1855 = vmatpush1.msra.mxu0 0.0
    %1856 = vmatprep.subr.mxu0 0.0
    %1857 = vmatpush1.msra.mxu0 0.0
    %1858 = vmatprep.subr.mxu0 0.0
    %1859 = vmatpush1.msra.mxu0 0.0
    %1860 = vmatprep.subr.mxu0 0.0
    %1861 = vmatpush1.msra.mxu0 0.0
    %1862 = vmatprep.subr.mxu0 0.0
    %1863 = vmatpush1.msra.mxu0 0.0
    %1864 = vmatprep.subr.mxu0 0.0
    %1865 = vmatpush1.msra.mxu0 0.0
    %1866 = vmatprep.subr.mxu0 0.0
    %1867 = vmatpush1.msra.mxu0 0.0
    %1868 = vmatprep.subr.mxu0 0.0
    %1869 = vmatpush1.msra.mxu0 0.0
    %1870 = vmatprep.subr.mxu0 0.0
    %1871 = vmatpush1.msra.mxu0 0.0
    %1872 = vmatprep.mubr.f32.mxu0 0.0
    %1873 = vmatmul.mubr.f32.gmra.mrb[0].mxu0 %v1806
    %v1874 = vpop.f32.mrb[0].mxu0
    %v1875 = vadd.f32 0.0, %v1874
    %v1876 = vpop.f32.mrb[0].mxu0
    %1877 = vdwg.mxu0
    %1878 = vrot.lane.b32.xlu0 %v1371, 112
    %v1879 = vpop.permute.xlu0 %1878
    %1880 = vrot.lane.b32.xlu0 %v1371, 80
    %v1881 = vpop.permute.xlu0 %1880
    %v1882 = vsel %vm206, %v1879, 0
    %v1884 = vsel %vm206, %v1881, 0
    %1886 = vmatprep.subr.mxu0 0.0
    %1887 = vmatpush1.xpose.msra.mxu0 %v1884
    %1888 = vmatprep.subr.mxu0 0.0
    %1889 = vmatpush1.xpose.msra.mxu0 0.0
    %1890 = vmatprep.subr.mxu0 0.0
    %1891 = vmatpush1.xpose.msra.mxu0 0.0
    %1892 = vmatprep.subr.mxu0 0.0
    %1893 = vmatpush1.xpose.msra.mxu0 0.0
    %1894 = vmatprep.subr.mxu0 0.0
    %1895 = vmatpush1.xpose.msra.mxu0 0.0
    %1896 = vmatprep.subr.mxu0 0.0
    %1897 = vmatpush1.xpose.msra.mxu0 0.0
    %1898 = vmatprep.subr.mxu0 0.0
    %1899 = vmatpush1.xpose.msra.mxu0 0.0
    %1900 = vmatprep.subr.mxu0 0.0
    %1901 = vmatpush1.xpose.msra.mxu0 0.0
    %1902 = vmatprep.subr.mxu0 0.0
    %1903 = vmatpush1.xpose.msra.mxu0 0.0
    %1904 = vmatprep.subr.mxu0 0.0
    %1905 = vmatpush1.xpose.msra.mxu0 0.0
    %1906 = vmatprep.subr.mxu0 0.0
    %1907 = vmatpush1.xpose.msra.mxu0 0.0
    %1908 = vmatprep.subr.mxu0 0.0
    %1909 = vmatpush1.xpose.msra.mxu0 0.0
    %1910 = vmatprep.subr.mxu0 0.0
    %1911 = vmatpush1.xpose.msra.mxu0 0.0
    %1912 = vmatprep.subr.mxu0 0.0
    %1913 = vmatpush1.xpose.msra.mxu0 0.0
    %1914 = vmatprep.subr.mxu0 0.0
    %1915 = vmatpush1.xpose.msra.mxu0 0.0
    %1916 = vmatprep.subr.mxu0 0.0
    %1917 = vmatpush1.xpose.msra.mxu0 0.0
    %1918 = vmatprep.subr.mxu0 0.0
    %1919 = vmatpush1.xpose.msra.mxu0 0.0
    %1920 = vmatprep.subr.mxu0 0.0
    %1921 = vmatpush1.xpose.msra.mxu0 0.0
    %1922 = vmatprep.subr.mxu0 0.0
    %1923 = vmatpush1.xpose.msra.mxu0 0.0
    %1924 = vmatprep.subr.mxu0 0.0
    %1925 = vmatpush1.xpose.msra.mxu0 0.0
    %1926 = vmatprep.subr.mxu0 0.0
    %1927 = vmatpush1.xpose.msra.mxu0 0.0
    %1928 = vmatprep.subr.mxu0 0.0
    %1929 = vmatpush1.xpose.msra.mxu0 0.0
    %1930 = vmatprep.subr.mxu0 0.0
    %1931 = vmatpush1.xpose.msra.mxu0 0.0
    %1932 = vmatprep.subr.mxu0 0.0
    %1933 = vmatpush1.xpose.msra.mxu0 0.0
    %1934 = vmatprep.subr.mxu0 0.0
    %1935 = vmatpush1.xpose.msra.mxu0 0.0
    %1936 = vmatprep.subr.mxu0 0.0
    %1937 = vmatpush1.xpose.msra.mxu0 0.0
    %1938 = vmatprep.subr.mxu0 0.0
    %1939 = vmatpush1.xpose.msra.mxu0 0.0
    %1940 = vmatprep.subr.mxu0 0.0
    %1941 = vmatpush1.xpose.msra.mxu0 0.0
    %1942 = vmatprep.subr.mxu0 0.0
    %1943 = vmatpush1.xpose.msra.mxu0 0.0
    %1944 = vmatprep.subr.mxu0 0.0
    %1945 = vmatpush1.xpose.msra.mxu0 0.0
    %1946 = vmatprep.subr.mxu0 0.0
    %1947 = vmatpush1.xpose.msra.mxu0 0.0
    %1948 = vmatprep.subr.mxu0 0.0
    %1949 = vmatpush1.xpose.msra.mxu0 0.0
    %1950 = vmatprep.mubr.f32.mxu0 0.0
    %1951 = vmatmul.mubr.f32.gmra.mrb[0].mxu0 %v1882
    %v1952 = vpop.f32.mrb[0].mxu0
    %v1953 = vadd.f32 0.0, %v1952
    %v1954 = vpop.f32.mrb[0].mxu0
    %1955 = vdwg.mxu0
    %v1956 = vmul.f32 %v1953, 0.25
    %v1957 = vadd.f32 %v1956, %v628
    %v1958 = vsel %vm287, %v1957, -inf
    %1959 = vmax.xlane.f32.xlu0 %v1958
    %v1960 = vpop.xlane.xlu0 %1959
    %v1961 = vsub.f32 %v1957, %v1960
    %v1962 = vmul.f32 %v1961, 1.442695
    %v1963 = vpow.pop %v1962
    %v1964 = vsel %vm287, %v1963, 0.0
    %1965 = vadd.xlane.f32.xlu0 %v1964
    %v1966 = vpop.xlane.xlu0 %1965
    %v1967 = vrcp.pop %v1966
    %v1968 = vmul.f32 %v1963, %v1967
    %1969 = vrot.lane.b32.xlu0 %v1371, 48
    %v1970 = vpop.permute.xlu0 %1969
    %v1973 = vsel %vm287, %v1968, 0
    %1975 = vmatprep.subr.mxu0 0.0
    %1976 = vmatpush1.msra.mxu0 %v1970
    %1977 = vmatprep.subr.mxu0 0.0
    %1978 = vmatpush1.msra.mxu0 0.0
    %1979 = vmatprep.subr.mxu0 0.0
    %1980 = vmatpush1.msra.mxu0 0.0
    %1981 = vmatprep.subr.mxu0 0.0
    %1982 = vmatpush1.msra.mxu0 0.0
    %1983 = vmatprep.subr.mxu0 0.0
    %1984 = vmatpush1.msra.mxu0 0.0
    %1985 = vmatprep.subr.mxu0 0.0
    %1986 = vmatpush1.msra.mxu0 0.0
    %1987 = vmatprep.subr.mxu0 0.0
    %1988 = vmatpush1.msra.mxu0 0.0
    %1989 = vmatprep.subr.mxu0 0.0
    %1990 = vmatpush1.msra.mxu0 0.0
    %1991 = vmatprep.subr.mxu0 0.0
    %1992 = vmatpush1.msra.mxu0 0.0
    %1993 = vmatprep.subr.mxu0 0.0
    %1994 = vmatpush1.msra.mxu0 0.0
    %1995 = vmatprep.subr.mxu0 0.0
    %1996 = vmatpush1.msra.mxu0 0.0
    %1997 = vmatprep.subr.mxu0 0.0
    %1998 = vmatpush1.msra.mxu0 0.0
    %1999 = vmatprep.subr.mxu0 0.0
    %2000 = vmatpush1.msra.mxu0 0.0
    %2001 = vmatprep.subr.mxu0 0.0
    %2002 = vmatpush1.msra.mxu0 0.0
    %2003 = vmatprep.subr.mxu0 0.0
    %2004 = vmatpush1.msra.mxu0 0.0
    %2005 = vmatprep.subr.mxu0 0.0
    %2006 = vmatpush1.msra.mxu0 0.0
    %2007 = vmatprep.subr.mxu0 0.0
    %2008 = vmatpush1.msra.mxu0 0.0
    %2009 = vmatprep.subr.mxu0 0.0
    %2010 = vmatpush1.msra.mxu0 0.0
    %2011 = vmatprep.subr.mxu0 0.0
    %2012 = vmatpush1.msra.mxu0 0.0
    %2013 = vmatprep.subr.mxu0 0.0
    %2014 = vmatpush1.msra.mxu0 0.0
    %2015 = vmatprep.subr.mxu0 0.0
    %2016 = vmatpush1.msra.mxu0 0.0
    %2017 = vmatprep.subr.mxu0 0.0
    %2018 = vmatpush1.msra.mxu0 0.0
    %2019 = vmatprep.subr.mxu0 0.0
    %2020 = vmatpush1.msra.mxu0 0.0
    %2021 = vmatprep.subr.mxu0 0.0
    %2022 = vmatpush1.msra.mxu0 0.0
    %2023 = vmatprep.subr.mxu0 0.0
    %2024 = vmatpush1.msra.mxu0 0.0
    %2025 = vmatprep.subr.mxu0 0.0
    %2026 = vmatpush1.msra.mxu0 0.0
    %2027 = vmatprep.subr.mxu0 0.0
    %2028 = vmatpush1.msra.mxu0 0.0
    %2029 = vmatprep.subr.mxu0 0.0
    %2030 = vmatpush1.msra.mxu0 0.0
    %2031 = vmatprep.subr.mxu0 0.0
    %2032 = vmatpush1.msra.mxu0 0.0
    %2033 = vmatprep.subr.mxu0 0.0
    %2034 = vmatpush1.msra.mxu0 0.0
    %2035 = vmatprep.subr.mxu0 0.0
    %2036 = vmatpush1.msra.mxu0 0.0
    %2037 = vmatprep.subr.mxu0 0.0
    %2038 = vmatpush1.msra.mxu0 0.0
    %2039 = vmatprep.mubr.f32.mxu0 0.0
    %2040 = vmatmul.mubr.f32.gmra.mrb[0].mxu0 %v1973
    %v2041 = vpop.f32.mrb[0].mxu0
    %v2042 = vadd.f32 0.0, %v2041
    %v2043 = vpop.f32.mrb[0].mxu0
    %2044 = vdwg.mxu0
    %2046 = vrot.lane.b32.xlu0 %v2042, 16
    %v2047 = vpop.permute.xlu0 %2046
    %v2049 = vsel %vm206, %v1875, %v2047
    %s2050 = scalar_lea.vmem %s6, 32
    %v2051 = vld [vmem:[%s2050] sm:$0xff]
    %v2052 = vld [vmem:[%s2050 + $0x8] sm:$0xff]
    %v2053 = vld [vmem:[%s2050 + $0x10] sm:$0xff]
    %v2054 = vld [vmem:[%s2050 + $0x18] sm:$0xff]
    %s2055 = scalar_lea.vmem %s7, 1
    %v2056 = vld [vmem:[%s2055] sm:$0x1]
    %v2058 = vlaneseq
    %v2059 = vshrl.u32 %v2058, 7
    %v2060 = vsub.s32 0, %v2059
    %v2061 = vrot.slane %v2056, %v2060
    %v2064 = vsel %vm65, %v1711, 0
    %v2067 = vsel %vm65, %v2049, 0
    %2069 = vmatprep.subr.mxu0 0.0
    %2070 = vmatpush1.msra.mxu0 %v2051
    %2071 = vmatprep.subr.mxu0 0.0
    %2072 = vmatpush1.msra.mxu0 %v2052
    %2073 = vmatprep.subr.mxu0 0.0
    %2074 = vmatpush1.msra.mxu0 %v2053
    %2075 = vmatprep.subr.mxu0 0.0
    %2076 = vmatpush1.msra.mxu0 %v2054
    %2077 = vmatprep.subr.mxu0 0.0
    %2078 = vmatpush1.msra.mxu0 0.0
    %2079 = vmatprep.subr.mxu0 0.0
    %2080 = vmatpush1.msra.mxu0 0.0
    %2081 = vmatprep.subr.mxu0 0.0
    %2082 = vmatpush1.msra.mxu0 0.0
    %2083 = vmatprep.subr.mxu0 0.0
    %2084 = vmatpush1.msra.mxu0 0.0
    %2085 = vmatprep.subr.mxu0 0.0
    %2086 = vmatpush1.msra.mxu0 0.0
    %2087 = vmatprep.subr.mxu0 0.0
    %2088 = vmatpush1.msra.mxu0 0.0
    %2089 = vmatprep.subr.mxu0 0.0
    %2090 = vmatpush1.msra.mxu0 0.0
    %2091 = vmatprep.subr.mxu0 0.0
    %2092 = vmatpush1.msra.mxu0 0.0
    %2093 = vmatprep.subr.mxu0 0.0
    %2094 = vmatpush1.msra.mxu0 0.0
    %2095 = vmatprep.subr.mxu0 0.0
    %2096 = vmatpush1.msra.mxu0 0.0
    %2097 = vmatprep.subr.mxu0 0.0
    %2098 = vmatpush1.msra.mxu0 0.0
    %2099 = vmatprep.subr.mxu0 0.0
    %2100 = vmatpush1.msra.mxu0 0.0
    %2101 = vmatprep.subr.mxu0 0.0
    %2102 = vmatpush1.msra.mxu0 0.0
    %2103 = vmatprep.subr.mxu0 0.0
    %2104 = vmatpush1.msra.mxu0 0.0
    %2105 = vmatprep.subr.mxu0 0.0
    %2106 = vmatpush1.msra.mxu0 0.0
    %2107 = vmatprep.subr.mxu0 0.0
    %2108 = vmatpush1.msra.mxu0 0.0
    %2109 = vmatprep.subr.mxu0 0.0
    %2110 = vmatpush1.msra.mxu0 0.0
    %2111 = vmatprep.subr.mxu0 0.0
    %2112 = vmatpush1.msra.mxu0 0.0
    %2113 = vmatprep.subr.mxu0 0.0
    %2114 = vmatpush1.msra.mxu0 0.0
    %2115 = vmatprep.subr.mxu0 0.0
    %2116 = vmatpush1.msra.mxu0 0.0
    %2117 = vmatprep.subr.mxu0 0.0
    %2118 = vmatpush1.msra.mxu0 0.0
    %2119 = vmatprep.subr.mxu0 0.0
    %2120 = vmatpush1.msra.mxu0 0.0
    %2121 = vmatprep.subr.mxu0 0.0
    %2122 = vmatpush1.msra.mxu0 0.0
    %2123 = vmatprep.subr.mxu0 0.0
    %2124 = vmatpush1.msra.mxu0 0.0
    %2125 = vmatprep.subr.mxu0 0.0
    %2126 = vmatpush1.msra.mxu0 0.0
    %2127 = vmatprep.subr.mxu0 0.0
    %2128 = vmatpush1.msra.mxu0 0.0
    %2129 = vmatprep.subr.mxu0 0.0
    %2130 = vmatpush1.msra.mxu0 0.0
    %2131 = vmatprep.subr.mxu0 0.0
    %2132 = vmatpush1.msra.mxu0 0.0
    %2133 = vmatprep.mubr.f32.mxu0 0.0
    %2134 = vmatmul.mubr.f32.gmra.mrb[0].mxu0 %v2064
    %v2135 = vpop.f32.mrb[0].mxu0
    %v2136 = vadd.f32 %v2061, %v2135
    %v2137 = vpop.f32.mrb[0].mxu0
    %2138 = vmatprep.mubr.f32.mxu0 0.0
    %2139 = vmatmul.mubr.f32.gmra.mrb[0].mxu0 %v2067
    %v2140 = vpop.f32.mrb[0].mxu0
    %v2141 = vadd.f32 %v2061, %v2140
    %v2142 = vpop.f32.mrb[0].mxu0
    %2143 = vdwg.mxu0
    %v2144 = vadd.f32 %v1278, %v2136
    %v2145 = vadd.f32 %v1279, %v2141
    %s2146 = scalar_lea.vmem %s8, 1
    %v2147 = vld [vmem:[%s2146] sm:$0x1]
    %s2148 = scalar_lea.vmem %s9, 1
    %v2149 = vld [vmem:[%s2148] sm:$0x1]
    %v2150 = vsel %vm65, %v2144, 0.0
    %2151 = vadd.xlane.f32.xlu0 %v2150
    %v2152 = vpop.xlane.xlu0 %2151
    %v2153 = vsel %vm65, %v2145, 0.0
    %2154 = vadd.xlane.f32.xlu0 %v2153
    %v2155 = vpop.xlane.xlu0 %2154
    %v2156 = vmul.f32 %v2152, %v72
    %v2157 = vmul.f32 %v2155, %v72
    %v2158 = vsub.f32 %v2144, %v2156
    %v2159 = vsub.f32 %v2145, %v2157
    %v2160 = vmul.f32 %v2158, %v2158
    %v2161 = vmul.f32 %v2159, %v2159
    %v2162 = vsel %vm65, %v2160, 0.0
    %2163 = vadd.xlane.f32.xlu0 %v2162
    %v2164 = vpop.xlane.xlu0 %2163
    %v2165 = vsel %vm65, %v2161, 0.0
    %2166 = vadd.xlane.f32.xlu0 %v2165
    %v2167 = vpop.xlane.xlu0 %2166
    %v2168 = vmul.f32 %v2164, %v72
    %v2169 = vmul.f32 %v2167, %v72
    %v2170 = vadd.f32 %v2168, 1e-12
    %v2171 = vadd.f32 %v2169, 1e-12
    %v2172 = vrsqrt.pop %v2170
    %v2173 = vrsqrt.pop %v2171
    %v2174 = vmul.f32 %v2158, %v2172
    %v2175 = vmul.f32 %v2159, %v2173
    %v2177 = vlaneseq
    %v2178 = vshrl.u32 %v2177, 7
    %v2179 = vsub.s32 0, %v2178
    %v2180 = vrot.slane %v2147, %v2179
    %v2182 = vmul.f32 %v2174, %v2180
    %v2183 = vmul.f32 %v2175, %v2180
    %v2185 = vlaneseq
    %v2186 = vshrl.u32 %v2185, 7
    %v2187 = vsub.s32 0, %v2186
    %v2188 = vrot.slane %v2149, %v2187
    %v2190 = vadd.f32 %v2182, %v2188
    %v2191 = vadd.f32 %v2183, %v2188
    %s2192 = scalar_lea.vmem %s10, 32
    %v2193 = vld [vmem:[%s2192] sm:$0xff]
    %v2194 = vld [vmem:[%s2192 + $0x8] sm:$0xff]
    %v2195 = vld [vmem:[%s2192 + $0x10] sm:$0xff]
    %v2196 = vld [vmem:[%s2192 + $0x18] sm:$0xff]
    %s2197 = scalar_lea.vmem %s11, 1
    %v2198 = vld [vmem:[%s2197] sm:$0x1]
    %v2200 = vlaneseq
    %v2201 = vshrl.u32 %v2200, 7
    %v2202 = vsub.s32 0, %v2201
    %v2203 = vrot.slane %v2198, %v2202
    %v2206 = vsel %vm65, %v2190, 0
    %v2209 = vsel %vm65, %v2191, 0
    %2211 = vmatprep.subr.mxu0 0.0
    %2212 = vmatpush1.msra.mxu0 %v2193
    %2213 = vmatprep.subr.mxu0 0.0
    %2214 = vmatpush1.msra.mxu0 %v2194
    %2215 = vmatprep.subr.mxu0 0.0
    %2216 = vmatpush1.msra.mxu0 %v2195
    %2217 = vmatprep.subr.mxu0 0.0
    %2218 = vmatpush1.msra.mxu0 %v2196
    %2219 = vmatprep.subr.mxu0 0.0
    %2220 = vmatpush1.msra.mxu0 0.0
    %2221 = vmatprep.subr.mxu0 0.0
    %2222 = vmatpush1.msra.mxu0 0.0
    %2223 = vmatprep.subr.mxu0 0.0
    %2224 = vmatpush1.msra.mxu0 0.0
    %2225 = vmatprep.subr.mxu0 0.0
    %2226 = vmatpush1.msra.mxu0 0.0
    %2227 = vmatprep.subr.mxu0 0.0
    %2228 = vmatpush1.msra.mxu0 0.0
    %2229 = vmatprep.subr.mxu0 0.0
    %2230 = vmatpush1.msra.mxu0 0.0
    %2231 = vmatprep.subr.mxu0 0.0
    %2232 = vmatpush1.msra.mxu0 0.0
    %2233 = vmatprep.subr.mxu0 0.0
    %2234 = vmatpush1.msra.mxu0 0.0
    %2235 = vmatprep.subr.mxu0 0.0
    %2236 = vmatpush1.msra.mxu0 0.0
    %2237 = vmatprep.subr.mxu0 0.0
    %2238 = vmatpush1.msra.mxu0 0.0
    %2239 = vmatprep.subr.mxu0 0.0
    %2240 = vmatpush1.msra.mxu0 0.0
    %2241 = vmatprep.subr.mxu0 0.0
    %2242 = vmatpush1.msra.mxu0 0.0
    %2243 = vmatprep.subr.mxu0 0.0
    %2244 = vmatpush1.msra.mxu0 0.0
    %2245 = vmatprep.subr.mxu0 0.0
    %2246 = vmatpush1.msra.mxu0 0.0
    %2247 = vmatprep.subr.mxu0 0.0
    %2248 = vmatpush1.msra.mxu0 0.0
    %2249 = vmatprep.subr.mxu0 0.0
    %2250 = vmatpush1.msra.mxu0 0.0
    %2251 = vmatprep.subr.mxu0 0.0
    %2252 = vmatpush1.msra.mxu0 0.0
    %2253 = vmatprep.subr.mxu0 0.0
    %2254 = vmatpush1.msra.mxu0 0.0
    %2255 = vmatprep.subr.mxu0 0.0
    %2256 = vmatpush1.msra.mxu0 0.0
    %2257 = vmatprep.subr.mxu0 0.0
    %2258 = vmatpush1.msra.mxu0 0.0
    %2259 = vmatprep.subr.mxu0 0.0
    %2260 = vmatpush1.msra.mxu0 0.0
    %2261 = vmatprep.subr.mxu0 0.0
    %2262 = vmatpush1.msra.mxu0 0.0
    %2263 = vmatprep.subr.mxu0 0.0
    %2264 = vmatpush1.msra.mxu0 0.0
    %2265 = vmatprep.subr.mxu0 0.0
    %2266 = vmatpush1.msra.mxu0 0.0
    %2267 = vmatprep.subr.mxu0 0.0
    %2268 = vmatpush1.msra.mxu0 0.0
    %2269 = vmatprep.subr.mxu0 0.0
    %2270 = vmatpush1.msra.mxu0 0.0
    %2271 = vmatprep.subr.mxu0 0.0
    %2272 = vmatpush1.msra.mxu0 0.0
    %2273 = vmatprep.subr.mxu0 0.0
    %2274 = vmatpush1.msra.mxu0 0.0
    %2275 = vmatprep.mubr.f32.mxu0 0.0
    %2276 = vmatmul.mubr.f32.gmra.mrb[0].mxu0 %v2206
    %v2277 = vpop.f32.mrb[0].mxu0
    %v2278 = vadd.f32 %v2203, %v2277
    %v2279 = vpop.f32.mrb[0].mxu0
    %2280 = vmatprep.mubr.f32.mxu0 0.0
    %2281 = vmatmul.mubr.f32.gmra.mrb[0].mxu0 %v2209
    %v2282 = vpop.f32.mrb[0].mxu0
    %v2283 = vadd.f32 %v2203, %v2282
    %v2284 = vpop.f32.mrb[0].mxu0
    %2285 = vdwg.mxu0
    %v2286 = vmul.f32 %v2278, %v2278
    %v2287 = vmul.f32 %v2283, %v2283
    %v2288 = vmul.f32 %v2278, %v2286
    %v2289 = vmul.f32 %v2283, %v2287
    %v2290 = vmul.f32 %v2288, 0.044715
    %v2291 = vmul.f32 %v2289, 0.044715
    %v2292 = vadd.f32 %v2278, %v2290
    %v2293 = vadd.f32 %v2283, %v2291
    %v2294 = vmul.f32 %v2292, 0.7978846
    %v2295 = vmul.f32 %v2293, 0.7978846
    %v2296 = vtanh.pop %v2294
    %v2297 = vtanh.pop %v2295
    %v2298 = vadd.f32 %v2296, 1.0
    %v2299 = vadd.f32 %v2297, 1.0
    %v2300 = vmul.f32 %v2298, 0.5
    %v2301 = vmul.f32 %v2299, 0.5
    %v2302 = vmul.f32 %v2278, %v2300
    %v2303 = vmul.f32 %v2283, %v2301
    %s2304 = scalar_lea.vmem %s12, 64
    %v2305 = vld [vmem:[%s2304] sm:$0xff]
    %v2306 = vld [vmem:[%s2304 + $0x8] sm:$0xff]
    %v2307 = vld [vmem:[%s2304 + $0x10] sm:$0xff]
    %v2308 = vld [vmem:[%s2304 + $0x18] sm:$0xff]
    %v2309 = vld [vmem:[%s2304 + $0x20] sm:$0xff]
    %v2310 = vld [vmem:[%s2304 + $0x28] sm:$0xff]
    %v2311 = vld [vmem:[%s2304 + $0x30] sm:$0xff]
    %v2312 = vld [vmem:[%s2304 + $0x38] sm:$0xff]
    %s2313 = scalar_lea.vmem %s13, 1
    %v2314 = vld [vmem:[%s2313] sm:$0x1]
    %v2316 = vlaneseq
    %v2317 = vshrl.u32 %v2316, 7
    %v2318 = vsub.s32 0, %v2317
    %v2319 = vrot.slane %v2314, %v2318
    %v2322 = vsel %vm1152, %v2302, 0
    %v2325 = vsel %vm1152, %v2303, 0
    %2327 = vmatprep.subr.mxu0 0.0
    %2328 = vmatpush1.msra.mxu0 %v2305
    %2329 = vmatprep.subr.mxu0 0.0
    %2330 = vmatpush1.msra.mxu0 %v2306
    %2331 = vmatprep.subr.mxu0 0.0
    %2332 = vmatpush1.msra.mxu0 %v2307
    %2333 = vmatprep.subr.mxu0 0.0
    %2334 = vmatpush1.msra.mxu0 %v2308
    %2335 = vmatprep.subr.mxu0 0.0
    %2336 = vmatpush1.msra.mxu0 %v2309
    %2337 = vmatprep.subr.mxu0 0.0
    %2338 = vmatpush1.msra.mxu0 %v2310
    %2339 = vmatprep.subr.mxu0 0.0
    %2340 = vmatpush1.msra.mxu0 %v2311
    %2341 = vmatprep.subr.mxu0 0.0
    %2342 = vmatpush1.msra.mxu0 %v2312
    %2343 = vmatprep.subr.mxu0 0.0
    %2344 = vmatpush1.msra.mxu0 0.0
    %2345 = vmatprep.subr.mxu0 0.0
    %2346 = vmatpush1.msra.mxu0 0.0
    %2347 = vmatprep.subr.mxu0 0.0
    %2348 = vmatpush1.msra.mxu0 0.0
    %2349 = vmatprep.subr.mxu0 0.0
    %2350 = vmatpush1.msra.mxu0 0.0
    %2351 = vmatprep.subr.mxu0 0.0
    %2352 = vmatpush1.msra.mxu0 0.0
    %2353 = vmatprep.subr.mxu0 0.0
    %2354 = vmatpush1.msra.mxu0 0.0
    %2355 = vmatprep.subr.mxu0 0.0
    %2356 = vmatpush1.msra.mxu0 0.0
    %2357 = vmatprep.subr.mxu0 0.0
    %2358 = vmatpush1.msra.mxu0 0.0
    %2359 = vmatprep.subr.mxu0 0.0
    %2360 = vmatpush1.msra.mxu0 0.0
    %2361 = vmatprep.subr.mxu0 0.0
    %2362 = vmatpush1.msra.mxu0 0.0
    %2363 = vmatprep.subr.mxu0 0.0
    %2364 = vmatpush1.msra.mxu0 0.0
    %2365 = vmatprep.subr.mxu0 0.0
    %2366 = vmatpush1.msra.mxu0 0.0
    %2367 = vmatprep.subr.mxu0 0.0
    %2368 = vmatpush1.msra.mxu0 0.0
    %2369 = vmatprep.subr.mxu0 0.0
    %2370 = vmatpush1.msra.mxu0 0.0
    %2371 = vmatprep.subr.mxu0 0.0
    %2372 = vmatpush1.msra.mxu0 0.0
    %2373 = vmatprep.subr.mxu0 0.0
    %2374 = vmatpush1.msra.mxu0 0.0
    %2375 = vmatprep.subr.mxu0 0.0
    %2376 = vmatpush1.msra.mxu0 0.0
    %2377 = vmatprep.subr.mxu0 0.0
    %2378 = vmatpush1.msra.mxu0 0.0
    %2379 = vmatprep.subr.mxu0 0.0
    %2380 = vmatpush1.msra.mxu0 0.0
    %2381 = vmatprep.subr.mxu0 0.0
    %2382 = vmatpush1.msra.mxu0 0.0
    %2383 = vmatprep.subr.mxu0 0.0
    %2384 = vmatpush1.msra.mxu0 0.0
    %2385 = vmatprep.subr.mxu0 0.0
    %2386 = vmatpush1.msra.mxu0 0.0
    %2387 = vmatprep.subr.mxu0 0.0
    %2388 = vmatpush1.msra.mxu0 0.0
    %2389 = vmatprep.subr.mxu0 0.0
    %2390 = vmatpush1.msra.mxu0 0.0
    %2391 = vmatprep.mubr.f32.mxu0 0.0
    %2392 = vmatmul.mubr.f32.gmra.mrb[0].mxu0 %v2322
    %v2393 = vpop.f32.mrb[0].mxu0
    %v2394 = vadd.f32 %v2319, %v2393
    %v2395 = vpop.f32.mrb[0].mxu0
    %2396 = vmatprep.mubr.f32.mxu0 0.0
    %2397 = vmatmul.mubr.f32.gmra.mrb[0].mxu0 %v2325
    %v2398 = vpop.f32.mrb[0].mxu0
    %v2399 = vadd.f32 %v2319, %v2398
    %v2400 = vpop.f32.mrb[0].mxu0
    %2401 = vdwg.mxu0
    %v2402 = vadd.f32 %v2190, %v2394
    %v2403 = vadd.f32 %v2191, %v2399
    %s2404 = scalar_lea.vmem %s14, 1
    %v2405 = vld [vmem:[%s2404] sm:$0x1]
    %s2406 = scalar_lea.vmem %s15, 1
    %v2407 = vld [vmem:[%s2406] sm:$0x1]
    %v2408 = vsel %vm65, %v2402, 0.0
    %2409 = vadd.xlane.f32.xlu0 %v2408
    %v2410 = vpop.xlane.xlu0 %2409
    %v2411 = vsel %vm65, %v2403, 0.0
    %2412 = vadd.xlane.f32.xlu0 %v2411
    %v2413 = vpop.xlane.xlu0 %2412
    %v2414 = vmul.f32 %v2410, %v72
    %v2415 = vmul.f32 %v2413, %v72
    %v2416 = vsub.f32 %v2402, %v2414
    %v2417 = vsub.f32 %v2403, %v2415
    %v2418 = vmul.f32 %v2416, %v2416
    %v2419 = vmul.f32 %v2417, %v2417
    %v2420 = vsel %vm65, %v2418, 0.0
    %2421 = vadd.xlane.f32.xlu0 %v2420
    %v2422 = vpop.xlane.xlu0 %2421
    %v2423 = vsel %vm65, %v2419, 0.0
    %2424 = vadd.xlane.f32.xlu0 %v2423
    %v2425 = vpop.xlane.xlu0 %2424
    %v2426 = vmul.f32 %v2422, %v72
    %v2427 = vmul.f32 %v2425, %v72
    %v2428 = vadd.f32 %v2426, 1e-12
    %v2429 = vadd.f32 %v2427, 1e-12
    %v2430 = vrsqrt.pop %v2428
    %v2431 = vrsqrt.pop %v2429
    %v2432 = vmul.f32 %v2416, %v2430
    %v2433 = vmul.f32 %v2417, %v2431
    %v2435 = vlaneseq
    %v2436 = vshrl.u32 %v2435, 7
    %v2437 = vsub.s32 0, %v2436
    %v2438 = vrot.slane %v2405, %v2437
    %v2440 = vmul.f32 %v2432, %v2438
    %v2441 = vmul.f32 %v2433, %v2438
    %v2443 = vlaneseq
    %v2444 = vshrl.u32 %v2443, 7
    %v2445 = vsub.s32 0, %v2444
    %v2446 = vrot.slane %v2407, %v2445
    %v2448 = vadd.f32 %v2440, %v2446
    %v2449 = vadd.f32 %v2441, %v2446
    %v2451 = vsel %vm287, %v60, 0
    %2453 = vmatprep.subr.mxu0 0.0
    %2454 = vmatpush1.msra.mxu0 %v2448
    %2455 = vmatprep.subr.mxu0 0.0
    %2456 = vmatpush1.msra.mxu0 0.0
    %2457 = vmatprep.subr.mxu0 0.0
    %2458 = vmatpush1.msra.mxu0 0.0
    %2459 = vmatprep.subr.mxu0 0.0
    %2460 = vmatpush1.msra.mxu0 0.0
    %2461 = vmatprep.subr.mxu0 0.0
    %2462 = vmatpush1.msra.mxu0 0.0
    %2463 = vmatprep.subr.mxu0 0.0
    %2464 = vmatpush1.msra.mxu0 0.0
    %2465 = vmatprep.subr.mxu0 0.0
    %2466 = vmatpush1.msra.mxu0 0.0
    %2467 = vmatprep.subr.mxu0 0.0
    %2468 = vmatpush1.msra.mxu0 0.0
    %2469 = vmatprep.subr.mxu0 0.0
    %2470 = vmatpush1.msra.mxu0 0.0
    %2471 = vmatprep.subr.mxu0 0.0
    %2472 = vmatpush1.msra.mxu0 0.0
    %2473 = vmatprep.subr.mxu0 0.0
    %2474 = vmatpush1.msra.mxu0 0.0
    %2475 = vmatprep.subr.mxu0 0.0
    %2476 = vmatpush1.msra.mxu0 0.0
    %2477 = vmatprep.subr.mxu0 0.0
    %2478 = vmatpush1.msra.mxu0 0.0
    %2479 = vmatprep.subr.mxu0 0.0
    %2480 = vmatpush1.msra.mxu0 0.0
    %2481 = vmatprep.subr.mxu0 0.0
    %2482 = vmatpush1.msra.mxu0 0.0
    %2483 = vmatprep.subr.mxu0 0.0
    %2484 = vmatpush1.msra.mxu0 0.0
    %2485 = vmatprep.subr.mxu0 0.0
    %2486 = vmatpush1.msra.mxu0 0.0
    %2487 = vmatprep.subr.mxu0 0.0
    %2488 = vmatpush1.msra.mxu0 0.0
    %2489 = vmatprep.subr.mxu0 0.0
    %2490 = vmatpush1.msra.mxu0 0.0
    %2491 = vmatprep.subr.mxu0 0.0
    %2492 = vmatpush1.msra.mxu0 0.0
    %2493 = vmatprep.subr.mxu0 0.0
    %2494 = vmatpush1.msra.mxu0 0.0
    %2495 = vmatprep.subr.mxu0 0.0
    %2496 = vmatpush1.msra.mxu0 0.0
    %2497 = vmatprep.subr.mxu0 0.0
    %2498 = vmatpush1.msra.mxu0 0.0
    %2499 = vmatprep.subr.mxu0 0.0
    %2500 = vmatpush1.msra.mxu0 0.0
    %2501 = vmatprep.subr.mxu0 0.0
    %2502 = vmatpush1.msra.mxu0 0.0
    %2503 = vmatprep.subr.mxu0 0.0
    %2504 = vmatpush1.msra.mxu0 0.0
    %2505 = vmatprep.subr.mxu0 0.0
    %2506 = vmatpush1.msra.mxu0 0.0
    %2507 = vmatprep.subr.mxu0 0.0
    %2508 = vmatpush1.msra.mxu0 0.0
    %2509 = vmatprep.subr.mxu0 0.0
    %2510 = vmatpush1.msra.mxu0 0.0
    %2511 = vmatprep.subr.mxu0 0.0
    %2512 = vmatpush1.msra.mxu0 0.0
    %2513 = vmatprep.subr.mxu0 0.0
    %2514 = vmatpush1.msra.mxu0 0.0
    %2515 = vmatprep.subr.mxu0 0.0
    %2516 = vmatpush1.msra.mxu0 0.0
    %2517 = vmatprep.mubr.f32.mxu0 0.0
    %2518 = vmatmul.mubr.f32.gmra.mrb[0].mxu0 %v2451
    %v2519 = vpop.f32.mrb[0].mxu0
    %v2520 = vadd.f32 0.0, %v2519
    %v2521 = vpop.f32.mrb[0].mxu0
    %2522 = vdwg.mxu0
    %vm2523 = vcmask 57344
    %v2524 = vsel %vm2523, %v60, 0.0
    %2525 = vadd.xlane.f32.xlu0 %v2524
    %v2526 = vpop.xlane.xlu0 %2525
    %v2527 = vmax.f32 %v2526, 1e-09
    %v2528 = vrcp.pop %v2527
    %v2529 = vmul.f32 %v2520, %v2528
    %v2530 = vrot.slane %v60, 1
    %v2531 = vsel %vm287, %v2530, 0
    %2533 = vmatprep.subr.mxu0 0.0
    %2534 = vmatpush1.msra.mxu0 %v2449
    %2535 = vmatprep.subr.mxu0 0.0
    %2536 = vmatpush1.msra.mxu0 0.0
    %2537 = vmatprep.subr.mxu0 0.0
    %2538 = vmatpush1.msra.mxu0 0.0
    %2539 = vmatprep.subr.mxu0 0.0
    %2540 = vmatpush1.msra.mxu0 0.0
    %2541 = vmatprep.subr.mxu0 0.0
    %2542 = vmatpush1.msra.mxu0 0.0
    %2543 = vmatprep.subr.mxu0 0.0
    %2544 = vmatpush1.msra.mxu0 0.0
    %2545 = vmatprep.subr.mxu0 0.0
    %2546 = vmatpush1.msra.mxu0 0.0
    %2547 = vmatprep.subr.mxu0 0.0
    %2548 = vmatpush1.msra.mxu0 0.0
    %2549 = vmatprep.subr.mxu0 0.0
    %2550 = vmatpush1.msra.mxu0 0.0
    %2551 = vmatprep.subr.mxu0 0.0
    %2552 = vmatpush1.msra.mxu0 0.0
    %2553 = vmatprep.subr.mxu0 0.0
    %2554 = vmatpush1.msra.mxu0 0.0
    %2555 = vmatprep.subr.mxu0 0.0
    %2556 = vmatpush1.msra.mxu0 0.0
    %2557 = vmatprep.subr.mxu0 0.0
    %2558 = vmatpush1.msra.mxu0 0.0
    %2559 = vmatprep.subr.mxu0 0.0
    %2560 = vmatpush1.msra.mxu0 0.0
    %2561 = vmatprep.subr.mxu0 0.0
    %2562 = vmatpush1.msra.mxu0 0.0
    %2563 = vmatprep.subr.mxu0 0.0
    %2564 = vmatpush1.msra.mxu0 0.0
    %2565 = vmatprep.subr.mxu0 0.0
    %2566 = vmatpush1.msra.mxu0 0.0
    %2567 = vmatprep.subr.mxu0 0.0
    %2568 = vmatpush1.msra.mxu0 0.0
    %2569 = vmatprep.subr.mxu0 0.0
    %2570 = vmatpush1.msra.mxu0 0.0
    %2571 = vmatprep.subr.mxu0 0.0
    %2572 = vmatpush1.msra.mxu0 0.0
    %2573 = vmatprep.subr.mxu0 0.0
    %2574 = vmatpush1.msra.mxu0 0.0
    %2575 = vmatprep.subr.mxu0 0.0
    %2576 = vmatpush1.msra.mxu0 0.0
    %2577 = vmatprep.subr.mxu0 0.0
    %2578 = vmatpush1.msra.mxu0 0.0
    %2579 = vmatprep.subr.mxu0 0.0
    %2580 = vmatpush1.msra.mxu0 0.0
    %2581 = vmatprep.subr.mxu0 0.0
    %2582 = vmatpush1.msra.mxu0 0.0
    %2583 = vmatprep.subr.mxu0 0.0
    %2584 = vmatpush1.msra.mxu0 0.0
    %2585 = vmatprep.subr.mxu0 0.0
    %2586 = vmatpush1.msra.mxu0 0.0
    %2587 = vmatprep.subr.mxu0 0.0
    %2588 = vmatpush1.msra.mxu0 0.0
    %2589 = vmatprep.subr.mxu0 0.0
    %2590 = vmatpush1.msra.mxu0 0.0
    %2591 = vmatprep.subr.mxu0 0.0
    %2592 = vmatpush1.msra.mxu0 0.0
    %2593 = vmatprep.subr.mxu0 0.0
    %2594 = vmatpush1.msra.mxu0 0.0
    %2595 = vmatprep.subr.mxu0 0.0
    %2596 = vmatpush1.msra.mxu0 0.0
    %2597 = vmatprep.mubr.f32.mxu0 0.0
    %2598 = vmatmul.mubr.f32.gmra.mrb[0].mxu0 %v2531
    %v2599 = vpop.f32.mrb[0].mxu0
    %v2600 = vadd.f32 0.0, %v2599
    %v2601 = vpop.f32.mrb[0].mxu0
    %2602 = vdwg.mxu0
    %vm2603 = vcmask 58369
    %v2604 = vsel %vm2603, %v60, 0.0
    %2605 = vadd.xlane.f32.xlu0 %v2604
    %v2606 = vpop.xlane.xlu0 %2605
    %v2607 = vmax.f32 %v2606, 1e-09
    %v2609 = vrot.slane %v2607, 1
    %v2611 = vrcp.pop %v2609
    %v2612 = vmul.f32 %v2600, %v2611
    %v2614 = vrot.slane %v2612, 7
    %vm2616 = vcmask 1040384
    %v2617 = vsel %vm2616, %v2529, %v2614
    %v2618 = vld [vmem:[%s16] sm:$0xff]
    %v2619 = vld [vmem:[%s16 + $0x8] sm:$0xff]
    %v2620 = vld [vmem:[%s16 + $0x10] sm:$0xff]
    %v2621 = vld [vmem:[%s16 + $0x18] sm:$0xff]
    %v2622 = vld [vmem:[%s17] sm:$0x1]
    %v2624 = vlaneseq
    %v2625 = vshrl.u32 %v2624, 7
    %v2626 = vsub.s32 0, %v2625
    %v2627 = vrot.slane %v2622, %v2626
    %v2630 = vsel %vm65, %v2617, 0
    %2632 = vmatprep.subr.mxu0 0.0
    %2633 = vmatpush1.msra.mxu0 %v2618
    %2634 = vmatprep.subr.mxu0 0.0
    %2635 = vmatpush1.msra.mxu0 %v2619
    %2636 = vmatprep.subr.mxu0 0.0
    %2637 = vmatpush1.msra.mxu0 %v2620
    %2638 = vmatprep.subr.mxu0 0.0
    %2639 = vmatpush1.msra.mxu0 %v2621
    %2640 = vmatprep.subr.mxu0 0.0
    %2641 = vmatpush1.msra.mxu0 0.0
    %2642 = vmatprep.subr.mxu0 0.0
    %2643 = vmatpush1.msra.mxu0 0.0
    %2644 = vmatprep.subr.mxu0 0.0
    %2645 = vmatpush1.msra.mxu0 0.0
    %2646 = vmatprep.subr.mxu0 0.0
    %2647 = vmatpush1.msra.mxu0 0.0
    %2648 = vmatprep.subr.mxu0 0.0
    %2649 = vmatpush1.msra.mxu0 0.0
    %2650 = vmatprep.subr.mxu0 0.0
    %2651 = vmatpush1.msra.mxu0 0.0
    %2652 = vmatprep.subr.mxu0 0.0
    %2653 = vmatpush1.msra.mxu0 0.0
    %2654 = vmatprep.subr.mxu0 0.0
    %2655 = vmatpush1.msra.mxu0 0.0
    %2656 = vmatprep.subr.mxu0 0.0
    %2657 = vmatpush1.msra.mxu0 0.0
    %2658 = vmatprep.subr.mxu0 0.0
    %2659 = vmatpush1.msra.mxu0 0.0
    %2660 = vmatprep.subr.mxu0 0.0
    %2661 = vmatpush1.msra.mxu0 0.0
    %2662 = vmatprep.subr.mxu0 0.0
    %2663 = vmatpush1.msra.mxu0 0.0
    %2664 = vmatprep.subr.mxu0 0.0
    %2665 = vmatpush1.msra.mxu0 0.0
    %2666 = vmatprep.subr.mxu0 0.0
    %2667 = vmatpush1.msra.mxu0 0.0
    %2668 = vmatprep.subr.mxu0 0.0
    %2669 = vmatpush1.msra.mxu0 0.0
    %2670 = vmatprep.subr.mxu0 0.0
    %2671 = vmatpush1.msra.mxu0 0.0
    %2672 = vmatprep.subr.mxu0 0.0
    %2673 = vmatpush1.msra.mxu0 0.0
    %2674 = vmatprep.subr.mxu0 0.0
    %2675 = vmatpush1.msra.mxu0 0.0
    %2676 = vmatprep.subr.mxu0 0.0
    %2677 = vmatpush1.msra.mxu0 0.0
    %2678 = vmatprep.subr.mxu0 0.0
    %2679 = vmatpush1.msra.mxu0 0.0
    %2680 = vmatprep.subr.mxu0 0.0
    %2681 = vmatpush1.msra.mxu0 0.0
    %2682 = vmatprep.subr.mxu0 0.0
    %2683 = vmatpush1.msra.mxu0 0.0
    %2684 = vmatprep.subr.mxu0 0.0
    %2685 = vmatpush1.msra.mxu0 0.0
    %2686 = vmatprep.subr.mxu0 0.0
    %2687 = vmatpush1.msra.mxu0 0.0
    %2688 = vmatprep.subr.mxu0 0.0
    %2689 = vmatpush1.msra.mxu0 0.0
    %2690 = vmatprep.subr.mxu0 0.0
    %2691 = vmatpush1.msra.mxu0 0.0
    %2692 = vmatprep.subr.mxu0 0.0
    %2693 = vmatpush1.msra.mxu0 0.0
    %2694 = vmatprep.subr.mxu0 0.0
    %2695 = vmatpush1.msra.mxu0 0.0
    %2696 = vmatprep.mubr.f32.mxu0 0.0
    %2697 = vmatmul.mubr.f32.gmra.mrb[0].mxu0 %v2630
    %v2698 = vpop.f32.mrb[0].mxu0
    %v2699 = vadd.f32 %v2627, %v2698
    %v2700 = vpop.f32.mrb[0].mxu0
    %2701 = vdwg.mxu0
    %2702 = vst [vmem:[#allocation2] sm:$0x3] %v2699
    // Predicated region
    $region74: #{custom_bert_mean_forward.1} parent=1 // pred_check
      _
    $region75: #{custom_bert_mean_forward.1} parent=1 // pred_check_branch
      %2704 = sbr.rel (0) target = $region77
    $region76: #{custom_bert_mean_forward.1} parent=1 // pred_region
      %s2706 = ssub.s32 32, 32
      %2707 = vsyncadd [#allocation3], %s2706
      %s2709 = sshll.u32 [#allocation2], 4
      %s2710 = int_to_ptr.vmem [resolvable:$true] %s2709
      %2712 = dma.vmem_to_hbm [thread:$0]  %s2710, 32, %s18, [#allocation3]
    $region77: #{custom_bert_mean_forward.1} parent=1 // pred_fallthru
      _
    // Predicated region
    $region78: #{custom_bert_mean_forward.1} parent=1 // pred_check
      _
    $region79: #{custom_bert_mean_forward.1} parent=1 // pred_check_branch
      %2714 = sbr.rel (0) target = $region81
    $region80: #{custom_bert_mean_forward.1} parent=1 // pred_region
      %2715 = dma.done [#allocation3], 32
    $region81: #{custom_bert_mean_forward.1} parent=1 // pred_fallthru
      _
    %2716 = vsyncpa [#allocation3], 1

</llo_original>
